<compile_context>
chip_gen: v6e
topology: v6e:2x2x1
jax: 0.10.0
libtpu: 0.0.40
codegen_flags: <defaults>
</compile_context>

<pallas_src>
import jax
import jax.numpy as jnp
from jax.experimental import pallas as pl
from jax.experimental.pallas import tpu as pltpu

# Model dimensions.
CIN, COUT, H, W = 4, 8, 16, 16
P = H * W                     # 256 spatial positions per sample
KP = 9 * CIN                  # 36  im2col contraction length
KP_PAD = 48                   # 36 -> 48: multiple of 16 (bf16 sublane tile)
GRP = 8                       # samples fused per conv matmul (block-diagonal group)
FEAT = 667
FEAT_PAD = 768                # 667 -> 768 (multiple of 128, MXU/lane friendly)
NDOM = 2
NDOM_PAD = 128                # lane-dense final store
MAX_TB = 128                  # samples per grid step (VMEM-safe on v5e/v6e/v7x)


# ---------------------------------------------------------------------------
# Fused Pallas kernel: conv3x3+ReLU -> fc1+ReLU -> fc2 -> softmax (TB samples)
# ---------------------------------------------------------------------------
def _make_kernel(tb):
    n_grp = tb // GRP

    def kernel(pat_ref, wcbd_ref, bcbd_ref, w1_ref, b1_ref, w2_ref, b2_ref,
               feat_ref, dom_ref, conv_scr):
        # ---- conv 3x3 + ReLU: 8 samples per MXU matmul via block-diagonal weights.
        wcbd = wcbd_ref[...]                               # (64, 384) bf16
        bcbd = bcbd_ref[...]                               # (64, 1)   f32
        for g in range(n_grp):
            pg = pat_ref[g]                                # (384, 256) bf16: 8 samples on K
            og = jnp.dot(wcbd, pg, preferred_element_type=jnp.float32)   # (64, 256)
            og = jnp.maximum(og + bcbd, 0.0)
            # og rows are (channel c major, sample s minor); scatter into the
            # channel-major scratch with aligned, dense (8, 256) stores.
            for c in range(COUT):
                conv_scr[c * tb + g * GRP:c * tb + (g + 1) * GRP, :] = (
                    og[c * GRP:(c + 1) * GRP, :])

        # ---- fc1 (NCHW-flatten 2048 -> 768 padded): 8 matmuls with M = TB rows.
        #   feat[b,f] = sum_{c,p} conv[c,b,p] * w1[c*256+p, f]
        acc = jnp.dot(conv_scr[0:tb, :].astype(jnp.bfloat16), w1_ref[0:P, :],
                      preferred_element_type=jnp.float32)
        for c in range(1, COUT):
            lhs = conv_scr[c * tb:(c + 1) * tb, :].astype(jnp.bfloat16)   # (TB, 256)
            acc = acc + jnp.dot(lhs, w1_ref[c * P:(c + 1) * P, :],
                                preferred_element_type=jnp.float32)
        feat = jnp.maximum(acc + b1_ref[...], 0.0)                         # (TB, 768) f32
        feat_ref[...] = feat

        # ---- GradientReversal is identity in forward; fc2 (667->2, padded) + softmax.
        logits = jnp.dot(feat.astype(jnp.bfloat16), w2_ref[...],
                         preferred_element_type=jnp.float32)
        logits = logits + b2_ref[...]            # padded lanes carry a -1e30 bias (mask)
        m = jnp.max(logits, axis=-1, keepdims=True)
        e = jnp.exp(logits - m)
        dom_ref[...] = e / jnp.sum(e, axis=-1, keepdims=True)

    return kernel


def _fused_forward_call(prep, patches_grp, n_pad, tb):
    n_blocks = n_pad // tb
    grid_spec = pltpu.PrefetchScalarGridSpec(
        num_scalar_prefetch=0,
        grid=(n_blocks,),
        in_specs=[
            pl.BlockSpec((tb // GRP, GRP * KP_PAD, P), lambda i: (i, 0, 0)),  # patches (bf16)
            pl.BlockSpec((COUT * GRP, GRP * KP_PAD), lambda i: (0, 0)),       # conv w (block-diag)
            pl.BlockSpec((COUT * GRP, 1), lambda i: (0, 0)),                  # conv bias
            pl.BlockSpec((COUT * P, FEAT_PAD), lambda i: (0, 0)),             # fc1 w (bf16)
            pl.BlockSpec((1, FEAT_PAD), lambda i: (0, 0)),                    # fc1 bias
            pl.BlockSpec((FEAT_PAD, NDOM_PAD), lambda i: (0, 0)),             # fc2 w (bf16)
            pl.BlockSpec((1, NDOM_PAD), lambda i: (0, 0)),                    # fc2 bias (+mask)
        ],
        out_specs=(
            pl.BlockSpec((tb, FEAT_PAD), lambda i: (i, 0)),                   # features
            pl.BlockSpec((tb, NDOM_PAD), lambda i: (i, 0)),                   # domain probs
        ),
        scratch_shapes=[pltpu.VMEM((COUT * tb, P), jnp.float32)],             # channel-major conv
    )
    feat_pad, dom_pad = pl.pallas_call(
        _make_kernel(tb),
        out_shape=(jax.ShapeDtypeStruct((n_pad, FEAT_PAD), jnp.float32),
                   jax.ShapeDtypeStruct((n_pad, NDOM_PAD), jnp.float32)),
        grid_spec=grid_spec,
        compiler_params=pltpu.CompilerParams(
            dimension_semantics=("parallel",)),
    )(patches_grp, prep["wc_bd"], prep["bc_bd"], prep["w1"],
      prep["b1_pad"], prep["w2_pad"], prep["b2_fold"])
    return feat_pad, dom_pad


# ---------------------------------------------------------------------------
# Host-side glue
# ---------------------------------------------------------------------------
def _im2col_grouped(x_nchw, n_pad):
    """(N,C,H,W) -> (n_pad/8, 8*KP_PAD, H*W) bf16; per sample rows are tap-major,
    cin-minor (matching the conv weight layout), zero-padded 36->48 and grouped
    8 samples along the contraction axis for the block-diagonal conv matmul."""
    n = x_nchw.shape[0]
    xp = jnp.pad(x_nchw, ((0, 0), (0, 0), (1, 1), (1, 1)))
    taps = []
    for i in range(3):
        for j in range(3):
            taps.append(xp[:, :, i:i + H, j:j + W].reshape(n, CIN, P))
    pat = jnp.stack(taps, axis=1).reshape(n, KP, P)
    pat = jnp.pad(pat, ((0, n_pad - n), (0, KP_PAD - KP), (0, 0)))
    return pat.astype(jnp.bfloat16).reshape(n_pad // GRP, GRP * KP_PAD, P)


def init_params(key):
    """Deterministic synthetic parameters in PyTorch-style layout."""
    ks = jax.random.split(key, 6)
    conv_w = 0.05 * jax.random.normal(ks[0], (COUT, CIN, 3, 3), jnp.float32)  # OIHW
    conv_b = 0.01 * jax.random.normal(ks[1], (COUT,), jnp.float32)
    flat = COUT * H * W                                                       # 2048
    fc1_w = 0.02 * jax.random.normal(ks[2], (flat, FEAT), jnp.float32)
    fc1_b = 0.01 * jax.random.normal(ks[3], (FEAT,), jnp.float32)
    fc2_w = 0.10 * jax.random.normal(ks[4], (FEAT, NDOM), jnp.float32)
    fc2_b = 0.01 * jax.random.normal(ks[5], (NDOM,), jnp.float32)
    return dict(conv_w=conv_w, conv_b=conv_b,
                fc1_w=fc1_w, fc1_b=fc1_b, fc2_w=fc2_w, fc2_b=fc2_b)


def prepare_params(params):
    """One-time repack of weights into kernel-ready padded/block-diagonal form."""
    # conv weights: OIHW -> (COUT, tap*CIN) tap-major/cin-minor, padded 36->48.
    wc_t = jnp.transpose(params["conv_w"], (0, 2, 3, 1)).reshape(COUT, KP)
    wc_t = jnp.pad(wc_t, ((0, 0), (0, KP_PAD - KP)))                          # (8, 48)
    # Block-diagonal over 8 samples: wc_bd[c*8+s, s*48+k] = wc_t[c, k].
    eye = jnp.eye(GRP, dtype=wc_t.dtype)
    wc_bd = (wc_t[:, None, None, :] * eye[None, :, :, None]
             ).reshape(COUT * GRP, GRP * KP_PAD)                              # (64, 384)
    bc_bd = jnp.repeat(params["conv_b"], GRP).reshape(COUT * GRP, 1)          # (64, 1)
    # fc1 weights: NCHW-flatten rows (c*256+p), padded 667->768 cols, bf16.
    w1 = jnp.pad(params["fc1_w"], ((0, 0), (0, FEAT_PAD - FEAT))).astype(jnp.bfloat16)
    b1_pad = jnp.pad(params["fc1_b"], (0, FEAT_PAD - FEAT)).reshape(1, FEAT_PAD)
    # fc2 weights padded to 128 lanes, bf16; lane mask folded into the bias.
    w2_pad = jnp.pad(params["fc2_w"],
                     ((0, FEAT_PAD - FEAT), (0, NDOM_PAD - NDOM))).astype(jnp.bfloat16)
    b2_fold = jnp.full((1, NDOM_PAD), -1e30, jnp.float32)
    b2_fold = b2_fold.at[0, :NDOM].set(params["fc2_b"])
    return dict(wc_bd=wc_bd.astype(jnp.bfloat16),
                bc_bd=bc_bd.astype(jnp.float32),
                w1=w1,
                b1_pad=b1_pad.astype(jnp.float32),
                w2_pad=w2_pad,
                b2_fold=b2_fold)


def _choose_tb(n):
    """Samples per grid step: multiple of 8, <= MAX_TB, and (when n allows) at least
    2 grid steps so both TensorCores of a v7x chip get work."""
    tb = GRP * max(1, -(-n // (2 * GRP)))      # ceil(n/2), rounded up to a multiple of 8
    return min(MAX_TB, tb)


@jax.jit
def _forward_both(prep, x):
    n = x.shape[0]
    tb = _choose_tb(n)
    n_pad = -(-n // tb) * tb
    patches = _im2col_grouped(x.astype(jnp.float32), n_pad)
    feat_pad, dom_pad = _fused_forward_call(prep, patches, n_pad, tb)
    return feat_pad[:n, :FEAT], dom_pad[:n, :NDOM]


def cnn_domain_transfer_forward(prep, x, return_domain=False):
    """Mirrors CNNDomainTransferNet.forward (Dropout unused; GradRev = identity fwd)."""
    feat, dom = _forward_both(prep, x)
    return dom if return_domain else feat


# ---------------------------------------------------------------------------
# Pure-JAX f32 reference (for correctness check)
# ---------------------------------------------------------------------------
def reference_forward(params, x, return_domain=False):
    conv = jax.lax.conv_general_dilated(
        x, params["conv_w"], (1, 1), "SAME",
        dimension_numbers=("NCHW", "OIHW", "NCHW"))
    conv = jnp.maximum(conv + params["conv_b"][None, :, None, None], 0.0)
    flat = conv.reshape(x.shape[0], -1)
    feat = jnp.maximum(flat @ params["fc1_w"] + params["fc1_b"], 0.0)
    if not return_domain:
        return feat
    logits = feat @ params["fc2_w"] + params["fc2_b"]
    return jax.nn.softmax(logits, axis=-1)


if __name__ == "__main__":
    key = jax.random.PRNGKey(0)
    k_x, k_p = jax.random.split(key)
    x = jax.random.normal(k_x, (2, CIN, H, W), jnp.float32)   # NCHW, like PyTorch
    params = init_params(k_p)
    prep = prepare_params(params)

    feat = jax.block_until_ready(
        cnn_domain_transfer_forward(prep, x, return_domain=False))
    dom = jax.block_until_ready(
        cnn_domain_transfer_forward(prep, x, return_domain=True))

    feat_ref = reference_forward(params, x, return_domain=False)
    dom_ref = reference_forward(params, x, return_domain=True)

    assert feat.shape == (2, FEAT) and dom.shape == (2, NDOM)
    # conv/fc1/fc2 use bf16 operands with f32 MXU accumulation (intentional precision
    # choice) -> looser tolerance vs the pure-f32 reference; still catches any
    # structural / layout / permutation bug.
    assert jnp.allclose(feat, feat_ref, atol=2e-2, rtol=2e-2)
    assert jnp.allclose(dom, dom_ref, atol=2e-2, rtol=2e-2)
    assert jnp.allclose(jnp.sum(dom, axis=-1), 1.0, atol=1e-3)

    print("KERNEL_OK")
</pallas_src>

<mosaic_0001>
module attributes {stable_mosaic.version = 11 : i64} {
  func.func @kernel(%arg0: i32, %arg1: memref<1x384x256xbf16, #tpu.memory_space<vmem>>, %arg2: memref<64x384xbf16, #tpu.memory_space<vmem>>, %arg3: memref<64x1xf32, #tpu.memory_space<vmem>>, %arg4: memref<2048x768xbf16, #tpu.memory_space<vmem>>, %arg5: memref<1x768xf32, #tpu.memory_space<vmem>>, %arg6: memref<768x128xbf16, #tpu.memory_space<vmem>>, %arg7: memref<1x128xf32, #tpu.memory_space<vmem>>, %arg8: memref<8x768xf32, #tpu.memory_space<vmem>>, %arg9: memref<8x128xf32, #tpu.memory_space<vmem>>, %arg10: memref<64x256xf32, #tpu.memory_space<vmem>>) attributes {dimension_semantics = [#tpu.dimension_semantics<parallel>], iteration_bounds = array<i64: 1>, scalar_prefetch = 0 : i64, scratch_operands = 1 : i64, tpu.core_type = #tpu.core_type<tc>, window_params = [{transform_indices = @transform_0, window_bounds = array<i64: 1, 384, 256>}, {pipeline_mode = #tpu.pipeline_mode<synchronous>, transform_indices = @transform_1, window_bounds = array<i64: 64, 384>}, {pipeline_mode = #tpu.pipeline_mode<synchronous>, transform_indices = @transform_2, window_bounds = array<i64: 64, 1>}, {pipeline_mode = #tpu.pipeline_mode<synchronous>, transform_indices = @transform_3, window_bounds = array<i64: 2048, 768>}, {pipeline_mode = #tpu.pipeline_mode<synchronous>, transform_indices = @transform_4, window_bounds = array<i64: 1, 768>}, {pipeline_mode = #tpu.pipeline_mode<synchronous>, transform_indices = @transform_5, window_bounds = array<i64: 768, 128>}, {pipeline_mode = #tpu.pipeline_mode<synchronous>, transform_indices = @transform_6, window_bounds = array<i64: 1, 128>}, {transform_indices = @transform_7, window_bounds = array<i64: 8, 768>}, {transform_indices = @transform_8, window_bounds = array<i64: 8, 128>}]} {
    %c0 = arith.constant 0 : index
    %c0_0 = arith.constant 0 : index
    %0 = vector.load %arg2[%c0, %c0_0] : memref<64x384xbf16, #tpu.memory_space<vmem>>, vector<64x384xbf16>
    %c0_1 = arith.constant 0 : index
    %c0_2 = arith.constant 0 : index
    %1 = vector.load %arg3[%c0_1, %c0_2] : memref<64x1xf32, #tpu.memory_space<vmem>>, vector<64x1xf32>
    %c0_3 = arith.constant 0 : index
    %c0_4 = arith.constant 0 : index
    %c0_5 = arith.constant 0 : index
    %2 = vector.load %arg1[%c0_3, %c0_4, %c0_5] : memref<1x384x256xbf16, #tpu.memory_space<vmem>>, vector<1x384x256xbf16>
    %3 = vector.shape_cast %2 : vector<1x384x256xbf16> to vector<384x256xbf16>
    %cst = arith.constant dense<0.000000e+00> : vector<64x256xf32>
    %4 = tpu.matmul %0, %3, %cst {dimension_numbers = #tpu.dot_dimension_numbers<[1], [0], [0], [1], [0, 0, 1, 1], [], []>} : vector<64x384xbf16>, vector<384x256xbf16>, vector<64x256xf32> -> vector<64x256xf32>
    %5 = vector.broadcast %1 : vector<64x1xf32> to vector<64x256xf32>
    %6 = arith.addf %4, %5 : vector<64x256xf32>
    %cst_6 = arith.constant 0.000000e+00 : f32
    %7 = vector.broadcast %cst_6 : f32 to vector<64x256xf32>
    %8 = arith.maximumf %6, %7 : vector<64x256xf32>
    %9 = vector.extract_strided_slice %8 {offsets = [0, 0], sizes = [8, 256], strides = [1, 1]} : vector<64x256xf32> to vector<8x256xf32>
    %c0_7 = arith.constant 0 : index
    %c0_8 = arith.constant 0 : index
    %10 = vector.load %arg10[%c0_7, %c0_8] : memref<64x256xf32, #tpu.memory_space<vmem>>, vector<8x256xf32>
    tpu.vector_store %arg10[%c0_7, %c0_8], %9 {strides = array<i32>} : memref<64x256xf32, #tpu.memory_space<vmem>>, vector<8x256xf32>,
    %11 = vector.extract_strided_slice %8 {offsets = [8, 0], sizes = [8, 256], strides = [1, 1]} : vector<64x256xf32> to vector<8x256xf32>
    %c8 = arith.constant 8 : index
    %c0_9 = arith.constant 0 : index
    %12 = vector.load %arg10[%c8, %c0_9] : memref<64x256xf32, #tpu.memory_space<vmem>>, vector<8x256xf32>
    tpu.vector_store %arg10[%c8, %c0_9], %11 {strides = array<i32>} : memref<64x256xf32, #tpu.memory_space<vmem>>, vector<8x256xf32>,
    %13 = vector.extract_strided_slice %8 {offsets = [16, 0], sizes = [8, 256], strides = [1, 1]} : vector<64x256xf32> to vector<8x256xf32>
    %c16 = arith.constant 16 : index
    %c0_10 = arith.constant 0 : index
    %14 = vector.load %arg10[%c16, %c0_10] : memref<64x256xf32, #tpu.memory_space<vmem>>, vector<8x256xf32>
    tpu.vector_store %arg10[%c16, %c0_10], %13 {strides = array<i32>} : memref<64x256xf32, #tpu.memory_space<vmem>>, vector<8x256xf32>,
    %15 = vector.extract_strided_slice %8 {offsets = [24, 0], sizes = [8, 256], strides = [1, 1]} : vector<64x256xf32> to vector<8x256xf32>
    %c24 = arith.constant 24 : index
    %c0_11 = arith.constant 0 : index
    %16 = vector.load %arg10[%c24, %c0_11] : memref<64x256xf32, #tpu.memory_space<vmem>>, vector<8x256xf32>
    tpu.vector_store %arg10[%c24, %c0_11], %15 {strides = array<i32>} : memref<64x256xf32, #tpu.memory_space<vmem>>, vector<8x256xf32>,
    %17 = vector.extract_strided_slice %8 {offsets = [32, 0], sizes = [8, 256], strides = [1, 1]} : vector<64x256xf32> to vector<8x256xf32>
    %c32 = arith.constant 32 : index
    %c0_12 = arith.constant 0 : index
    %18 = vector.load %arg10[%c32, %c0_12] : memref<64x256xf32, #tpu.memory_space<vmem>>, vector<8x256xf32>
    tpu.vector_store %arg10[%c32, %c0_12], %17 {strides = array<i32>} : memref<64x256xf32, #tpu.memory_space<vmem>>, vector<8x256xf32>,
    %19 = vector.extract_strided_slice %8 {offsets = [40, 0], sizes = [8, 256], strides = [1, 1]} : vector<64x256xf32> to vector<8x256xf32>
    %c40 = arith.constant 40 : index
    %c0_13 = arith.constant 0 : index
    %20 = vector.load %arg10[%c40, %c0_13] : memref<64x256xf32, #tpu.memory_space<vmem>>, vector<8x256xf32>
    tpu.vector_store %arg10[%c40, %c0_13], %19 {strides = array<i32>} : memref<64x256xf32, #tpu.memory_space<vmem>>, vector<8x256xf32>,
    %21 = vector.extract_strided_slice %8 {offsets = [48, 0], sizes = [8, 256], strides = [1, 1]} : vector<64x256xf32> to vector<8x256xf32>
    %c48 = arith.constant 48 : index
    %c0_14 = arith.constant 0 : index
    %22 = vector.load %arg10[%c48, %c0_14] : memref<64x256xf32, #tpu.memory_space<vmem>>, vector<8x256xf32>
    tpu.vector_store %arg10[%c48, %c0_14], %21 {strides = array<i32>} : memref<64x256xf32, #tpu.memory_space<vmem>>, vector<8x256xf32>,
    %23 = vector.extract_strided_slice %8 {offsets = [56, 0], sizes = [8, 256], strides = [1, 1]} : vector<64x256xf32> to vector<8x256xf32>
    %c56 = arith.constant 56 : index
    %c0_15 = arith.constant 0 : index
    %24 = vector.load %arg10[%c56, %c0_15] : memref<64x256xf32, #tpu.memory_space<vmem>>, vector<8x256xf32>
    tpu.vector_store %arg10[%c56, %c0_15], %23 {strides = array<i32>} : memref<64x256xf32, #tpu.memory_space<vmem>>, vector<8x256xf32>,
    %c0_16 = arith.constant 0 : index
    %c0_17 = arith.constant 0 : index
    %25 = vector.load %arg10[%c0_16, %c0_17] : memref<64x256xf32, #tpu.memory_space<vmem>>, vector<8x256xf32>
    %26 = arith.truncf %25 : vector<8x256xf32> to vector<8x256xbf16>
    %c0_18 = arith.constant 0 : index
    %c0_19 = arith.constant 0 : index
    %27 = vector.load %arg4[%c0_18, %c0_19] : memref<2048x768xbf16, #tpu.memory_space<vmem>>, vector<256x768xbf16>
    %cst_20 = arith.constant dense<0.000000e+00> : vector<8x768xf32>
    %28 = tpu.matmul %26, %27, %cst_20 {dimension_numbers = #tpu.dot_dimension_numbers<[1], [0], [0], [1], [0, 0, 1, 1], [], []>} : vector<8x256xbf16>, vector<256x768xbf16>, vector<8x768xf32> -> vector<8x768xf32>
    %c8_21 = arith.constant 8 : index
    %c0_22 = arith.constant 0 : index
    %29 = vector.load %arg10[%c8_21, %c0_22] : memref<64x256xf32, #tpu.memory_space<vmem>>, vector<8x256xf32>
    %30 = arith.truncf %29 : vector<8x256xf32> to vector<8x256xbf16>
    %c256 = arith.constant 256 : index
    %c0_23 = arith.constant 0 : index
    %31 = vector.load %arg4[%c256, %c0_23] : memref<2048x768xbf16, #tpu.memory_space<vmem>>, vector<256x768xbf16>
    %cst_24 = arith.constant dense<0.000000e+00> : vector<8x768xf32>
    %32 = tpu.matmul %30, %31, %cst_24 {dimension_numbers = #tpu.dot_dimension_numbers<[1], [0], [0], [1], [0, 0, 1, 1], [], []>} : vector<8x256xbf16>, vector<256x768xbf16>, vector<8x768xf32> -> vector<8x768xf32>
    %33 = arith.addf %28, %32 : vector<8x768xf32>
    %c16_25 = arith.constant 16 : index
    %c0_26 = arith.constant 0 : index
    %34 = vector.load %arg10[%c16_25, %c0_26] : memref<64x256xf32, #tpu.memory_space<vmem>>, vector<8x256xf32>
    %35 = arith.truncf %34 : vector<8x256xf32> to vector<8x256xbf16>
    %c512 = arith.constant 512 : index
    %c0_27 = arith.constant 0 : index
    %36 = vector.load %arg4[%c512, %c0_27] : memref<2048x768xbf16, #tpu.memory_space<vmem>>, vector<256x768xbf16>
    %cst_28 = arith.constant dense<0.000000e+00> : vector<8x768xf32>
    %37 = tpu.matmul %35, %36, %cst_28 {dimension_numbers = #tpu.dot_dimension_numbers<[1], [0], [0], [1], [0, 0, 1, 1], [], []>} : vector<8x256xbf16>, vector<256x768xbf16>, vector<8x768xf32> -> vector<8x768xf32>
    %38 = arith.addf %33, %37 : vector<8x768xf32>
    %c24_29 = arith.constant 24 : index
    %c0_30 = arith.constant 0 : index
    %39 = vector.load %arg10[%c24_29, %c0_30] : memref<64x256xf32, #tpu.memory_space<vmem>>, vector<8x256xf32>
    %40 = arith.truncf %39 : vector<8x256xf32> to vector<8x256xbf16>
    %c768 = arith.constant 768 : index
    %c0_31 = arith.constant 0 : index
    %41 = vector.load %arg4[%c768, %c0_31] : memref<2048x768xbf16, #tpu.memory_space<vmem>>, vector<256x768xbf16>
    %cst_32 = arith.constant dense<0.000000e+00> : vector<8x768xf32>
    %42 = tpu.matmul %40, %41, %cst_32 {dimension_numbers = #tpu.dot_dimension_numbers<[1], [0], [0], [1], [0, 0, 1, 1], [], []>} : vector<8x256xbf16>, vector<256x768xbf16>, vector<8x768xf32> -> vector<8x768xf32>
    %43 = arith.addf %38, %42 : vector<8x768xf32>
    %c32_33 = arith.constant 32 : index
    %c0_34 = arith.constant 0 : index
    %44 = vector.load %arg10[%c32_33, %c0_34] : memref<64x256xf32, #tpu.memory_space<vmem>>, vector<8x256xf32>
    %45 = arith.truncf %44 : vector<8x256xf32> to vector<8x256xbf16>
    %c1024 = arith.constant 1024 : index
    %c0_35 = arith.constant 0 : index
    %46 = vector.load %arg4[%c1024, %c0_35] : memref<2048x768xbf16, #tpu.memory_space<vmem>>, vector<256x768xbf16>
    %cst_36 = arith.constant dense<0.000000e+00> : vector<8x768xf32>
    %47 = tpu.matmul %45, %46, %cst_36 {dimension_numbers = #tpu.dot_dimension_numbers<[1], [0], [0], [1], [0, 0, 1, 1], [], []>} : vector<8x256xbf16>, vector<256x768xbf16>, vector<8x768xf32> -> vector<8x768xf32>
    %48 = arith.addf %43, %47 : vector<8x768xf32>
    %c40_37 = arith.constant 40 : index
    %c0_38 = arith.constant 0 : index
    %49 = vector.load %arg10[%c40_37, %c0_38] : memref<64x256xf32, #tpu.memory_space<vmem>>, vector<8x256xf32>
    %50 = arith.truncf %49 : vector<8x256xf32> to vector<8x256xbf16>
    %c1280 = arith.constant 1280 : index
    %c0_39 = arith.constant 0 : index
    %51 = vector.load %arg4[%c1280, %c0_39] : memref<2048x768xbf16, #tpu.memory_space<vmem>>, vector<256x768xbf16>
    %cst_40 = arith.constant dense<0.000000e+00> : vector<8x768xf32>
    %52 = tpu.matmul %50, %51, %cst_40 {dimension_numbers = #tpu.dot_dimension_numbers<[1], [0], [0], [1], [0, 0, 1, 1], [], []>} : vector<8x256xbf16>, vector<256x768xbf16>, vector<8x768xf32> -> vector<8x768xf32>
    %53 = arith.addf %48, %52 : vector<8x768xf32>
    %c48_41 = arith.constant 48 : index
    %c0_42 = arith.constant 0 : index
    %54 = vector.load %arg10[%c48_41, %c0_42] : memref<64x256xf32, #tpu.memory_space<vmem>>, vector<8x256xf32>
    %55 = arith.truncf %54 : vector<8x256xf32> to vector<8x256xbf16>
    %c1536 = arith.constant 1536 : index
    %c0_43 = arith.constant 0 : index
    %56 = vector.load %arg4[%c1536, %c0_43] : memref<2048x768xbf16, #tpu.memory_space<vmem>>, vector<256x768xbf16>
    %cst_44 = arith.constant dense<0.000000e+00> : vector<8x768xf32>
    %57 = tpu.matmul %55, %56, %cst_44 {dimension_numbers = #tpu.dot_dimension_numbers<[1], [0], [0], [1], [0, 0, 1, 1], [], []>} : vector<8x256xbf16>, vector<256x768xbf16>, vector<8x768xf32> -> vector<8x768xf32>
    %58 = arith.addf %53, %57 : vector<8x768xf32>
    %c56_45 = arith.constant 56 : index
    %c0_46 = arith.constant 0 : index
    %59 = vector.load %arg10[%c56_45, %c0_46] : memref<64x256xf32, #tpu.memory_space<vmem>>, vector<8x256xf32>
    %60 = arith.truncf %59 : vector<8x256xf32> to vector<8x256xbf16>
    %c1792 = arith.constant 1792 : index
    %c0_47 = arith.constant 0 : index
    %61 = vector.load %arg4[%c1792, %c0_47] : memref<2048x768xbf16, #tpu.memory_space<vmem>>, vector<256x768xbf16>
    %cst_48 = arith.constant dense<0.000000e+00> : vector<8x768xf32>
    %62 = tpu.matmul %60, %61, %cst_48 {dimension_numbers = #tpu.dot_dimension_numbers<[1], [0], [0], [1], [0, 0, 1, 1], [], []>} : vector<8x256xbf16>, vector<256x768xbf16>, vector<8x768xf32> -> vector<8x768xf32>
    %63 = arith.addf %58, %62 : vector<8x768xf32>
    %c0_49 = arith.constant 0 : index
    %c0_50 = arith.constant 0 : index
    %64 = vector.load %arg5[%c0_49, %c0_50] : memref<1x768xf32, #tpu.memory_space<vmem>>, vector<1x768xf32>
    %65 = vector.broadcast %64 : vector<1x768xf32> to vector<8x768xf32>
    %66 = arith.addf %63, %65 : vector<8x768xf32>
    %cst_51 = arith.constant 0.000000e+00 : f32
    %67 = vector.broadcast %cst_51 : f32 to vector<8x768xf32>
    %68 = arith.maximumf %66, %67 : vector<8x768xf32>
    %c0_52 = arith.constant 0 : index
    %c0_53 = arith.constant 0 : index
    %69 = vector.load %arg8[%c0_52, %c0_53] : memref<8x768xf32, #tpu.memory_space<vmem>>, vector<8x768xf32>
    tpu.vector_store %arg8[%c0_52, %c0_53], %68 {strides = array<i32>} : memref<8x768xf32, #tpu.memory_space<vmem>>, vector<8x768xf32>,
    %70 = arith.truncf %68 : vector<8x768xf32> to vector<8x768xbf16>
    %c0_54 = arith.constant 0 : index
    %c0_55 = arith.constant 0 : index
    %71 = vector.load %arg6[%c0_54, %c0_55] : memref<768x128xbf16, #tpu.memory_space<vmem>>, vector<768x128xbf16>
    %cst_56 = arith.constant dense<0.000000e+00> : vector<8x128xf32>
    %72 = tpu.matmul %70, %71, %cst_56 {dimension_numbers = #tpu.dot_dimension_numbers<[1], [0], [0], [1], [0, 0, 1, 1], [], []>} : vector<8x768xbf16>, vector<768x128xbf16>, vector<8x128xf32> -> vector<8x128xf32>
    %c0_57 = arith.constant 0 : index
    %c0_58 = arith.constant 0 : index
    %73 = vector.load %arg7[%c0_57, %c0_58] : memref<1x128xf32, #tpu.memory_space<vmem>>, vector<1x128xf32>
    %74 = vector.broadcast %73 : vector<1x128xf32> to vector<8x128xf32>
    %75 = arith.addf %72, %74 : vector<8x128xf32>
    %cst_59 = arith.constant dense<0xFF800000> : vector<8xf32>
    %76 = vector.multi_reduction <maximumf>, %75, %cst_59 [1] : vector<8x128xf32> to vector<8xf32>
    %77 = vector.shape_cast %76 : vector<8xf32> to vector<8x1xf32>
    %78 = vector.broadcast %77 : vector<8x1xf32> to vector<8x128xf32>
    %79 = arith.subf %75, %78 : vector<8x128xf32>
    %80 = math.exp %79 : vector<8x128xf32>
    %cst_60 = arith.constant dense<0.000000e+00> : vector<8xf32>
    %81 = vector.multi_reduction <add>, %80, %cst_60 [1] : vector<8x128xf32> to vector<8xf32>
    %82 = vector.shape_cast %81 : vector<8xf32> to vector<8x1xf32>
    %83 = vector.broadcast %82 : vector<8x1xf32> to vector<8x128xf32>
    %84 = arith.divf %80, %83 : vector<8x128xf32>
    %c0_61 = arith.constant 0 : index
    %c0_62 = arith.constant 0 : index
    %85 = vector.load %arg9[%c0_61, %c0_62] : memref<8x128xf32, #tpu.memory_space<vmem>>, vector<8x128xf32>
    tpu.vector_store %arg9[%c0_61, %c0_62], %84 {strides = array<i32>} : memref<8x128xf32, #tpu.memory_space<vmem>>, vector<8x128xf32>,
    return
  }
  func.func @transform_0(%arg0: i32) -> (i32, i32, i32) {
    %c0_i32 = arith.constant 0 : i32
    %c0_i32_0 = arith.constant 0 : i32
    %c0_i32_1 = arith.constant 0 : i32
    return %arg0, %c0_i32, %c0_i32_0 : i32, i32, i32
  }
  func.func @transform_1(%arg0: i32) -> (i32, i32) {
    %c0_i32 = arith.constant 0 : i32
    %c0_i32_0 = arith.constant 0 : i32
    %c0_i32_1 = arith.constant 0 : i32
    return %c0_i32, %c0_i32_0 : i32, i32
  }
  func.func @transform_2(%arg0: i32) -> (i32, i32) {
    %c0_i32 = arith.constant 0 : i32
    %c0_i32_0 = arith.constant 0 : i32
    %c0_i32_1 = arith.constant 0 : i32
    return %c0_i32, %c0_i32_0 : i32, i32
  }
  func.func @transform_3(%arg0: i32) -> (i32, i32) {
    %c0_i32 = arith.constant 0 : i32
    %c0_i32_0 = arith.constant 0 : i32
    %c0_i32_1 = arith.constant 0 : i32
    return %c0_i32, %c0_i32_0 : i32, i32
  }
  func.func @transform_4(%arg0: i32) -> (i32, i32) {
    %c0_i32 = arith.constant 0 : i32
    %c0_i32_0 = arith.constant 0 : i32
    %c0_i32_1 = arith.constant 0 : i32
    return %c0_i32, %c0_i32_0 : i32, i32
  }
  func.func @transform_5(%arg0: i32) -> (i32, i32) {
    %c0_i32 = arith.constant 0 : i32
    %c0_i32_0 = arith.constant 0 : i32
    %c0_i32_1 = arith.constant 0 : i32
    return %c0_i32, %c0_i32_0 : i32, i32
  }
  func.func @transform_6(%arg0: i32) -> (i32, i32) {
    %c0_i32 = arith.constant 0 : i32
    %c0_i32_0 = arith.constant 0 : i32
    %c0_i32_1 = arith.constant 0 : i32
    return %c0_i32, %c0_i32_0 : i32, i32
  }
  func.func @transform_7(%arg0: i32) -> (i32, i32) {
    %c0_i32 = arith.constant 0 : i32
    %c0_i32_0 = arith.constant 0 : i32
    return %arg0, %c0_i32 : i32, i32
  }
  func.func @transform_8(%arg0: i32) -> (i32, i32) {
    %c0_i32 = arith.constant 0 : i32
    %c0_i32_0 = arith.constant 0 : i32
    return %arg0, %c0_i32 : i32, i32
  }
}

</mosaic_0001>

<llo_original>
// kernel: _forward_both.1
$region0: #{_forward_both.1}
  #allocation0 [shape = 'u32[]', space=smem, size = 0x4, offset = 0x4, fixed_abs, tag = 'smem constant byte address 0x4 - core index']
  #allocation1 [shape = 'u32[144,128]{1,0:T(1,128)}', space=vmem, size = 0x12000, scoped, tag = 'internal scratch']
  #allocation2 [shape = 'f32[64,256]{1,0:T(8,128)}', space=vmem, size = 0x10000, scoped, tag = 'scratch operand']
  %s0 = inlined_call_operand.vmem [shape: bf16[1,384,256], index: 0, kind: input, shape index: {}]
  %s1 = inlined_call_operand.hbm [shape: bf16[64,384], index: 1, kind: input, shape index: {}]
  %s2 = inlined_call_operand.vmem [shape: f32[64,1], index: 2, kind: input, shape index: {}]
  %s3 = inlined_call_operand.hbm [shape: bf16[2048,768], index: 3, kind: input, shape index: {}]
  %s4 = inlined_call_operand.hbm [shape: f32[1,768], index: 4, kind: input, shape index: {}]
  %s5 = inlined_call_operand.hbm [shape: bf16[768,128], index: 5, kind: input, shape index: {}]
  %s6 = inlined_call_operand.hbm [shape: f32[1,128], index: 6, kind: input, shape index: {}]
  %s7 = inlined_call_operand.vmem [shape: f32[8,768], index: 7, kind: output, shape index: {0}]
  %s8 = inlined_call_operand.vmem [shape: f32[8,128], index: 8, kind: output, shape index: {1}]
  %9 = xla_tuple %s7, %s8
  %s10 = sld [smem:[#allocation0]]
  $region66: #{_forward_both.1} parent=0
    _
  %s12 = ssub.s32 1, %s10
  %s13 = scalar_select 0, %s12, %s10
  $region1: #{_forward_both.1} parent=0
    #allocation3 [shape = 'u8[49152]{0}', space=vmem, size = 0xc000, scoped, tag = 'input window, operand 1, single buffered']
    #allocation4 [shape = 's32[1]{0}', space=sflag, size = 0x4, scoped, tag = 'scoped memory for _forward_both.1']
    #allocation5 [shape = 'u8[3145728]{0}', space=vmem, size = 0x300000, scoped, tag = 'input window, operand 3, single buffered']
    #allocation6 [shape = 's32[1]{0}', space=sflag, size = 0x4, scoped, tag = 'scoped memory for _forward_both.1']
    #allocation7 [shape = 'u8[3072]{0}', space=vmem, size = 0xc00, scoped, tag = 'input window, operand 4, single buffered']
    #allocation8 [shape = 'u8[196608]{0}', space=vmem, size = 0x30000, scoped, tag = 'input window, operand 5, single buffered']
    #allocation9 [shape = 's32[1]{0}', space=sflag, size = 0x4, scoped, tag = 'scoped memory for _forward_both.1']
    #allocation10 [shape = 'u8[512]{0}', space=vmem, size = 0x400, scoped, tag = 'input window, operand 6, single buffered']
    %14 = vsyncpa [#allocation4], 0
    %15 = vsyncpa [#allocation6], 0
    %16 = vsyncpa [#allocation9], 0
    // Predicated region
    $region2: #{_forward_both.1} parent=1 // pred_check
      _
    $region3: #{_forward_both.1} parent=1 // pred_check_branch
      %18 = sbr.rel (0) target = $region5
    $region4: #{_forward_both.1} parent=1 // pred_region
      _
    $region5: #{_forward_both.1} parent=1 // pred_fallthru
      _
    // Predicated region
    $region6: #{_forward_both.1} parent=1 // pred_check
      _
    $region7: #{_forward_both.1} parent=1 // pred_check_branch
      %20 = sbr.rel (0) target = $region9
    $region8: #{_forward_both.1} parent=1 // pred_region
      %s22 = ssub.s32 1536, 1536
      %23 = vsyncadd [#allocation4], %s22
      %s24 = sshll.u32 [#allocation3], 4
      %s25 = int_to_ptr.vmem [resolvable:$true] %s24
      %30 = dma.hbm_to_vmem [thread:$0]  %s1, 1536, %s25, [#allocation4], 192, 192, 12
    $region9: #{_forward_both.1} parent=1 // pred_fallthru
      _
    // Predicated region
    $region10: #{_forward_both.1} parent=1 // pred_check
      _
    $region11: #{_forward_both.1} parent=1 // pred_check_branch
      %32 = sbr.rel (0) target = $region13
    $region12: #{_forward_both.1} parent=1 // pred_region
      _
    $region13: #{_forward_both.1} parent=1 // pred_fallthru
      _
    // Predicated region
    $region14: #{_forward_both.1} parent=1 // pred_check
      _
    $region15: #{_forward_both.1} parent=1 // pred_check_branch
      %34 = sbr.rel (0) target = $region17
    $region16: #{_forward_both.1} parent=1 // pred_region
      %s36 = ssub.s32 98304, 98304
      %37 = vsyncadd [#allocation6], %s36
      %s38 = sshll.u32 [#allocation5], 4
      %s39 = int_to_ptr.vmem [resolvable:$true] %s38
      %44 = dma.hbm_to_vmem [thread:$0]  %s3, 98304, %s39, [#allocation6], 384, 384, 24
    $region17: #{_forward_both.1} parent=1 // pred_fallthru
      _
    // Predicated region
    $region18: #{_forward_both.1} parent=1 // pred_check
      _
    $region19: #{_forward_both.1} parent=1 // pred_check_branch
      %46 = sbr.rel (0) target = $region21
    $region20: #{_forward_both.1} parent=1 // pred_region
      %s48 = ssub.s32 96, 96
      %49 = vsyncadd [#allocation6], %s48
      %s51 = sshll.u32 [#allocation7], 4
      %s52 = int_to_ptr.vmem [resolvable:$true] %s51
      %54 = dma.hbm_to_vmem [thread:$0]  %s4, 96, %s52, [#allocation6]
    $region21: #{_forward_both.1} parent=1 // pred_fallthru
      _
    // Predicated region
    $region22: #{_forward_both.1} parent=1 // pred_check
      _
    $region23: #{_forward_both.1} parent=1 // pred_check_branch
      %56 = sbr.rel (0) target = $region25
    $region24: #{_forward_both.1} parent=1 // pred_region
      %s58 = ssub.s32 6144, 6144
      %59 = vsyncadd [#allocation9], %s58
      %s60 = sshll.u32 [#allocation8], 4
      %s61 = int_to_ptr.vmem [resolvable:$true] %s60
      %66 = dma.hbm_to_vmem [thread:$0]  %s5, 6144, %s61, [#allocation9], 64, 64, 4
    $region25: #{_forward_both.1} parent=1 // pred_fallthru
      _
    // Predicated region
    $region26: #{_forward_both.1} parent=1 // pred_check
      _
    $region27: #{_forward_both.1} parent=1 // pred_check_branch
      %68 = sbr.rel (0) target = $region29
    $region28: #{_forward_both.1} parent=1 // pred_region
      %s70 = ssub.s32 16, 16
      %71 = vsyncadd [#allocation9], %s70
      %s73 = sshll.u32 [#allocation10], 4
      %s74 = int_to_ptr.vmem [resolvable:$true] %s73
      %76 = dma.hbm_to_vmem [thread:$0]  %s6, 16, %s74, [#allocation9]
    $region29: #{_forward_both.1} parent=1 // pred_fallthru
      _
    // Predicated region
    $region30: #{_forward_both.1} parent=1 // pred_check
      _
    $region31: #{_forward_both.1} parent=1 // pred_check_branch
      %78 = sbr.rel (0) target = $region33
    $region32: #{_forward_both.1} parent=1 // pred_region
      %79 = dma.done [#allocation4], 1536
    $region33: #{_forward_both.1} parent=1 // pred_fallthru
      _
    // Predicated region
    $region34: #{_forward_both.1} parent=1 // pred_check
      _
    $region35: #{_forward_both.1} parent=1 // pred_check_branch
      %81 = sbr.rel (0) target = $region37
    $region36: #{_forward_both.1} parent=1 // pred_region
      %82 = dma.done [#allocation6], 98304
    $region37: #{_forward_both.1} parent=1 // pred_fallthru
      _
    // Predicated region
    $region38: #{_forward_both.1} parent=1 // pred_check
      _
    $region39: #{_forward_both.1} parent=1 // pred_check_branch
      %84 = sbr.rel (0) target = $region41
    $region40: #{_forward_both.1} parent=1 // pred_region
      %85 = dma.done [#allocation6], 96
    $region41: #{_forward_both.1} parent=1 // pred_fallthru
      _
    // Predicated region
    $region42: #{_forward_both.1} parent=1 // pred_check
      _
    $region43: #{_forward_both.1} parent=1 // pred_check_branch
      %87 = sbr.rel (0) target = $region45
    $region44: #{_forward_both.1} parent=1 // pred_region
      %88 = dma.done [#allocation9], 6144
    $region45: #{_forward_both.1} parent=1 // pred_fallthru
      _
    // Predicated region
    $region46: #{_forward_both.1} parent=1 // pred_check
      _
    $region47: #{_forward_both.1} parent=1 // pred_check_branch
      %90 = sbr.rel (0) target = $region49
    $region48: #{_forward_both.1} parent=1 // pred_region
      %91 = dma.done [#allocation9], 16
    $region49: #{_forward_both.1} parent=1 // pred_fallthru
      _
    %v93 = vld [vmem:[#allocation3] sm:$0xff]
    %v94 = vld [vmem:[#allocation3 + $0x8] sm:$0xf]
    %v95 = vld [vmem:[#allocation3 + $0xc] sm:$0xff]
    %v96 = vld [vmem:[#allocation3 + $0x14] sm:$0xf]
    %v97 = vld [vmem:[#allocation3 + $0x18] sm:$0xff]
    %v98 = vld [vmem:[#allocation3 + $0x20] sm:$0xf]
    %v99 = vld [vmem:[#allocation3 + $0x24] sm:$0xff]
    %v100 = vld [vmem:[#allocation3 + $0x2c] sm:$0xf]
    %v101 = vld [vmem:[#allocation3 + $0x30] sm:$0xff]
    %v102 = vld [vmem:[#allocation3 + $0x38] sm:$0xf]
    %v103 = vld [vmem:[#allocation3 + $0x3c] sm:$0xff]
    %v104 = vld [vmem:[#allocation3 + $0x44] sm:$0xf]
    %v105 = vld [vmem:[#allocation3 + $0x48] sm:$0xff]
    %v106 = vld [vmem:[#allocation3 + $0x50] sm:$0xf]
    %v107 = vld [vmem:[#allocation3 + $0x54] sm:$0xff]
    %v108 = vld [vmem:[#allocation3 + $0x5c] sm:$0xf]
    %v109 = vld [vmem:[%s2] sm:$0xff]
    %v110 = vld [vmem:[%s2 + $0x8] sm:$0xff]
    %v111 = vld [vmem:[%s2 + $0x10] sm:$0xff]
    %v112 = vld [vmem:[%s2 + $0x18] sm:$0xff]
    %v113 = vld [vmem:[%s2 + $0x20] sm:$0xff]
    %v114 = vld [vmem:[%s2 + $0x28] sm:$0xff]
    %v115 = vld [vmem:[%s2 + $0x30] sm:$0xff]
    %v116 = vld [vmem:[%s2 + $0x38] sm:$0xff]
    %v117 = vld [vmem:[%s0] sm:$0xff]
    %v118 = vld [vmem:[%s0 + $0x8] sm:$0xff]
    %v119 = vld [vmem:[%s0 + $0x10] sm:$0xff]
    %v120 = vld [vmem:[%s0 + $0x18] sm:$0xff]
    %v121 = vld [vmem:[%s0 + $0x20] sm:$0xff]
    %v122 = vld [vmem:[%s0 + $0x28] sm:$0xff]
    %v123 = vld [vmem:[%s0 + $0x30] sm:$0xff]
    %v124 = vld [vmem:[%s0 + $0x38] sm:$0xff]
    %v125 = vld [vmem:[%s0 + $0x40] sm:$0xff]
    %v126 = vld [vmem:[%s0 + $0x48] sm:$0xff]
    %v127 = vld [vmem:[%s0 + $0x50] sm:$0xff]
    %v128 = vld [vmem:[%s0 + $0x58] sm:$0xff]
    %v129 = vld [vmem:[%s0 + $0x60] sm:$0xff]
    %v130 = vld [vmem:[%s0 + $0x68] sm:$0xff]
    %v131 = vld [vmem:[%s0 + $0x70] sm:$0xff]
    %v132 = vld [vmem:[%s0 + $0x78] sm:$0xff]
    %v133 = vld [vmem:[%s0 + $0x80] sm:$0xff]
    %v134 = vld [vmem:[%s0 + $0x88] sm:$0xff]
    %v135 = vld [vmem:[%s0 + $0x90] sm:$0xff]
    %v136 = vld [vmem:[%s0 + $0x98] sm:$0xff]
    %v137 = vld [vmem:[%s0 + $0xa0] sm:$0xff]
    %v138 = vld [vmem:[%s0 + $0xa8] sm:$0xff]
    %v139 = vld [vmem:[%s0 + $0xb0] sm:$0xff]
    %v140 = vld [vmem:[%s0 + $0xb8] sm:$0xff]
    %v141 = vld [vmem:[%s0 + $0xc0] sm:$0xff]
    %v142 = vld [vmem:[%s0 + $0xc8] sm:$0xff]
    %v143 = vld [vmem:[%s0 + $0xd0] sm:$0xff]
    %v144 = vld [vmem:[%s0 + $0xd8] sm:$0xff]
    %v145 = vld [vmem:[%s0 + $0xe0] sm:$0xff]
    %v146 = vld [vmem:[%s0 + $0xe8] sm:$0xff]
    %v147 = vld [vmem:[%s0 + $0xf0] sm:$0xff]
    %v148 = vld [vmem:[%s0 + $0xf8] sm:$0xff]
    %v149 = vld [vmem:[%s0 + $0x100] sm:$0xff]
    %v150 = vld [vmem:[%s0 + $0x108] sm:$0xff]
    %v151 = vld [vmem:[%s0 + $0x110] sm:$0xff]
    %v152 = vld [vmem:[%s0 + $0x118] sm:$0xff]
    %v153 = vld [vmem:[%s0 + $0x120] sm:$0xff]
    %v154 = vld [vmem:[%s0 + $0x128] sm:$0xff]
    %v155 = vld [vmem:[%s0 + $0x130] sm:$0xff]
    %v156 = vld [vmem:[%s0 + $0x138] sm:$0xff]
    %v157 = vld [vmem:[%s0 + $0x140] sm:$0xff]
    %v158 = vld [vmem:[%s0 + $0x148] sm:$0xff]
    %v159 = vld [vmem:[%s0 + $0x150] sm:$0xff]
    %v160 = vld [vmem:[%s0 + $0x158] sm:$0xff]
    %v161 = vld [vmem:[%s0 + $0x160] sm:$0xff]
    %v162 = vld [vmem:[%s0 + $0x168] sm:$0xff]
    %v163 = vld [vmem:[%s0 + $0x170] sm:$0xff]
    %v164 = vld [vmem:[%s0 + $0x178] sm:$0xff]
    %166 = vset.pattern.permute.xlu0 0
    %167 = vperm.xlu0 %166, %v109
    %v168 = vpop.permute.xlu0 %167
    %171 = vset.pattern.permute.xlu0 0
    %172 = vperm.xlu0 %171, %v110
    %v173 = vpop.permute.xlu0 %172
    %176 = vset.pattern.permute.xlu0 0
    %177 = vperm.xlu0 %176, %v111
    %v178 = vpop.permute.xlu0 %177
    %181 = vset.pattern.permute.xlu0 0
    %182 = vperm.xlu0 %181, %v112
    %v183 = vpop.permute.xlu0 %182
    %186 = vset.pattern.permute.xlu0 0
    %187 = vperm.xlu0 %186, %v113
    %v188 = vpop.permute.xlu0 %187
    %191 = vset.pattern.permute.xlu0 0
    %192 = vperm.xlu0 %191, %v114
    %v193 = vpop.permute.xlu0 %192
    %196 = vset.pattern.permute.xlu0 0
    %197 = vperm.xlu0 %196, %v115
    %v198 = vpop.permute.xlu0 %197
    %201 = vset.pattern.permute.xlu0 0
    %202 = vperm.xlu0 %201, %v116
    %v203 = vpop.permute.xlu0 %202
    %v221 = vunpack.c.l.b16 %v93
    %v222 = vunpack.c.h.b16 %v93
    %v223 = vunpack.c.l.b16 %v94
    %v224 = vunpack.c.l.b16 %v95
    %v225 = vunpack.c.h.b16 %v95
    %v226 = vunpack.c.l.b16 %v96
    %v227 = vunpack.c.l.b16 %v97
    %v228 = vunpack.c.h.b16 %v97
    %v229 = vunpack.c.l.b16 %v98
    %v230 = vunpack.c.l.b16 %v99
    %v231 = vunpack.c.h.b16 %v99
    %v232 = vunpack.c.l.b16 %v100
    %v233 = vunpack.c.l.b16 %v101
    %v234 = vunpack.c.h.b16 %v101
    %v235 = vunpack.c.l.b16 %v102
    %v236 = vunpack.c.l.b16 %v103
    %v237 = vunpack.c.h.b16 %v103
    %v238 = vunpack.c.l.b16 %v104
    %v239 = vunpack.c.l.b16 %v105
    %v240 = vunpack.c.h.b16 %v105
    %v241 = vunpack.c.l.b16 %v106
    %v242 = vunpack.c.l.b16 %v107
    %v243 = vunpack.c.h.b16 %v107
    %v244 = vunpack.c.l.b16 %v108
    %v245 = vpack.c.b16 %v224, %v221
    %v246 = vpack.c.b16 %v225, %v222
    %v247 = vpack.c.b16 %v226, %v223
    %v248 = vpack.c.b16 %v230, %v227
    %v249 = vpack.c.b16 %v231, %v228
    %v250 = vpack.c.b16 %v232, %v229
    %v251 = vpack.c.b16 %v236, %v233
    %v252 = vpack.c.b16 %v237, %v234
    %v253 = vpack.c.b16 %v238, %v235
    %v254 = vpack.c.b16 %v242, %v239
    %v255 = vpack.c.b16 %v243, %v240
    %v256 = vpack.c.b16 %v244, %v241
    %v317 = vunpack.c.l.b16 %v117
    %v318 = vunpack.c.h.b16 %v117
    %v319 = vunpack.c.l.b16 %v118
    %v320 = vunpack.c.h.b16 %v118
    %v321 = vunpack.c.l.b16 %v119
    %v322 = vunpack.c.h.b16 %v119
    %v323 = vunpack.c.l.b16 %v120
    %v324 = vunpack.c.h.b16 %v120
    %v325 = vunpack.c.l.b16 %v121
    %v326 = vunpack.c.h.b16 %v121
    %v327 = vunpack.c.l.b16 %v122
    %v328 = vunpack.c.h.b16 %v122
    %v329 = vunpack.c.l.b16 %v123
    %v330 = vunpack.c.h.b16 %v123
    %v331 = vunpack.c.l.b16 %v124
    %v332 = vunpack.c.h.b16 %v124
    %v333 = vunpack.c.l.b16 %v125
    %v334 = vunpack.c.h.b16 %v125
    %v335 = vunpack.c.l.b16 %v126
    %v336 = vunpack.c.h.b16 %v126
    %v337 = vunpack.c.l.b16 %v127
    %v338 = vunpack.c.h.b16 %v127
    %v339 = vunpack.c.l.b16 %v128
    %v340 = vunpack.c.h.b16 %v128
    %v341 = vunpack.c.l.b16 %v129
    %v342 = vunpack.c.h.b16 %v129
    %v343 = vunpack.c.l.b16 %v130
    %v344 = vunpack.c.h.b16 %v130
    %v345 = vunpack.c.l.b16 %v131
    %v346 = vunpack.c.h.b16 %v131
    %v347 = vunpack.c.l.b16 %v132
    %v348 = vunpack.c.h.b16 %v132
    %v349 = vunpack.c.l.b16 %v133
    %v350 = vunpack.c.h.b16 %v133
    %v351 = vunpack.c.l.b16 %v134
    %v352 = vunpack.c.h.b16 %v134
    %v353 = vunpack.c.l.b16 %v135
    %v354 = vunpack.c.h.b16 %v135
    %v355 = vunpack.c.l.b16 %v136
    %v356 = vunpack.c.h.b16 %v136
    %v357 = vunpack.c.l.b16 %v137
    %v358 = vunpack.c.h.b16 %v137
    %v359 = vunpack.c.l.b16 %v138
    %v360 = vunpack.c.h.b16 %v138
    %v361 = vunpack.c.l.b16 %v139
    %v362 = vunpack.c.h.b16 %v139
    %v363 = vunpack.c.l.b16 %v140
    %v364 = vunpack.c.h.b16 %v140
    %v365 = vunpack.c.l.b16 %v141
    %v366 = vunpack.c.h.b16 %v141
    %v367 = vunpack.c.l.b16 %v142
    %v368 = vunpack.c.h.b16 %v142
    %v369 = vunpack.c.l.b16 %v143
    %v370 = vunpack.c.h.b16 %v143
    %v371 = vunpack.c.l.b16 %v144
    %v372 = vunpack.c.h.b16 %v144
    %v373 = vunpack.c.l.b16 %v145
    %v374 = vunpack.c.h.b16 %v145
    %v375 = vunpack.c.l.b16 %v146
    %v376 = vunpack.c.h.b16 %v146
    %v377 = vunpack.c.l.b16 %v147
    %v378 = vunpack.c.h.b16 %v147
    %v379 = vunpack.c.l.b16 %v148
    %v380 = vunpack.c.h.b16 %v148
    %v381 = vunpack.c.l.b16 %v149
    %v382 = vunpack.c.h.b16 %v149
    %v383 = vunpack.c.l.b16 %v150
    %v384 = vunpack.c.h.b16 %v150
    %v385 = vunpack.c.l.b16 %v151
    %v386 = vunpack.c.h.b16 %v151
    %v387 = vunpack.c.l.b16 %v152
    %v388 = vunpack.c.h.b16 %v152
    %v389 = vunpack.c.l.b16 %v153
    %v390 = vunpack.c.h.b16 %v153
    %v391 = vunpack.c.l.b16 %v154
    %v392 = vunpack.c.h.b16 %v154
    %v393 = vunpack.c.l.b16 %v155
    %v394 = vunpack.c.h.b16 %v155
    %v395 = vunpack.c.l.b16 %v156
    %v396 = vunpack.c.h.b16 %v156
    %v397 = vunpack.c.l.b16 %v157
    %v398 = vunpack.c.h.b16 %v157
    %v399 = vunpack.c.l.b16 %v158
    %v400 = vunpack.c.h.b16 %v158
    %v401 = vunpack.c.l.b16 %v159
    %v402 = vunpack.c.h.b16 %v159
    %v403 = vunpack.c.l.b16 %v160
    %v404 = vunpack.c.h.b16 %v160
    %v405 = vunpack.c.l.b16 %v161
    %v406 = vunpack.c.h.b16 %v161
    %v407 = vunpack.c.l.b16 %v162
    %v408 = vunpack.c.h.b16 %v162
    %v409 = vunpack.c.l.b16 %v163
    %v410 = vunpack.c.h.b16 %v163
    %v411 = vunpack.c.l.b16 %v164
    %v412 = vunpack.c.h.b16 %v164
    %v413 = vpack.c.b16 %v319, %v317
    %v414 = vpack.c.b16 %v320, %v318
    %v415 = vpack.c.b16 %v323, %v321
    %v416 = vpack.c.b16 %v324, %v322
    %v417 = vpack.c.b16 %v327, %v325
    %v418 = vpack.c.b16 %v328, %v326
    %v419 = vpack.c.b16 %v331, %v329
    %v420 = vpack.c.b16 %v332, %v330
    %v421 = vpack.c.b16 %v335, %v333
    %v422 = vpack.c.b16 %v336, %v334
    %v423 = vpack.c.b16 %v339, %v337
    %v424 = vpack.c.b16 %v340, %v338
    %v425 = vpack.c.b16 %v343, %v341
    %v426 = vpack.c.b16 %v344, %v342
    %v427 = vpack.c.b16 %v347, %v345
    %v428 = vpack.c.b16 %v348, %v346
    %v429 = vpack.c.b16 %v351, %v349
    %v430 = vpack.c.b16 %v352, %v350
    %v431 = vpack.c.b16 %v355, %v353
    %v432 = vpack.c.b16 %v356, %v354
    %v433 = vpack.c.b16 %v359, %v357
    %v434 = vpack.c.b16 %v360, %v358
    %v435 = vpack.c.b16 %v363, %v361
    %v436 = vpack.c.b16 %v364, %v362
    %v437 = vpack.c.b16 %v367, %v365
    %v438 = vpack.c.b16 %v368, %v366
    %v439 = vpack.c.b16 %v371, %v369
    %v440 = vpack.c.b16 %v372, %v370
    %v441 = vpack.c.b16 %v375, %v373
    %v442 = vpack.c.b16 %v376, %v374
    %v443 = vpack.c.b16 %v379, %v377
    %v444 = vpack.c.b16 %v380, %v378
    %v445 = vpack.c.b16 %v383, %v381
    %v446 = vpack.c.b16 %v384, %v382
    %v447 = vpack.c.b16 %v387, %v385
    %v448 = vpack.c.b16 %v388, %v386
    %v449 = vpack.c.b16 %v391, %v389
    %v450 = vpack.c.b16 %v392, %v390
    %v451 = vpack.c.b16 %v395, %v393
    %v452 = vpack.c.b16 %v396, %v394
    %v453 = vpack.c.b16 %v399, %v397
    %v454 = vpack.c.b16 %v400, %v398
    %v455 = vpack.c.b16 %v403, %v401
    %v456 = vpack.c.b16 %v404, %v402
    %v457 = vpack.c.b16 %v407, %v405
    %v458 = vpack.c.b16 %v408, %v406
    %v459 = vpack.c.b16 %v411, %v409
    %v460 = vpack.c.b16 %v412, %v410
    %509 = vmatprep.subr.bf16.mxu0 %v428
    %510 = vmatpush1.bf16.msra.mxu0 %v427
    %511 = vmatprep.subr.bf16.mxu0 %v426
    %512 = vmatpush1.bf16.msra.mxu0 %v425
    %513 = vmatprep.subr.bf16.mxu0 %v424
    %514 = vmatpush1.bf16.msra.mxu0 %v423
    %515 = vmatprep.subr.bf16.mxu0 %v422
    %516 = vmatpush1.bf16.msra.mxu0 %v421
    %517 = vmatprep.subr.bf16.mxu0 %v420
    %518 = vmatpush1.bf16.msra.mxu0 %v419
    %519 = vmatprep.subr.bf16.mxu0 %v418
    %520 = vmatpush1.bf16.msra.mxu0 %v417
    %521 = vmatprep.subr.bf16.mxu0 %v416
    %522 = vmatpush1.bf16.msra.mxu0 %v415
    %523 = vmatprep.subr.bf16.mxu0 %v414
    %524 = vmatpush1.bf16.msra.mxu0 %v413
    %525 = vmatprep.subr.bf16.mxu0 %v444
    %526 = vmatpush2.bf16.msra.mxu0 %v443
    %527 = vmatprep.subr.bf16.mxu0 %v442
    %528 = vmatpush2.bf16.msra.mxu0 %v441
    %529 = vmatprep.subr.bf16.mxu0 %v440
    %530 = vmatpush2.bf16.msra.mxu0 %v439
    %531 = vmatprep.subr.bf16.mxu0 %v438
    %532 = vmatpush2.bf16.msra.mxu0 %v437
    %533 = vmatprep.subr.bf16.mxu0 %v436
    %534 = vmatpush2.bf16.msra.mxu0 %v435
    %535 = vmatprep.subr.bf16.mxu0 %v434
    %536 = vmatpush2.bf16.msra.mxu0 %v433
    %537 = vmatprep.subr.bf16.mxu0 %v432
    %538 = vmatpush2.bf16.msra.mxu0 %v431
    %539 = vmatprep.subr.bf16.mxu0 %v430
    %540 = vmatpush2.bf16.msra.mxu0 %v429
    %541 = vmatprep.mubr.bf16.mxu0 %v246
    %542 = vmatmul.mubr.bf16.gmra.mxu0 %v245
    %v543 = vpop.f32.mrf.mxu0
    %v544 = vadd.f32 %v168, %v543
    %v545 = vpop.f32.mrf.mxu0
    %v546 = vadd.f32 %v168, %v545
    %v547 = vpop.f32.mrf.mxu0
    %v548 = vadd.f32 %v173, %v547
    %v549 = vpop.f32.mrf.mxu0
    %v550 = vadd.f32 %v173, %v549
    %551 = vmatprep.mubr.bf16.mxu0 %v249
    %552 = vmatmul.mubr.bf16.gmra.mxu0 %v248
    %v553 = vpop.f32.mrf.mxu0
    %v554 = vadd.f32 %v178, %v553
    %v555 = vpop.f32.mrf.mxu0
    %v556 = vadd.f32 %v178, %v555
    %v557 = vpop.f32.mrf.mxu0
    %v558 = vadd.f32 %v183, %v557
    %v559 = vpop.f32.mrf.mxu0
    %v560 = vadd.f32 %v183, %v559
    %561 = vmatprep.mubr.bf16.mxu0 %v252
    %562 = vmatmul.mubr.bf16.gmra.mxu0 %v251
    %v563 = vpop.f32.mrf.mxu0
    %v564 = vadd.f32 %v188, %v563
    %v565 = vpop.f32.mrf.mxu0
    %v566 = vadd.f32 %v188, %v565
    %v567 = vpop.f32.mrf.mxu0
    %v568 = vadd.f32 %v193, %v567
    %v569 = vpop.f32.mrf.mxu0
    %v570 = vadd.f32 %v193, %v569
    %571 = vmatprep.mubr.bf16.mxu0 %v255
    %572 = vmatmul.mubr.bf16.gmra.mxu0 %v254
    %v573 = vpop.f32.mrf.mxu0
    %v574 = vadd.f32 %v198, %v573
    %v575 = vpop.f32.mrf.mxu0
    %v576 = vadd.f32 %v198, %v575
    %v577 = vpop.f32.mrf.mxu0
    %v578 = vadd.f32 %v203, %v577
    %v579 = vpop.f32.mrf.mxu0
    %v580 = vadd.f32 %v203, %v579
    %581 = vdwg.mxu0
    %582 = vmatprep.subr.bf16.mxu0 %v460
    %583 = vmatpush1.bf16.msra.mxu0 %v459
    %584 = vmatprep.subr.bf16.mxu0 %v458
    %585 = vmatpush1.bf16.msra.mxu0 %v457
    %586 = vmatprep.subr.bf16.mxu0 %v456
    %587 = vmatpush1.bf16.msra.mxu0 %v455
    %588 = vmatprep.subr.bf16.mxu0 %v454
    %589 = vmatpush1.bf16.msra.mxu0 %v453
    %590 = vmatprep.subr.bf16.mxu0 %v452
    %591 = vmatpush1.bf16.msra.mxu0 %v451
    %592 = vmatprep.subr.bf16.mxu0 %v450
    %593 = vmatpush1.bf16.msra.mxu0 %v449
    %594 = vmatprep.subr.bf16.mxu0 %v448
    %595 = vmatpush1.bf16.msra.mxu0 %v447
    %596 = vmatprep.subr.bf16.mxu0 %v446
    %597 = vmatpush1.bf16.msra.mxu0 %v445
    %598 = vmatprep.subr.bf16.mxu0 0
    %599 = vmatpush2.bf16.msra.mxu0 0
    %600 = vmatprep.subr.bf16.mxu0 0
    %601 = vmatpush2.bf16.msra.mxu0 0
    %602 = vmatprep.subr.bf16.mxu0 0
    %603 = vmatpush2.bf16.msra.mxu0 0
    %604 = vmatprep.subr.bf16.mxu0 0
    %605 = vmatpush2.bf16.msra.mxu0 0
    %606 = vmatprep.subr.bf16.mxu0 0
    %607 = vmatpush2.bf16.msra.mxu0 0
    %608 = vmatprep.subr.bf16.mxu0 0
    %609 = vmatpush2.bf16.msra.mxu0 0
    %610 = vmatprep.subr.bf16.mxu0 0
    %611 = vmatpush2.bf16.msra.mxu0 0
    %612 = vmatprep.subr.bf16.mxu0 0
    %613 = vmatpush2.bf16.msra.mxu0 0
    %614 = vmatprep.mubr.bf16.mxu0 0
    %615 = vmatmul.mubr.bf16.gmra.mxu0 %v247
    %v616 = vpop.f32.mrf.mxu0
    %v617 = vadd.f32 %v544, %v616
    %v618 = vpop.f32.mrf.mxu0
    %v619 = vadd.f32 %v546, %v618
    %v620 = vpop.f32.mrf.mxu0
    %v621 = vadd.f32 %v548, %v620
    %v622 = vpop.f32.mrf.mxu0
    %v623 = vadd.f32 %v550, %v622
    %624 = vmatprep.mubr.bf16.mxu0 0
    %625 = vmatmul.mubr.bf16.gmra.mxu0 %v250
    %v626 = vpop.f32.mrf.mxu0
    %v627 = vadd.f32 %v554, %v626
    %v628 = vpop.f32.mrf.mxu0
    %v629 = vadd.f32 %v556, %v628
    %v630 = vpop.f32.mrf.mxu0
    %v631 = vadd.f32 %v558, %v630
    %v632 = vpop.f32.mrf.mxu0
    %v633 = vadd.f32 %v560, %v632
    %634 = vmatprep.mubr.bf16.mxu0 0
    %635 = vmatmul.mubr.bf16.gmra.mxu0 %v253
    %v636 = vpop.f32.mrf.mxu0
    %v637 = vadd.f32 %v564, %v636
    %v638 = vpop.f32.mrf.mxu0
    %v639 = vadd.f32 %v566, %v638
    %v640 = vpop.f32.mrf.mxu0
    %v641 = vadd.f32 %v568, %v640
    %v642 = vpop.f32.mrf.mxu0
    %v643 = vadd.f32 %v570, %v642
    %644 = vmatprep.mubr.bf16.mxu0 0
    %645 = vmatmul.mubr.bf16.gmra.mxu0 %v256
    %v646 = vpop.f32.mrf.mxu0
    %v647 = vadd.f32 %v574, %v646
    %v648 = vpop.f32.mrf.mxu0
    %v649 = vadd.f32 %v576, %v648
    %v650 = vpop.f32.mrf.mxu0
    %v651 = vadd.f32 %v578, %v650
    %v652 = vpop.f32.mrf.mxu0
    %v653 = vadd.f32 %v580, %v652
    %654 = vdwg.mxu0
    %v655 = vmax.f32 %v617, 0.0
    %v656 = vmax.f32 %v619, 0.0
    %v657 = vmax.f32 %v621, 0.0
    %v658 = vmax.f32 %v623, 0.0
    %v659 = vmax.f32 %v627, 0.0
    %v660 = vmax.f32 %v629, 0.0
    %v661 = vmax.f32 %v631, 0.0
    %v662 = vmax.f32 %v633, 0.0
    %v663 = vmax.f32 %v637, 0.0
    %v664 = vmax.f32 %v639, 0.0
    %v665 = vmax.f32 %v641, 0.0
    %v666 = vmax.f32 %v643, 0.0
    %v667 = vmax.f32 %v647, 0.0
    %v668 = vmax.f32 %v649, 0.0
    %v669 = vmax.f32 %v651, 0.0
    %v670 = vmax.f32 %v653, 0.0
    %671 = vst [vmem:[#allocation2] sm:$0xff] %v655
    %672 = vst [vmem:[#allocation2 + $0x8] sm:$0xff] %v656
    %673 = vst [vmem:[#allocation2 + $0x10] sm:$0xff] %v657
    %674 = vst [vmem:[#allocation2 + $0x18] sm:$0xff] %v658
    %675 = vst [vmem:[#allocation2 + $0x20] sm:$0xff] %v659
    %676 = vst [vmem:[#allocation2 + $0x28] sm:$0xff] %v660
    %677 = vst [vmem:[#allocation2 + $0x30] sm:$0xff] %v661
    %678 = vst [vmem:[#allocation2 + $0x38] sm:$0xff] %v662
    %679 = vst [vmem:[#allocation2 + $0x40] sm:$0xff] %v663
    %680 = vst [vmem:[#allocation2 + $0x48] sm:$0xff] %v664
    %681 = vst [vmem:[#allocation2 + $0x50] sm:$0xff] %v665
    %682 = vst [vmem:[#allocation2 + $0x58] sm:$0xff] %v666
    %683 = vst [vmem:[#allocation2 + $0x60] sm:$0xff] %v667
    %684 = vst [vmem:[#allocation2 + $0x68] sm:$0xff] %v668
    %685 = vst [vmem:[#allocation2 + $0x70] sm:$0xff] %v669
    %686 = vst [vmem:[#allocation2 + $0x78] sm:$0xff] %v670
    %v687 = vld [vmem:[#allocation2] sm:$0xff]
    %v688 = vld [vmem:[#allocation2 + $0x8] sm:$0xff]
    %v689 = vpack.c.bf16 %v687, %v687
    %v690 = vpack.c.bf16 %v688, %v688
    %v691 = vld [vmem:[#allocation5] sm:$0xff]
    %v692 = vld [vmem:[#allocation5 + $0x8] sm:$0xff]
    %v693 = vld [vmem:[#allocation5 + $0x10] sm:$0xff]
    %v694 = vld [vmem:[#allocation5 + $0x18] sm:$0xff]
    %v695 = vld [vmem:[#allocation5 + $0x20] sm:$0xff]
    %v696 = vld [vmem:[#allocation5 + $0x28] sm:$0xff]
    %v697 = vld [vmem:[#allocation5 + $0x30] sm:$0xff]
    %v698 = vld [vmem:[#allocation5 + $0x38] sm:$0xff]
    %v699 = vld [vmem:[#allocation5 + $0x40] sm:$0xff]
    %v700 = vld [vmem:[#allocation5 + $0x48] sm:$0xff]
    %v701 = vld [vmem:[#allocation5 + $0x50] sm:$0xff]
    %v702 = vld [vmem:[#allocation5 + $0x58] sm:$0xff]
    %v703 = vld [vmem:[#allocation5 + $0x60] sm:$0xff]
    %v704 = vld [vmem:[#allocation5 + $0x68] sm:$0xff]
    %v705 = vld [vmem:[#allocation5 + $0x70] sm:$0xff]
    %v706 = vld [vmem:[#allocation5 + $0x78] sm:$0xff]
    %v707 = vld [vmem:[#allocation5 + $0x80] sm:$0xff]
    %v708 = vld [vmem:[#allocation5 + $0x88] sm:$0xff]
    %v709 = vld [vmem:[#allocation5 + $0x90] sm:$0xff]
    %v710 = vld [vmem:[#allocation5 + $0x98] sm:$0xff]
    %v711 = vld [vmem:[#allocation5 + $0xa0] sm:$0xff]
    %v712 = vld [vmem:[#allocation5 + $0xa8] sm:$0xff]
    %v713 = vld [vmem:[#allocation5 + $0xb0] sm:$0xff]
    %v714 = vld [vmem:[#allocation5 + $0xb8] sm:$0xff]
    %v715 = vld [vmem:[#allocation5 + $0xc0] sm:$0xff]
    %v716 = vld [vmem:[#allocation5 + $0xc8] sm:$0xff]
    %v717 = vld [vmem:[#allocation5 + $0xd0] sm:$0xff]
    %v718 = vld [vmem:[#allocation5 + $0xd8] sm:$0xff]
    %v719 = vld [vmem:[#allocation5 + $0xe0] sm:$0xff]
    %v720 = vld [vmem:[#allocation5 + $0xe8] sm:$0xff]
    %v721 = vld [vmem:[#allocation5 + $0xf0] sm:$0xff]
    %v722 = vld [vmem:[#allocation5 + $0xf8] sm:$0xff]
    %v723 = vld [vmem:[#allocation5 + $0x100] sm:$0xff]
    %v724 = vld [vmem:[#allocation5 + $0x108] sm:$0xff]
    %v725 = vld [vmem:[#allocation5 + $0x110] sm:$0xff]
    %v726 = vld [vmem:[#allocation5 + $0x118] sm:$0xff]
    %v727 = vld [vmem:[#allocation5 + $0x120] sm:$0xff]
    %v728 = vld [vmem:[#allocation5 + $0x128] sm:$0xff]
    %v729 = vld [vmem:[#allocation5 + $0x130] sm:$0xff]
    %v730 = vld [vmem:[#allocation5 + $0x138] sm:$0xff]
    %v731 = vld [vmem:[#allocation5 + $0x140] sm:$0xff]
    %v732 = vld [vmem:[#allocation5 + $0x148] sm:$0xff]
    %v733 = vld [vmem:[#allocation5 + $0x150] sm:$0xff]
    %v734 = vld [vmem:[#allocation5 + $0x158] sm:$0xff]
    %v735 = vld [vmem:[#allocation5 + $0x160] sm:$0xff]
    %v736 = vld [vmem:[#allocation5 + $0x168] sm:$0xff]
    %v737 = vld [vmem:[#allocation5 + $0x170] sm:$0xff]
    %v738 = vld [vmem:[#allocation5 + $0x178] sm:$0xff]
    %v739 = vld [vmem:[#allocation5 + $0x180] sm:$0xff]
    %v740 = vld [vmem:[#allocation5 + $0x188] sm:$0xff]
    %v741 = vld [vmem:[#allocation5 + $0x190] sm:$0xff]
    %v742 = vld [vmem:[#allocation5 + $0x198] sm:$0xff]
    %v743 = vld [vmem:[#allocation5 + $0x1a0] sm:$0xff]
    %v744 = vld [vmem:[#allocation5 + $0x1a8] sm:$0xff]
    %v745 = vld [vmem:[#allocation5 + $0x1b0] sm:$0xff]
    %v746 = vld [vmem:[#allocation5 + $0x1b8] sm:$0xff]
    %v747 = vld [vmem:[#allocation5 + $0x1c0] sm:$0xff]
    %v748 = vld [vmem:[#allocation5 + $0x1c8] sm:$0xff]
    %v749 = vld [vmem:[#allocation5 + $0x1d0] sm:$0xff]
    %v750 = vld [vmem:[#allocation5 + $0x1d8] sm:$0xff]
    %v751 = vld [vmem:[#allocation5 + $0x1e0] sm:$0xff]
    %v752 = vld [vmem:[#allocation5 + $0x1e8] sm:$0xff]
    %v753 = vld [vmem:[#allocation5 + $0x1f0] sm:$0xff]
    %v754 = vld [vmem:[#allocation5 + $0x1f8] sm:$0xff]
    %v755 = vld [vmem:[#allocation5 + $0x200] sm:$0xff]
    %v756 = vld [vmem:[#allocation5 + $0x208] sm:$0xff]
    %v757 = vld [vmem:[#allocation5 + $0x210] sm:$0xff]
    %v758 = vld [vmem:[#allocation5 + $0x218] sm:$0xff]
    %v759 = vld [vmem:[#allocation5 + $0x220] sm:$0xff]
    %v760 = vld [vmem:[#allocation5 + $0x228] sm:$0xff]
    %v761 = vld [vmem:[#allocation5 + $0x230] sm:$0xff]
    %v762 = vld [vmem:[#allocation5 + $0x238] sm:$0xff]
    %v763 = vld [vmem:[#allocation5 + $0x240] sm:$0xff]
    %v764 = vld [vmem:[#allocation5 + $0x248] sm:$0xff]
    %v765 = vld [vmem:[#allocation5 + $0x250] sm:$0xff]
    %v766 = vld [vmem:[#allocation5 + $0x258] sm:$0xff]
    %v767 = vld [vmem:[#allocation5 + $0x260] sm:$0xff]
    %v768 = vld [vmem:[#allocation5 + $0x268] sm:$0xff]
    %v769 = vld [vmem:[#allocation5 + $0x270] sm:$0xff]
    %v770 = vld [vmem:[#allocation5 + $0x278] sm:$0xff]
    %v771 = vld [vmem:[#allocation5 + $0x280] sm:$0xff]
    %v772 = vld [vmem:[#allocation5 + $0x288] sm:$0xff]
    %v773 = vld [vmem:[#allocation5 + $0x290] sm:$0xff]
    %v774 = vld [vmem:[#allocation5 + $0x298] sm:$0xff]
    %v775 = vld [vmem:[#allocation5 + $0x2a0] sm:$0xff]
    %v776 = vld [vmem:[#allocation5 + $0x2a8] sm:$0xff]
    %v777 = vld [vmem:[#allocation5 + $0x2b0] sm:$0xff]
    %v778 = vld [vmem:[#allocation5 + $0x2b8] sm:$0xff]
    %v779 = vld [vmem:[#allocation5 + $0x2c0] sm:$0xff]
    %v780 = vld [vmem:[#allocation5 + $0x2c8] sm:$0xff]
    %v781 = vld [vmem:[#allocation5 + $0x2d0] sm:$0xff]
    %v782 = vld [vmem:[#allocation5 + $0x2d8] sm:$0xff]
    %v783 = vld [vmem:[#allocation5 + $0x2e0] sm:$0xff]
    %v784 = vld [vmem:[#allocation5 + $0x2e8] sm:$0xff]
    %v785 = vld [vmem:[#allocation5 + $0x2f0] sm:$0xff]
    %v786 = vld [vmem:[#allocation5 + $0x2f8] sm:$0xff]
    %v787 = vld [vmem:[#allocation2 + $0x10] sm:$0xff]
    %v788 = vld [vmem:[#allocation2 + $0x18] sm:$0xff]
    %v789 = vpack.c.bf16 %v787, %v787
    %v790 = vpack.c.bf16 %v788, %v788
    %v791 = vld [vmem:[#allocation5 + $0x300] sm:$0xff]
    %v792 = vld [vmem:[#allocation5 + $0x308] sm:$0xff]
    %v793 = vld [vmem:[#allocation5 + $0x310] sm:$0xff]
    %v794 = vld [vmem:[#allocation5 + $0x318] sm:$0xff]
    %v795 = vld [vmem:[#allocation5 + $0x320] sm:$0xff]
    %v796 = vld [vmem:[#allocation5 + $0x328] sm:$0xff]
    %v797 = vld [vmem:[#allocation5 + $0x330] sm:$0xff]
    %v798 = vld [vmem:[#allocation5 + $0x338] sm:$0xff]
    %v799 = vld [vmem:[#allocation5 + $0x340] sm:$0xff]
    %v800 = vld [vmem:[#allocation5 + $0x348] sm:$0xff]
    %v801 = vld [vmem:[#allocation5 + $0x350] sm:$0xff]
    %v802 = vld [vmem:[#allocation5 + $0x358] sm:$0xff]
    %v803 = vld [vmem:[#allocation5 + $0x360] sm:$0xff]
    %v804 = vld [vmem:[#allocation5 + $0x368] sm:$0xff]
    %v805 = vld [vmem:[#allocation5 + $0x370] sm:$0xff]
    %v806 = vld [vmem:[#allocation5 + $0x378] sm:$0xff]
    %v807 = vld [vmem:[#allocation5 + $0x380] sm:$0xff]
    %v808 = vld [vmem:[#allocation5 + $0x388] sm:$0xff]
    %v809 = vld [vmem:[#allocation5 + $0x390] sm:$0xff]
    %v810 = vld [vmem:[#allocation5 + $0x398] sm:$0xff]
    %v811 = vld [vmem:[#allocation5 + $0x3a0] sm:$0xff]
    %v812 = vld [vmem:[#allocation5 + $0x3a8] sm:$0xff]
    %v813 = vld [vmem:[#allocation5 + $0x3b0] sm:$0xff]
    %v814 = vld [vmem:[#allocation5 + $0x3b8] sm:$0xff]
    %v815 = vld [vmem:[#allocation5 + $0x3c0] sm:$0xff]
    %v816 = vld [vmem:[#allocation5 + $0x3c8] sm:$0xff]
    %v817 = vld [vmem:[#allocation5 + $0x3d0] sm:$0xff]
    %v818 = vld [vmem:[#allocation5 + $0x3d8] sm:$0xff]
    %v819 = vld [vmem:[#allocation5 + $0x3e0] sm:$0xff]
    %v820 = vld [vmem:[#allocation5 + $0x3e8] sm:$0xff]
    %v821 = vld [vmem:[#allocation5 + $0x3f0] sm:$0xff]
    %v822 = vld [vmem:[#allocation5 + $0x3f8] sm:$0xff]
    %v823 = vld [vmem:[#allocation5 + $0x400] sm:$0xff]
    %v824 = vld [vmem:[#allocation5 + $0x408] sm:$0xff]
    %v825 = vld [vmem:[#allocation5 + $0x410] sm:$0xff]
    %v826 = vld [vmem:[#allocation5 + $0x418] sm:$0xff]
    %v827 = vld [vmem:[#allocation5 + $0x420] sm:$0xff]
    %v828 = vld [vmem:[#allocation5 + $0x428] sm:$0xff]
    %v829 = vld [vmem:[#allocation5 + $0x430] sm:$0xff]
    %v830 = vld [vmem:[#allocation5 + $0x438] sm:$0xff]
    %v831 = vld [vmem:[#allocation5 + $0x440] sm:$0xff]
    %v832 = vld [vmem:[#allocation5 + $0x448] sm:$0xff]
    %v833 = vld [vmem:[#allocation5 + $0x450] sm:$0xff]
    %v834 = vld [vmem:[#allocation5 + $0x458] sm:$0xff]
    %v835 = vld [vmem:[#allocation5 + $0x460] sm:$0xff]
    %v836 = vld [vmem:[#allocation5 + $0x468] sm:$0xff]
    %v837 = vld [vmem:[#allocation5 + $0x470] sm:$0xff]
    %v838 = vld [vmem:[#allocation5 + $0x478] sm:$0xff]
    %v839 = vld [vmem:[#allocation5 + $0x480] sm:$0xff]
    %v840 = vld [vmem:[#allocation5 + $0x488] sm:$0xff]
    %v841 = vld [vmem:[#allocation5 + $0x490] sm:$0xff]
    %v842 = vld [vmem:[#allocation5 + $0x498] sm:$0xff]
    %v843 = vld [vmem:[#allocation5 + $0x4a0] sm:$0xff]
    %v844 = vld [vmem:[#allocation5 + $0x4a8] sm:$0xff]
    %v845 = vld [vmem:[#allocation5 + $0x4b0] sm:$0xff]
    %v846 = vld [vmem:[#allocation5 + $0x4b8] sm:$0xff]
    %v847 = vld [vmem:[#allocation5 + $0x4c0] sm:$0xff]
    %v848 = vld [vmem:[#allocation5 + $0x4c8] sm:$0xff]
    %v849 = vld [vmem:[#allocation5 + $0x4d0] sm:$0xff]
    %v850 = vld [vmem:[#allocation5 + $0x4d8] sm:$0xff]
    %v851 = vld [vmem:[#allocation5 + $0x4e0] sm:$0xff]
    %v852 = vld [vmem:[#allocation5 + $0x4e8] sm:$0xff]
    %v853 = vld [vmem:[#allocation5 + $0x4f0] sm:$0xff]
    %v854 = vld [vmem:[#allocation5 + $0x4f8] sm:$0xff]
    %v855 = vld [vmem:[#allocation5 + $0x500] sm:$0xff]
    %v856 = vld [vmem:[#allocation5 + $0x508] sm:$0xff]
    %v857 = vld [vmem:[#allocation5 + $0x510] sm:$0xff]
    %v858 = vld [vmem:[#allocation5 + $0x518] sm:$0xff]
    %v859 = vld [vmem:[#allocation5 + $0x520] sm:$0xff]
    %v860 = vld [vmem:[#allocation5 + $0x528] sm:$0xff]
    %v861 = vld [vmem:[#allocation5 + $0x530] sm:$0xff]
    %v862 = vld [vmem:[#allocation5 + $0x538] sm:$0xff]
    %v863 = vld [vmem:[#allocation5 + $0x540] sm:$0xff]
    %v864 = vld [vmem:[#allocation5 + $0x548] sm:$0xff]
    %v865 = vld [vmem:[#allocation5 + $0x550] sm:$0xff]
    %v866 = vld [vmem:[#allocation5 + $0x558] sm:$0xff]
    %v867 = vld [vmem:[#allocation5 + $0x560] sm:$0xff]
    %v868 = vld [vmem:[#allocation5 + $0x568] sm:$0xff]
    %v869 = vld [vmem:[#allocation5 + $0x570] sm:$0xff]
    %v870 = vld [vmem:[#allocation5 + $0x578] sm:$0xff]
    %v871 = vld [vmem:[#allocation5 + $0x580] sm:$0xff]
    %v872 = vld [vmem:[#allocation5 + $0x588] sm:$0xff]
    %v873 = vld [vmem:[#allocation5 + $0x590] sm:$0xff]
    %v874 = vld [vmem:[#allocation5 + $0x598] sm:$0xff]
    %v875 = vld [vmem:[#allocation5 + $0x5a0] sm:$0xff]
    %v876 = vld [vmem:[#allocation5 + $0x5a8] sm:$0xff]
    %v877 = vld [vmem:[#allocation5 + $0x5b0] sm:$0xff]
    %v878 = vld [vmem:[#allocation5 + $0x5b8] sm:$0xff]
    %v879 = vld [vmem:[#allocation5 + $0x5c0] sm:$0xff]
    %v880 = vld [vmem:[#allocation5 + $0x5c8] sm:$0xff]
    %v881 = vld [vmem:[#allocation5 + $0x5d0] sm:$0xff]
    %v882 = vld [vmem:[#allocation5 + $0x5d8] sm:$0xff]
    %v883 = vld [vmem:[#allocation5 + $0x5e0] sm:$0xff]
    %v884 = vld [vmem:[#allocation5 + $0x5e8] sm:$0xff]
    %v885 = vld [vmem:[#allocation5 + $0x5f0] sm:$0xff]
    %v886 = vld [vmem:[#allocation5 + $0x5f8] sm:$0xff]
    %v983 = vunpack.c.l.b16 %v791
    %v984 = vunpack.c.h.b16 %v791
    %v985 = vunpack.c.l.b16 %v792
    %v986 = vunpack.c.h.b16 %v792
    %v987 = vunpack.c.l.b16 %v793
    %v988 = vunpack.c.h.b16 %v793
    %v989 = vunpack.c.l.b16 %v794
    %v990 = vunpack.c.h.b16 %v794
    %v991 = vunpack.c.l.b16 %v795
    %v992 = vunpack.c.h.b16 %v795
    %v993 = vunpack.c.l.b16 %v796
    %v994 = vunpack.c.h.b16 %v796
    %v995 = vunpack.c.l.b16 %v797
    %v996 = vunpack.c.h.b16 %v797
    %v997 = vunpack.c.l.b16 %v798
    %v998 = vunpack.c.h.b16 %v798
    %v999 = vunpack.c.l.b16 %v799
    %v1000 = vunpack.c.h.b16 %v799
    %v1001 = vunpack.c.l.b16 %v800
    %v1002 = vunpack.c.h.b16 %v800
    %v1003 = vunpack.c.l.b16 %v801
    %v1004 = vunpack.c.h.b16 %v801
    %v1005 = vunpack.c.l.b16 %v802
    %v1006 = vunpack.c.h.b16 %v802
    %v1007 = vunpack.c.l.b16 %v803
    %v1008 = vunpack.c.h.b16 %v803
    %v1009 = vunpack.c.l.b16 %v804
    %v1010 = vunpack.c.h.b16 %v804
    %v1011 = vunpack.c.l.b16 %v805
    %v1012 = vunpack.c.h.b16 %v805
    %v1013 = vunpack.c.l.b16 %v806
    %v1014 = vunpack.c.h.b16 %v806
    %v1015 = vunpack.c.l.b16 %v807
    %v1016 = vunpack.c.h.b16 %v807
    %v1017 = vunpack.c.l.b16 %v808
    %v1018 = vunpack.c.h.b16 %v808
    %v1019 = vunpack.c.l.b16 %v809
    %v1020 = vunpack.c.h.b16 %v809
    %v1021 = vunpack.c.l.b16 %v810
    %v1022 = vunpack.c.h.b16 %v810
    %v1023 = vunpack.c.l.b16 %v811
    %v1024 = vunpack.c.h.b16 %v811
    %v1025 = vunpack.c.l.b16 %v812
    %v1026 = vunpack.c.h.b16 %v812
    %v1027 = vunpack.c.l.b16 %v813
    %v1028 = vunpack.c.h.b16 %v813
    %v1029 = vunpack.c.l.b16 %v814
    %v1030 = vunpack.c.h.b16 %v814
    %v1031 = vunpack.c.l.b16 %v815
    %v1032 = vunpack.c.h.b16 %v815
    %v1033 = vunpack.c.l.b16 %v816
    %v1034 = vunpack.c.h.b16 %v816
    %v1035 = vunpack.c.l.b16 %v817
    %v1036 = vunpack.c.h.b16 %v817
    %v1037 = vunpack.c.l.b16 %v818
    %v1038 = vunpack.c.h.b16 %v818
    %v1039 = vunpack.c.l.b16 %v819
    %v1040 = vunpack.c.h.b16 %v819
    %v1041 = vunpack.c.l.b16 %v820
    %v1042 = vunpack.c.h.b16 %v820
    %v1043 = vunpack.c.l.b16 %v821
    %v1044 = vunpack.c.h.b16 %v821
    %v1045 = vunpack.c.l.b16 %v822
    %v1046 = vunpack.c.h.b16 %v822
    %v1047 = vunpack.c.l.b16 %v823
    %v1048 = vunpack.c.h.b16 %v823
    %v1049 = vunpack.c.l.b16 %v824
    %v1050 = vunpack.c.h.b16 %v824
    %v1051 = vunpack.c.l.b16 %v825
    %v1052 = vunpack.c.h.b16 %v825
    %v1053 = vunpack.c.l.b16 %v826
    %v1054 = vunpack.c.h.b16 %v826
    %v1055 = vunpack.c.l.b16 %v827
    %v1056 = vunpack.c.h.b16 %v827
    %v1057 = vunpack.c.l.b16 %v828
    %v1058 = vunpack.c.h.b16 %v828
    %v1059 = vunpack.c.l.b16 %v829
    %v1060 = vunpack.c.h.b16 %v829
    %v1061 = vunpack.c.l.b16 %v830
    %v1062 = vunpack.c.h.b16 %v830
    %v1063 = vunpack.c.l.b16 %v831
    %v1064 = vunpack.c.h.b16 %v831
    %v1065 = vunpack.c.l.b16 %v832
    %v1066 = vunpack.c.h.b16 %v832
    %v1067 = vunpack.c.l.b16 %v833
    %v1068 = vunpack.c.h.b16 %v833
    %v1069 = vunpack.c.l.b16 %v834
    %v1070 = vunpack.c.h.b16 %v834
    %v1071 = vunpack.c.l.b16 %v835
    %v1072 = vunpack.c.h.b16 %v835
    %v1073 = vunpack.c.l.b16 %v836
    %v1074 = vunpack.c.h.b16 %v836
    %v1075 = vunpack.c.l.b16 %v837
    %v1076 = vunpack.c.h.b16 %v837
    %v1077 = vunpack.c.l.b16 %v838
    %v1078 = vunpack.c.h.b16 %v838
    %v1079 = vunpack.c.l.b16 %v839
    %v1080 = vunpack.c.h.b16 %v839
    %v1081 = vunpack.c.l.b16 %v840
    %v1082 = vunpack.c.h.b16 %v840
    %v1083 = vunpack.c.l.b16 %v841
    %v1084 = vunpack.c.h.b16 %v841
    %v1085 = vunpack.c.l.b16 %v842
    %v1086 = vunpack.c.h.b16 %v842
    %v1087 = vunpack.c.l.b16 %v843
    %v1088 = vunpack.c.h.b16 %v843
    %v1089 = vunpack.c.l.b16 %v844
    %v1090 = vunpack.c.h.b16 %v844
    %v1091 = vunpack.c.l.b16 %v845
    %v1092 = vunpack.c.h.b16 %v845
    %v1093 = vunpack.c.l.b16 %v846
    %v1094 = vunpack.c.h.b16 %v846
    %v1095 = vunpack.c.l.b16 %v847
    %v1096 = vunpack.c.h.b16 %v847
    %v1097 = vunpack.c.l.b16 %v848
    %v1098 = vunpack.c.h.b16 %v848
    %v1099 = vunpack.c.l.b16 %v849
    %v1100 = vunpack.c.h.b16 %v849
    %v1101 = vunpack.c.l.b16 %v850
    %v1102 = vunpack.c.h.b16 %v850
    %v1103 = vunpack.c.l.b16 %v851
    %v1104 = vunpack.c.h.b16 %v851
    %v1105 = vunpack.c.l.b16 %v852
    %v1106 = vunpack.c.h.b16 %v852
    %v1107 = vunpack.c.l.b16 %v853
    %v1108 = vunpack.c.h.b16 %v853
    %v1109 = vunpack.c.l.b16 %v854
    %v1110 = vunpack.c.h.b16 %v854
    %v1111 = vunpack.c.l.b16 %v855
    %v1112 = vunpack.c.h.b16 %v855
    %v1113 = vunpack.c.l.b16 %v856
    %v1114 = vunpack.c.h.b16 %v856
    %v1115 = vunpack.c.l.b16 %v857
    %v1116 = vunpack.c.h.b16 %v857
    %v1117 = vunpack.c.l.b16 %v858
    %v1118 = vunpack.c.h.b16 %v858
    %v1119 = vunpack.c.l.b16 %v859
    %v1120 = vunpack.c.h.b16 %v859
    %v1121 = vunpack.c.l.b16 %v860
    %v1122 = vunpack.c.h.b16 %v860
    %v1123 = vunpack.c.l.b16 %v861
    %v1124 = vunpack.c.h.b16 %v861
    %v1125 = vunpack.c.l.b16 %v862
    %v1126 = vunpack.c.h.b16 %v862
    %v1127 = vunpack.c.l.b16 %v863
    %v1128 = vunpack.c.h.b16 %v863
    %v1129 = vunpack.c.l.b16 %v864
    %v1130 = vunpack.c.h.b16 %v864
    %v1131 = vunpack.c.l.b16 %v865
    %v1132 = vunpack.c.h.b16 %v865
    %v1133 = vunpack.c.l.b16 %v866
    %v1134 = vunpack.c.h.b16 %v866
    %v1135 = vunpack.c.l.b16 %v867
    %v1136 = vunpack.c.h.b16 %v867
    %v1137 = vunpack.c.l.b16 %v868
    %v1138 = vunpack.c.h.b16 %v868
    %v1139 = vunpack.c.l.b16 %v869
    %v1140 = vunpack.c.h.b16 %v869
    %v1141 = vunpack.c.l.b16 %v870
    %v1142 = vunpack.c.h.b16 %v870
    %v1143 = vunpack.c.l.b16 %v871
    %v1144 = vunpack.c.h.b16 %v871
    %v1145 = vunpack.c.l.b16 %v872
    %v1146 = vunpack.c.h.b16 %v872
    %v1147 = vunpack.c.l.b16 %v873
    %v1148 = vunpack.c.h.b16 %v873
    %v1149 = vunpack.c.l.b16 %v874
    %v1150 = vunpack.c.h.b16 %v874
    %v1151 = vunpack.c.l.b16 %v875
    %v1152 = vunpack.c.h.b16 %v875
    %v1153 = vunpack.c.l.b16 %v876
    %v1154 = vunpack.c.h.b16 %v876
    %v1155 = vunpack.c.l.b16 %v877
    %v1156 = vunpack.c.h.b16 %v877
    %v1157 = vunpack.c.l.b16 %v878
    %v1158 = vunpack.c.h.b16 %v878
    %v1159 = vunpack.c.l.b16 %v879
    %v1160 = vunpack.c.h.b16 %v879
    %v1161 = vunpack.c.l.b16 %v880
    %v1162 = vunpack.c.h.b16 %v880
    %v1163 = vunpack.c.l.b16 %v881
    %v1164 = vunpack.c.h.b16 %v881
    %v1165 = vunpack.c.l.b16 %v882
    %v1166 = vunpack.c.h.b16 %v882
    %v1167 = vunpack.c.l.b16 %v883
    %v1168 = vunpack.c.h.b16 %v883
    %v1169 = vunpack.c.l.b16 %v884
    %v1170 = vunpack.c.h.b16 %v884
    %v1171 = vunpack.c.l.b16 %v885
    %v1172 = vunpack.c.h.b16 %v885
    %v1173 = vunpack.c.l.b16 %v886
    %v1174 = vunpack.c.h.b16 %v886
    %v1175 = vpack.c.b16 %v989, %v983
    %v1176 = vpack.c.b16 %v990, %v984
    %v1177 = vpack.c.b16 %v991, %v985
    %v1178 = vpack.c.b16 %v992, %v986
    %v1179 = vpack.c.b16 %v993, %v987
    %v1180 = vpack.c.b16 %v994, %v988
    %v1181 = vpack.c.b16 %v1001, %v995
    %v1182 = vpack.c.b16 %v1002, %v996
    %v1183 = vpack.c.b16 %v1003, %v997
    %v1184 = vpack.c.b16 %v1004, %v998
    %v1185 = vpack.c.b16 %v1005, %v999
    %v1186 = vpack.c.b16 %v1006, %v1000
    %v1187 = vpack.c.b16 %v1013, %v1007
    %v1188 = vpack.c.b16 %v1014, %v1008
    %v1189 = vpack.c.b16 %v1015, %v1009
    %v1190 = vpack.c.b16 %v1016, %v1010
    %v1191 = vpack.c.b16 %v1017, %v1011
    %v1192 = vpack.c.b16 %v1018, %v1012
    %v1193 = vpack.c.b16 %v1025, %v1019
    %v1194 = vpack.c.b16 %v1026, %v1020
    %v1195 = vpack.c.b16 %v1027, %v1021
    %v1196 = vpack.c.b16 %v1028, %v1022
    %v1197 = vpack.c.b16 %v1029, %v1023
    %v1198 = vpack.c.b16 %v1030, %v1024
    %v1199 = vpack.c.b16 %v1037, %v1031
    %v1200 = vpack.c.b16 %v1038, %v1032
    %v1201 = vpack.c.b16 %v1039, %v1033
    %v1202 = vpack.c.b16 %v1040, %v1034
    %v1203 = vpack.c.b16 %v1041, %v1035
    %v1204 = vpack.c.b16 %v1042, %v1036
    %v1205 = vpack.c.b16 %v1049, %v1043
    %v1206 = vpack.c.b16 %v1050, %v1044
    %v1207 = vpack.c.b16 %v1051, %v1045
    %v1208 = vpack.c.b16 %v1052, %v1046
    %v1209 = vpack.c.b16 %v1053, %v1047
    %v1210 = vpack.c.b16 %v1054, %v1048
    %v1211 = vpack.c.b16 %v1061, %v1055
    %v1212 = vpack.c.b16 %v1062, %v1056
    %v1213 = vpack.c.b16 %v1063, %v1057
    %v1214 = vpack.c.b16 %v1064, %v1058
    %v1215 = vpack.c.b16 %v1065, %v1059
    %v1216 = vpack.c.b16 %v1066, %v1060
    %v1217 = vpack.c.b16 %v1073, %v1067
    %v1218 = vpack.c.b16 %v1074, %v1068
    %v1219 = vpack.c.b16 %v1075, %v1069
    %v1220 = vpack.c.b16 %v1076, %v1070
    %v1221 = vpack.c.b16 %v1077, %v1071
    %v1222 = vpack.c.b16 %v1078, %v1072
    %v1223 = vpack.c.b16 %v1085, %v1079
    %v1224 = vpack.c.b16 %v1086, %v1080
    %v1225 = vpack.c.b16 %v1087, %v1081
    %v1226 = vpack.c.b16 %v1088, %v1082
    %v1227 = vpack.c.b16 %v1089, %v1083
    %v1228 = vpack.c.b16 %v1090, %v1084
    %v1229 = vpack.c.b16 %v1097, %v1091
    %v1230 = vpack.c.b16 %v1098, %v1092
    %v1231 = vpack.c.b16 %v1099, %v1093
    %v1232 = vpack.c.b16 %v1100, %v1094
    %v1233 = vpack.c.b16 %v1101, %v1095
    %v1234 = vpack.c.b16 %v1102, %v1096
    %v1235 = vpack.c.b16 %v1109, %v1103
    %v1236 = vpack.c.b16 %v1110, %v1104
    %v1237 = vpack.c.b16 %v1111, %v1105
    %v1238 = vpack.c.b16 %v1112, %v1106
    %v1239 = vpack.c.b16 %v1113, %v1107
    %v1240 = vpack.c.b16 %v1114, %v1108
    %v1241 = vpack.c.b16 %v1121, %v1115
    %v1242 = vpack.c.b16 %v1122, %v1116
    %v1243 = vpack.c.b16 %v1123, %v1117
    %v1244 = vpack.c.b16 %v1124, %v1118
    %v1245 = vpack.c.b16 %v1125, %v1119
    %v1246 = vpack.c.b16 %v1126, %v1120
    %v1247 = vpack.c.b16 %v1133, %v1127
    %v1248 = vpack.c.b16 %v1134, %v1128
    %v1249 = vpack.c.b16 %v1135, %v1129
    %v1250 = vpack.c.b16 %v1136, %v1130
    %v1251 = vpack.c.b16 %v1137, %v1131
    %v1252 = vpack.c.b16 %v1138, %v1132
    %v1253 = vpack.c.b16 %v1145, %v1139
    %v1254 = vpack.c.b16 %v1146, %v1140
    %v1255 = vpack.c.b16 %v1147, %v1141
    %v1256 = vpack.c.b16 %v1148, %v1142
    %v1257 = vpack.c.b16 %v1149, %v1143
    %v1258 = vpack.c.b16 %v1150, %v1144
    %v1259 = vpack.c.b16 %v1157, %v1151
    %v1260 = vpack.c.b16 %v1158, %v1152
    %v1261 = vpack.c.b16 %v1159, %v1153
    %v1262 = vpack.c.b16 %v1160, %v1154
    %v1263 = vpack.c.b16 %v1161, %v1155
    %v1264 = vpack.c.b16 %v1162, %v1156
    %v1265 = vpack.c.b16 %v1169, %v1163
    %v1266 = vpack.c.b16 %v1170, %v1164
    %v1267 = vpack.c.b16 %v1171, %v1165
    %v1268 = vpack.c.b16 %v1172, %v1166
    %v1269 = vpack.c.b16 %v1173, %v1167
    %v1270 = vpack.c.b16 %v1174, %v1168
    %1367 = vmatprep.subr.bf16.mxu0 %v1218
    %1368 = vmatpush1.bf16.msra.mxu0 %v1217
    %1369 = vmatprep.subr.bf16.mxu0 %v1212
    %1370 = vmatpush1.bf16.msra.mxu0 %v1211
    %1371 = vmatprep.subr.bf16.mxu0 %v1206
    %1372 = vmatpush1.bf16.msra.mxu0 %v1205
    %1373 = vmatprep.subr.bf16.mxu0 %v1200
    %1374 = vmatpush1.bf16.msra.mxu0 %v1199
    %1375 = vmatprep.subr.bf16.mxu0 %v1194
    %1376 = vmatpush1.bf16.msra.mxu0 %v1193
    %1377 = vmatprep.subr.bf16.mxu0 %v1188
    %1378 = vmatpush1.bf16.msra.mxu0 %v1187
    %1379 = vmatprep.subr.bf16.mxu0 %v1182
    %1380 = vmatpush1.bf16.msra.mxu0 %v1181
    %1381 = vmatprep.subr.bf16.mxu0 %v1176
    %1382 = vmatpush1.bf16.msra.mxu0 %v1175
    %1383 = vmatprep.subr.bf16.mxu0 %v1266
    %1384 = vmatpush2.bf16.msra.mxu0 %v1265
    %1385 = vmatprep.subr.bf16.mxu0 %v1260
    %1386 = vmatpush2.bf16.msra.mxu0 %v1259
    %1387 = vmatprep.subr.bf16.mxu0 %v1254
    %1388 = vmatpush2.bf16.msra.mxu0 %v1253
    %1389 = vmatprep.subr.bf16.mxu0 %v1248
    %1390 = vmatpush2.bf16.msra.mxu0 %v1247
    %1391 = vmatprep.subr.bf16.mxu0 %v1242
    %1392 = vmatpush2.bf16.msra.mxu0 %v1241
    %1393 = vmatprep.subr.bf16.mxu0 %v1236
    %1394 = vmatpush2.bf16.msra.mxu0 %v1235
    %1395 = vmatprep.subr.bf16.mxu0 %v1230
    %1396 = vmatpush2.bf16.msra.mxu0 %v1229
    %1397 = vmatprep.subr.bf16.mxu0 %v1224
    %1398 = vmatpush2.bf16.msra.mxu0 %v1223
    %1399 = vmatprep.mubr.bf16.mxu0 %v790
    %1400 = vmatmul.mubr.bf16.gmra.mxu0 %v789
    %v1401 = vpop.f32.mrf.mxu0
    %v1402 = vadd.f32 0.0, %v1401
    %v1403 = vpop.f32.mrf.mxu0
    %v1404 = vadd.f32 0.0, %v1403
    %v1405 = vpop.f32.mrf.mxu0
    %v1406 = vpop.f32.mrf.mxu0
    %1407 = vdwg.mxu0
    %1408 = vmatprep.subr.bf16.mxu0 %v1220
    %1409 = vmatpush1.bf16.msra.mxu0 %v1219
    %1410 = vmatprep.subr.bf16.mxu0 %v1214
    %1411 = vmatpush1.bf16.msra.mxu0 %v1213
    %1412 = vmatprep.subr.bf16.mxu0 %v1208
    %1413 = vmatpush1.bf16.msra.mxu0 %v1207
    %1414 = vmatprep.subr.bf16.mxu0 %v1202
    %1415 = vmatpush1.bf16.msra.mxu0 %v1201
    %1416 = vmatprep.subr.bf16.mxu0 %v1196
    %1417 = vmatpush1.bf16.msra.mxu0 %v1195
    %1418 = vmatprep.subr.bf16.mxu0 %v1190
    %1419 = vmatpush1.bf16.msra.mxu0 %v1189
    %1420 = vmatprep.subr.bf16.mxu0 %v1184
    %1421 = vmatpush1.bf16.msra.mxu0 %v1183
    %1422 = vmatprep.subr.bf16.mxu0 %v1178
    %1423 = vmatpush1.bf16.msra.mxu0 %v1177
    %1424 = vmatprep.subr.bf16.mxu0 %v1268
    %1425 = vmatpush2.bf16.msra.mxu0 %v1267
    %1426 = vmatprep.subr.bf16.mxu0 %v1262
    %1427 = vmatpush2.bf16.msra.mxu0 %v1261
    %1428 = vmatprep.subr.bf16.mxu0 %v1256
    %1429 = vmatpush2.bf16.msra.mxu0 %v1255
    %1430 = vmatprep.subr.bf16.mxu0 %v1250
    %1431 = vmatpush2.bf16.msra.mxu0 %v1249
    %1432 = vmatprep.subr.bf16.mxu0 %v1244
    %1433 = vmatpush2.bf16.msra.mxu0 %v1243
    %1434 = vmatprep.subr.bf16.mxu0 %v1238
    %1435 = vmatpush2.bf16.msra.mxu0 %v1237
    %1436 = vmatprep.subr.bf16.mxu0 %v1232
    %1437 = vmatpush2.bf16.msra.mxu0 %v1231
    %1438 = vmatprep.subr.bf16.mxu0 %v1226
    %1439 = vmatpush2.bf16.msra.mxu0 %v1225
    %1440 = vmatprep.mubr.bf16.mxu0 %v790
    %1441 = vmatmul.mubr.bf16.gmra.mxu0 %v789
    %v1442 = vpop.f32.mrf.mxu0
    %v1443 = vadd.f32 0.0, %v1442
    %v1444 = vpop.f32.mrf.mxu0
    %v1445 = vadd.f32 0.0, %v1444
    %v1446 = vpop.f32.mrf.mxu0
    %v1447 = vpop.f32.mrf.mxu0
    %1448 = vdwg.mxu0
    %1449 = vmatprep.subr.bf16.mxu0 %v1222
    %1450 = vmatpush1.bf16.msra.mxu0 %v1221
    %1451 = vmatprep.subr.bf16.mxu0 %v1216
    %1452 = vmatpush1.bf16.msra.mxu0 %v1215
    %1453 = vmatprep.subr.bf16.mxu0 %v1210
    %1454 = vmatpush1.bf16.msra.mxu0 %v1209
    %1455 = vmatprep.subr.bf16.mxu0 %v1204
    %1456 = vmatpush1.bf16.msra.mxu0 %v1203
    %1457 = vmatprep.subr.bf16.mxu0 %v1198
    %1458 = vmatpush1.bf16.msra.mxu0 %v1197
    %1459 = vmatprep.subr.bf16.mxu0 %v1192
    %1460 = vmatpush1.bf16.msra.mxu0 %v1191
    %1461 = vmatprep.subr.bf16.mxu0 %v1186
    %1462 = vmatpush1.bf16.msra.mxu0 %v1185
    %1463 = vmatprep.subr.bf16.mxu0 %v1180
    %1464 = vmatpush1.bf16.msra.mxu0 %v1179
    %1465 = vmatprep.subr.bf16.mxu0 %v1270
    %1466 = vmatpush2.bf16.msra.mxu0 %v1269
    %1467 = vmatprep.subr.bf16.mxu0 %v1264
    %1468 = vmatpush2.bf16.msra.mxu0 %v1263
    %1469 = vmatprep.subr.bf16.mxu0 %v1258
    %1470 = vmatpush2.bf16.msra.mxu0 %v1257
    %1471 = vmatprep.subr.bf16.mxu0 %v1252
    %1472 = vmatpush2.bf16.msra.mxu0 %v1251
    %1473 = vmatprep.subr.bf16.mxu0 %v1246
    %1474 = vmatpush2.bf16.msra.mxu0 %v1245
    %1475 = vmatprep.subr.bf16.mxu0 %v1240
    %1476 = vmatpush2.bf16.msra.mxu0 %v1239
    %1477 = vmatprep.subr.bf16.mxu0 %v1234
    %1478 = vmatpush2.bf16.msra.mxu0 %v1233
    %1479 = vmatprep.subr.bf16.mxu0 %v1228
    %1480 = vmatpush2.bf16.msra.mxu0 %v1227
    %1481 = vmatprep.mubr.bf16.mxu0 %v790
    %1482 = vmatmul.mubr.bf16.gmra.mxu0 %v789
    %v1483 = vpop.f32.mrf.mxu0
    %v1484 = vadd.f32 0.0, %v1483
    %v1485 = vpop.f32.mrf.mxu0
    %v1486 = vadd.f32 0.0, %v1485
    %v1487 = vpop.f32.mrf.mxu0
    %v1488 = vpop.f32.mrf.mxu0
    %1489 = vdwg.mxu0
    %v1586 = vunpack.c.l.b16 %v691
    %v1587 = vunpack.c.h.b16 %v691
    %v1588 = vunpack.c.l.b16 %v692
    %v1589 = vunpack.c.h.b16 %v692
    %v1590 = vunpack.c.l.b16 %v693
    %v1591 = vunpack.c.h.b16 %v693
    %v1592 = vunpack.c.l.b16 %v694
    %v1593 = vunpack.c.h.b16 %v694
    %v1594 = vunpack.c.l.b16 %v695
    %v1595 = vunpack.c.h.b16 %v695
    %v1596 = vunpack.c.l.b16 %v696
    %v1597 = vunpack.c.h.b16 %v696
    %v1598 = vunpack.c.l.b16 %v697
    %v1599 = vunpack.c.h.b16 %v697
    %v1600 = vunpack.c.l.b16 %v698
    %v1601 = vunpack.c.h.b16 %v698
    %v1602 = vunpack.c.l.b16 %v699
    %v1603 = vunpack.c.h.b16 %v699
    %v1604 = vunpack.c.l.b16 %v700
    %v1605 = vunpack.c.h.b16 %v700
    %v1606 = vunpack.c.l.b16 %v701
    %v1607 = vunpack.c.h.b16 %v701
    %v1608 = vunpack.c.l.b16 %v702
    %v1609 = vunpack.c.h.b16 %v702
    %v1610 = vunpack.c.l.b16 %v703
    %v1611 = vunpack.c.h.b16 %v703
    %v1612 = vunpack.c.l.b16 %v704
    %v1613 = vunpack.c.h.b16 %v704
    %v1614 = vunpack.c.l.b16 %v705
    %v1615 = vunpack.c.h.b16 %v705
    %v1616 = vunpack.c.l.b16 %v706
    %v1617 = vunpack.c.h.b16 %v706
    %v1618 = vunpack.c.l.b16 %v707
    %v1619 = vunpack.c.h.b16 %v707
    %v1620 = vunpack.c.l.b16 %v708
    %v1621 = vunpack.c.h.b16 %v708
    %v1622 = vunpack.c.l.b16 %v709
    %v1623 = vunpack.c.h.b16 %v709
    %v1624 = vunpack.c.l.b16 %v710
    %v1625 = vunpack.c.h.b16 %v710
    %v1626 = vunpack.c.l.b16 %v711
    %v1627 = vunpack.c.h.b16 %v711
    %v1628 = vunpack.c.l.b16 %v712
    %v1629 = vunpack.c.h.b16 %v712
    %v1630 = vunpack.c.l.b16 %v713
    %v1631 = vunpack.c.h.b16 %v713
    %v1632 = vunpack.c.l.b16 %v714
    %v1633 = vunpack.c.h.b16 %v714
    %v1634 = vunpack.c.l.b16 %v715
    %v1635 = vunpack.c.h.b16 %v715
    %v1636 = vunpack.c.l.b16 %v716
    %v1637 = vunpack.c.h.b16 %v716
    %v1638 = vunpack.c.l.b16 %v717
    %v1639 = vunpack.c.h.b16 %v717
    %v1640 = vunpack.c.l.b16 %v718
    %v1641 = vunpack.c.h.b16 %v718
    %v1642 = vunpack.c.l.b16 %v719
    %v1643 = vunpack.c.h.b16 %v719
    %v1644 = vunpack.c.l.b16 %v720
    %v1645 = vunpack.c.h.b16 %v720
    %v1646 = vunpack.c.l.b16 %v721
    %v1647 = vunpack.c.h.b16 %v721
    %v1648 = vunpack.c.l.b16 %v722
    %v1649 = vunpack.c.h.b16 %v722
    %v1650 = vunpack.c.l.b16 %v723
    %v1651 = vunpack.c.h.b16 %v723
    %v1652 = vunpack.c.l.b16 %v724
    %v1653 = vunpack.c.h.b16 %v724
    %v1654 = vunpack.c.l.b16 %v725
    %v1655 = vunpack.c.h.b16 %v725
    %v1656 = vunpack.c.l.b16 %v726
    %v1657 = vunpack.c.h.b16 %v726
    %v1658 = vunpack.c.l.b16 %v727
    %v1659 = vunpack.c.h.b16 %v727
    %v1660 = vunpack.c.l.b16 %v728
    %v1661 = vunpack.c.h.b16 %v728
    %v1662 = vunpack.c.l.b16 %v729
    %v1663 = vunpack.c.h.b16 %v729
    %v1664 = vunpack.c.l.b16 %v730
    %v1665 = vunpack.c.h.b16 %v730
    %v1666 = vunpack.c.l.b16 %v731
    %v1667 = vunpack.c.h.b16 %v731
    %v1668 = vunpack.c.l.b16 %v732
    %v1669 = vunpack.c.h.b16 %v732
    %v1670 = vunpack.c.l.b16 %v733
    %v1671 = vunpack.c.h.b16 %v733
    %v1672 = vunpack.c.l.b16 %v734
    %v1673 = vunpack.c.h.b16 %v734
    %v1674 = vunpack.c.l.b16 %v735
    %v1675 = vunpack.c.h.b16 %v735
    %v1676 = vunpack.c.l.b16 %v736
    %v1677 = vunpack.c.h.b16 %v736
    %v1678 = vunpack.c.l.b16 %v737
    %v1679 = vunpack.c.h.b16 %v737
    %v1680 = vunpack.c.l.b16 %v738
    %v1681 = vunpack.c.h.b16 %v738
    %v1682 = vunpack.c.l.b16 %v739
    %v1683 = vunpack.c.h.b16 %v739
    %v1684 = vunpack.c.l.b16 %v740
    %v1685 = vunpack.c.h.b16 %v740
    %v1686 = vunpack.c.l.b16 %v741
    %v1687 = vunpack.c.h.b16 %v741
    %v1688 = vunpack.c.l.b16 %v742
    %v1689 = vunpack.c.h.b16 %v742
    %v1690 = vunpack.c.l.b16 %v743
    %v1691 = vunpack.c.h.b16 %v743
    %v1692 = vunpack.c.l.b16 %v744
    %v1693 = vunpack.c.h.b16 %v744
    %v1694 = vunpack.c.l.b16 %v745
    %v1695 = vunpack.c.h.b16 %v745
    %v1696 = vunpack.c.l.b16 %v746
    %v1697 = vunpack.c.h.b16 %v746
    %v1698 = vunpack.c.l.b16 %v747
    %v1699 = vunpack.c.h.b16 %v747
    %v1700 = vunpack.c.l.b16 %v748
    %v1701 = vunpack.c.h.b16 %v748
    %v1702 = vunpack.c.l.b16 %v749
    %v1703 = vunpack.c.h.b16 %v749
    %v1704 = vunpack.c.l.b16 %v750
    %v1705 = vunpack.c.h.b16 %v750
    %v1706 = vunpack.c.l.b16 %v751
    %v1707 = vunpack.c.h.b16 %v751
    %v1708 = vunpack.c.l.b16 %v752
    %v1709 = vunpack.c.h.b16 %v752
    %v1710 = vunpack.c.l.b16 %v753
    %v1711 = vunpack.c.h.b16 %v753
    %v1712 = vunpack.c.l.b16 %v754
    %v1713 = vunpack.c.h.b16 %v754
    %v1714 = vunpack.c.l.b16 %v755
    %v1715 = vunpack.c.h.b16 %v755
    %v1716 = vunpack.c.l.b16 %v756
    %v1717 = vunpack.c.h.b16 %v756
    %v1718 = vunpack.c.l.b16 %v757
    %v1719 = vunpack.c.h.b16 %v757
    %v1720 = vunpack.c.l.b16 %v758
    %v1721 = vunpack.c.h.b16 %v758
    %v1722 = vunpack.c.l.b16 %v759
    %v1723 = vunpack.c.h.b16 %v759
    %v1724 = vunpack.c.l.b16 %v760
    %v1725 = vunpack.c.h.b16 %v760
    %v1726 = vunpack.c.l.b16 %v761
    %v1727 = vunpack.c.h.b16 %v761
    %v1728 = vunpack.c.l.b16 %v762
    %v1729 = vunpack.c.h.b16 %v762
    %v1730 = vunpack.c.l.b16 %v763
    %v1731 = vunpack.c.h.b16 %v763
    %v1732 = vunpack.c.l.b16 %v764
    %v1733 = vunpack.c.h.b16 %v764
    %v1734 = vunpack.c.l.b16 %v765
    %v1735 = vunpack.c.h.b16 %v765
    %v1736 = vunpack.c.l.b16 %v766
    %v1737 = vunpack.c.h.b16 %v766
    %v1738 = vunpack.c.l.b16 %v767
    %v1739 = vunpack.c.h.b16 %v767
    %v1740 = vunpack.c.l.b16 %v768
    %v1741 = vunpack.c.h.b16 %v768
    %v1742 = vunpack.c.l.b16 %v769
    %v1743 = vunpack.c.h.b16 %v769
    %v1744 = vunpack.c.l.b16 %v770
    %v1745 = vunpack.c.h.b16 %v770
    %v1746 = vunpack.c.l.b16 %v771
    %v1747 = vunpack.c.h.b16 %v771
    %v1748 = vunpack.c.l.b16 %v772
    %v1749 = vunpack.c.h.b16 %v772
    %v1750 = vunpack.c.l.b16 %v773
    %v1751 = vunpack.c.h.b16 %v773
    %v1752 = vunpack.c.l.b16 %v774
    %v1753 = vunpack.c.h.b16 %v774
    %v1754 = vunpack.c.l.b16 %v775
    %v1755 = vunpack.c.h.b16 %v775
    %v1756 = vunpack.c.l.b16 %v776
    %v1757 = vunpack.c.h.b16 %v776
    %v1758 = vunpack.c.l.b16 %v777
    %v1759 = vunpack.c.h.b16 %v777
    %v1760 = vunpack.c.l.b16 %v778
    %v1761 = vunpack.c.h.b16 %v778
    %v1762 = vunpack.c.l.b16 %v779
    %v1763 = vunpack.c.h.b16 %v779
    %v1764 = vunpack.c.l.b16 %v780
    %v1765 = vunpack.c.h.b16 %v780
    %v1766 = vunpack.c.l.b16 %v781
    %v1767 = vunpack.c.h.b16 %v781
    %v1768 = vunpack.c.l.b16 %v782
    %v1769 = vunpack.c.h.b16 %v782
    %v1770 = vunpack.c.l.b16 %v783
    %v1771 = vunpack.c.h.b16 %v783
    %v1772 = vunpack.c.l.b16 %v784
    %v1773 = vunpack.c.h.b16 %v784
    %v1774 = vunpack.c.l.b16 %v785
    %v1775 = vunpack.c.h.b16 %v785
    %v1776 = vunpack.c.l.b16 %v786
    %v1777 = vunpack.c.h.b16 %v786
    %v1778 = vpack.c.b16 %v1592, %v1586
    %v1779 = vpack.c.b16 %v1593, %v1587
    %v1780 = vpack.c.b16 %v1594, %v1588
    %v1781 = vpack.c.b16 %v1595, %v1589
    %v1782 = vpack.c.b16 %v1596, %v1590
    %v1783 = vpack.c.b16 %v1597, %v1591
    %v1784 = vpack.c.b16 %v1604, %v1598
    %v1785 = vpack.c.b16 %v1605, %v1599
    %v1786 = vpack.c.b16 %v1606, %v1600
    %v1787 = vpack.c.b16 %v1607, %v1601
    %v1788 = vpack.c.b16 %v1608, %v1602
    %v1789 = vpack.c.b16 %v1609, %v1603
    %v1790 = vpack.c.b16 %v1616, %v1610
    %v1791 = vpack.c.b16 %v1617, %v1611
    %v1792 = vpack.c.b16 %v1618, %v1612
    %v1793 = vpack.c.b16 %v1619, %v1613
    %v1794 = vpack.c.b16 %v1620, %v1614
    %v1795 = vpack.c.b16 %v1621, %v1615
    %v1796 = vpack.c.b16 %v1628, %v1622
    %v1797 = vpack.c.b16 %v1629, %v1623
    %v1798 = vpack.c.b16 %v1630, %v1624
    %v1799 = vpack.c.b16 %v1631, %v1625
    %v1800 = vpack.c.b16 %v1632, %v1626
    %v1801 = vpack.c.b16 %v1633, %v1627
    %v1802 = vpack.c.b16 %v1640, %v1634
    %v1803 = vpack.c.b16 %v1641, %v1635
    %v1804 = vpack.c.b16 %v1642, %v1636
    %v1805 = vpack.c.b16 %v1643, %v1637
    %v1806 = vpack.c.b16 %v1644, %v1638
    %v1807 = vpack.c.b16 %v1645, %v1639
    %v1808 = vpack.c.b16 %v1652, %v1646
    %v1809 = vpack.c.b16 %v1653, %v1647
    %v1810 = vpack.c.b16 %v1654, %v1648
    %v1811 = vpack.c.b16 %v1655, %v1649
    %v1812 = vpack.c.b16 %v1656, %v1650
    %v1813 = vpack.c.b16 %v1657, %v1651
    %v1814 = vpack.c.b16 %v1664, %v1658
    %v1815 = vpack.c.b16 %v1665, %v1659
    %v1816 = vpack.c.b16 %v1666, %v1660
    %v1817 = vpack.c.b16 %v1667, %v1661
    %v1818 = vpack.c.b16 %v1668, %v1662
    %v1819 = vpack.c.b16 %v1669, %v1663
    %v1820 = vpack.c.b16 %v1676, %v1670
    %v1821 = vpack.c.b16 %v1677, %v1671
    %v1822 = vpack.c.b16 %v1678, %v1672
    %v1823 = vpack.c.b16 %v1679, %v1673
    %v1824 = vpack.c.b16 %v1680, %v1674
    %v1825 = vpack.c.b16 %v1681, %v1675
    %v1826 = vpack.c.b16 %v1688, %v1682
    %v1827 = vpack.c.b16 %v1689, %v1683
    %v1828 = vpack.c.b16 %v1690, %v1684
    %v1829 = vpack.c.b16 %v1691, %v1685
    %v1830 = vpack.c.b16 %v1692, %v1686
    %v1831 = vpack.c.b16 %v1693, %v1687
    %v1832 = vpack.c.b16 %v1700, %v1694
    %v1833 = vpack.c.b16 %v1701, %v1695
    %v1834 = vpack.c.b16 %v1702, %v1696
    %v1835 = vpack.c.b16 %v1703, %v1697
    %v1836 = vpack.c.b16 %v1704, %v1698
    %v1837 = vpack.c.b16 %v1705, %v1699
    %v1838 = vpack.c.b16 %v1712, %v1706
    %v1839 = vpack.c.b16 %v1713, %v1707
    %v1840 = vpack.c.b16 %v1714, %v1708
    %v1841 = vpack.c.b16 %v1715, %v1709
    %v1842 = vpack.c.b16 %v1716, %v1710
    %v1843 = vpack.c.b16 %v1717, %v1711
    %v1844 = vpack.c.b16 %v1724, %v1718
    %v1845 = vpack.c.b16 %v1725, %v1719
    %v1846 = vpack.c.b16 %v1726, %v1720
    %v1847 = vpack.c.b16 %v1727, %v1721
    %v1848 = vpack.c.b16 %v1728, %v1722
    %v1849 = vpack.c.b16 %v1729, %v1723
    %v1850 = vpack.c.b16 %v1736, %v1730
    %v1851 = vpack.c.b16 %v1737, %v1731
    %v1852 = vpack.c.b16 %v1738, %v1732
    %v1853 = vpack.c.b16 %v1739, %v1733
    %v1854 = vpack.c.b16 %v1740, %v1734
    %v1855 = vpack.c.b16 %v1741, %v1735
    %v1856 = vpack.c.b16 %v1748, %v1742
    %v1857 = vpack.c.b16 %v1749, %v1743
    %v1858 = vpack.c.b16 %v1750, %v1744
    %v1859 = vpack.c.b16 %v1751, %v1745
    %v1860 = vpack.c.b16 %v1752, %v1746
    %v1861 = vpack.c.b16 %v1753, %v1747
    %v1862 = vpack.c.b16 %v1760, %v1754
    %v1863 = vpack.c.b16 %v1761, %v1755
    %v1864 = vpack.c.b16 %v1762, %v1756
    %v1865 = vpack.c.b16 %v1763, %v1757
    %v1866 = vpack.c.b16 %v1764, %v1758
    %v1867 = vpack.c.b16 %v1765, %v1759
    %v1868 = vpack.c.b16 %v1772, %v1766
    %v1869 = vpack.c.b16 %v1773, %v1767
    %v1870 = vpack.c.b16 %v1774, %v1768
    %v1871 = vpack.c.b16 %v1775, %v1769
    %v1872 = vpack.c.b16 %v1776, %v1770
    %v1873 = vpack.c.b16 %v1777, %v1771
    %1970 = vmatprep.subr.bf16.mxu0 %v1821
    %1971 = vmatpush1.bf16.msra.mxu0 %v1820
    %1972 = vmatprep.subr.bf16.mxu0 %v1815
    %1973 = vmatpush1.bf16.msra.mxu0 %v1814
    %1974 = vmatprep.subr.bf16.mxu0 %v1809
    %1975 = vmatpush1.bf16.msra.mxu0 %v1808
    %1976 = vmatprep.subr.bf16.mxu0 %v1803
    %1977 = vmatpush1.bf16.msra.mxu0 %v1802
    %1978 = vmatprep.subr.bf16.mxu0 %v1797
    %1979 = vmatpush1.bf16.msra.mxu0 %v1796
    %1980 = vmatprep.subr.bf16.mxu0 %v1791
    %1981 = vmatpush1.bf16.msra.mxu0 %v1790
    %1982 = vmatprep.subr.bf16.mxu0 %v1785
    %1983 = vmatpush1.bf16.msra.mxu0 %v1784
    %1984 = vmatprep.subr.bf16.mxu0 %v1779
    %1985 = vmatpush1.bf16.msra.mxu0 %v1778
    %1986 = vmatprep.subr.bf16.mxu0 %v1869
    %1987 = vmatpush2.bf16.msra.mxu0 %v1868
    %1988 = vmatprep.subr.bf16.mxu0 %v1863
    %1989 = vmatpush2.bf16.msra.mxu0 %v1862
    %1990 = vmatprep.subr.bf16.mxu0 %v1857
    %1991 = vmatpush2.bf16.msra.mxu0 %v1856
    %1992 = vmatprep.subr.bf16.mxu0 %v1851
    %1993 = vmatpush2.bf16.msra.mxu0 %v1850
    %1994 = vmatprep.subr.bf16.mxu0 %v1845
    %1995 = vmatpush2.bf16.msra.mxu0 %v1844
    %1996 = vmatprep.subr.bf16.mxu0 %v1839
    %1997 = vmatpush2.bf16.msra.mxu0 %v1838
    %1998 = vmatprep.subr.bf16.mxu0 %v1833
    %1999 = vmatpush2.bf16.msra.mxu0 %v1832
    %2000 = vmatprep.subr.bf16.mxu0 %v1827
    %2001 = vmatpush2.bf16.msra.mxu0 %v1826
    %2002 = vmatprep.mubr.bf16.mxu0 %v690
    %2003 = vmatmul.mubr.bf16.gmra.mxu0 %v689
    %v2004 = vpop.f32.mrf.mxu0
    %v2005 = vadd.f32 %v1402, %v2004
    %v2006 = vpop.f32.mrf.mxu0
    %v2007 = vadd.f32 %v1404, %v2006
    %v2008 = vpop.f32.mrf.mxu0
    %v2009 = vpop.f32.mrf.mxu0
    %2010 = vdwg.mxu0
    %2011 = vmatprep.subr.bf16.mxu0 %v1823
    %2012 = vmatpush1.bf16.msra.mxu0 %v1822
    %2013 = vmatprep.subr.bf16.mxu0 %v1817
    %2014 = vmatpush1.bf16.msra.mxu0 %v1816
    %2015 = vmatprep.subr.bf16.mxu0 %v1811
    %2016 = vmatpush1.bf16.msra.mxu0 %v1810
    %2017 = vmatprep.subr.bf16.mxu0 %v1805
    %2018 = vmatpush1.bf16.msra.mxu0 %v1804
    %2019 = vmatprep.subr.bf16.mxu0 %v1799
    %2020 = vmatpush1.bf16.msra.mxu0 %v1798
    %2021 = vmatprep.subr.bf16.mxu0 %v1793
    %2022 = vmatpush1.bf16.msra.mxu0 %v1792
    %2023 = vmatprep.subr.bf16.mxu0 %v1787
    %2024 = vmatpush1.bf16.msra.mxu0 %v1786
    %2025 = vmatprep.subr.bf16.mxu0 %v1781
    %2026 = vmatpush1.bf16.msra.mxu0 %v1780
    %2027 = vmatprep.subr.bf16.mxu0 %v1871
    %2028 = vmatpush2.bf16.msra.mxu0 %v1870
    %2029 = vmatprep.subr.bf16.mxu0 %v1865
    %2030 = vmatpush2.bf16.msra.mxu0 %v1864
    %2031 = vmatprep.subr.bf16.mxu0 %v1859
    %2032 = vmatpush2.bf16.msra.mxu0 %v1858
    %2033 = vmatprep.subr.bf16.mxu0 %v1853
    %2034 = vmatpush2.bf16.msra.mxu0 %v1852
    %2035 = vmatprep.subr.bf16.mxu0 %v1847
    %2036 = vmatpush2.bf16.msra.mxu0 %v1846
    %2037 = vmatprep.subr.bf16.mxu0 %v1841
    %2038 = vmatpush2.bf16.msra.mxu0 %v1840
    %2039 = vmatprep.subr.bf16.mxu0 %v1835
    %2040 = vmatpush2.bf16.msra.mxu0 %v1834
    %2041 = vmatprep.subr.bf16.mxu0 %v1829
    %2042 = vmatpush2.bf16.msra.mxu0 %v1828
    %2043 = vmatprep.mubr.bf16.mxu0 %v690
    %2044 = vmatmul.mubr.bf16.gmra.mxu0 %v689
    %v2045 = vpop.f32.mrf.mxu0
    %v2046 = vadd.f32 %v1443, %v2045
    %v2047 = vpop.f32.mrf.mxu0
    %v2048 = vadd.f32 %v1445, %v2047
    %v2049 = vpop.f32.mrf.mxu0
    %v2050 = vpop.f32.mrf.mxu0
    %2051 = vdwg.mxu0
    %2052 = vmatprep.subr.bf16.mxu0 %v1825
    %2053 = vmatpush1.bf16.msra.mxu0 %v1824
    %2054 = vmatprep.subr.bf16.mxu0 %v1819
    %2055 = vmatpush1.bf16.msra.mxu0 %v1818
    %2056 = vmatprep.subr.bf16.mxu0 %v1813
    %2057 = vmatpush1.bf16.msra.mxu0 %v1812
    %2058 = vmatprep.subr.bf16.mxu0 %v1807
    %2059 = vmatpush1.bf16.msra.mxu0 %v1806
    %2060 = vmatprep.subr.bf16.mxu0 %v1801
    %2061 = vmatpush1.bf16.msra.mxu0 %v1800
    %2062 = vmatprep.subr.bf16.mxu0 %v1795
    %2063 = vmatpush1.bf16.msra.mxu0 %v1794
    %2064 = vmatprep.subr.bf16.mxu0 %v1789
    %2065 = vmatpush1.bf16.msra.mxu0 %v1788
    %2066 = vmatprep.subr.bf16.mxu0 %v1783
    %2067 = vmatpush1.bf16.msra.mxu0 %v1782
    %2068 = vmatprep.subr.bf16.mxu0 %v1873
    %2069 = vmatpush2.bf16.msra.mxu0 %v1872
    %2070 = vmatprep.subr.bf16.mxu0 %v1867
    %2071 = vmatpush2.bf16.msra.mxu0 %v1866
    %2072 = vmatprep.subr.bf16.mxu0 %v1861
    %2073 = vmatpush2.bf16.msra.mxu0 %v1860
    %2074 = vmatprep.subr.bf16.mxu0 %v1855
    %2075 = vmatpush2.bf16.msra.mxu0 %v1854
    %2076 = vmatprep.subr.bf16.mxu0 %v1849
    %2077 = vmatpush2.bf16.msra.mxu0 %v1848
    %2078 = vmatprep.subr.bf16.mxu0 %v1843
    %2079 = vmatpush2.bf16.msra.mxu0 %v1842
    %2080 = vmatprep.subr.bf16.mxu0 %v1837
    %2081 = vmatpush2.bf16.msra.mxu0 %v1836
    %2082 = vmatprep.subr.bf16.mxu0 %v1831
    %2083 = vmatpush2.bf16.msra.mxu0 %v1830
    %2084 = vmatprep.mubr.bf16.mxu0 %v690
    %2085 = vmatmul.mubr.bf16.gmra.mxu0 %v689
    %v2086 = vpop.f32.mrf.mxu0
    %v2087 = vadd.f32 %v1484, %v2086
    %v2088 = vpop.f32.mrf.mxu0
    %v2089 = vadd.f32 %v1486, %v2088
    %v2090 = vpop.f32.mrf.mxu0
    %v2091 = vpop.f32.mrf.mxu0
    %2092 = vdwg.mxu0
    %v2093 = vld [vmem:[#allocation2 + $0x20] sm:$0xff]
    %v2094 = vld [vmem:[#allocation2 + $0x28] sm:$0xff]
    %v2095 = vpack.c.bf16 %v2093, %v2093
    %v2096 = vpack.c.bf16 %v2094, %v2094
    %v2097 = vld [vmem:[#allocation5 + $0x600] sm:$0xff]
    %v2098 = vld [vmem:[#allocation5 + $0x608] sm:$0xff]
    %v2099 = vld [vmem:[#allocation5 + $0x610] sm:$0xff]
    %v2100 = vld [vmem:[#allocation5 + $0x618] sm:$0xff]
    %v2101 = vld [vmem:[#allocation5 + $0x620] sm:$0xff]
    %v2102 = vld [vmem:[#allocation5 + $0x628] sm:$0xff]
    %v2103 = vld [vmem:[#allocation5 + $0x630] sm:$0xff]
    %v2104 = vld [vmem:[#allocation5 + $0x638] sm:$0xff]
    %v2105 = vld [vmem:[#allocation5 + $0x640] sm:$0xff]
    %v2106 = vld [vmem:[#allocation5 + $0x648] sm:$0xff]
    %v2107 = vld [vmem:[#allocation5 + $0x650] sm:$0xff]
    %v2108 = vld [vmem:[#allocation5 + $0x658] sm:$0xff]
    %v2109 = vld [vmem:[#allocation5 + $0x660] sm:$0xff]
    %v2110 = vld [vmem:[#allocation5 + $0x668] sm:$0xff]
    %v2111 = vld [vmem:[#allocation5 + $0x670] sm:$0xff]
    %v2112 = vld [vmem:[#allocation5 + $0x678] sm:$0xff]
    %v2113 = vld [vmem:[#allocation5 + $0x680] sm:$0xff]
    %v2114 = vld [vmem:[#allocation5 + $0x688] sm:$0xff]
    %v2115 = vld [vmem:[#allocation5 + $0x690] sm:$0xff]
    %v2116 = vld [vmem:[#allocation5 + $0x698] sm:$0xff]
    %v2117 = vld [vmem:[#allocation5 + $0x6a0] sm:$0xff]
    %v2118 = vld [vmem:[#allocation5 + $0x6a8] sm:$0xff]
    %v2119 = vld [vmem:[#allocation5 + $0x6b0] sm:$0xff]
    %v2120 = vld [vmem:[#allocation5 + $0x6b8] sm:$0xff]
    %v2121 = vld [vmem:[#allocation5 + $0x6c0] sm:$0xff]
    %v2122 = vld [vmem:[#allocation5 + $0x6c8] sm:$0xff]
    %v2123 = vld [vmem:[#allocation5 + $0x6d0] sm:$0xff]
    %v2124 = vld [vmem:[#allocation5 + $0x6d8] sm:$0xff]
    %v2125 = vld [vmem:[#allocation5 + $0x6e0] sm:$0xff]
    %v2126 = vld [vmem:[#allocation5 + $0x6e8] sm:$0xff]
    %v2127 = vld [vmem:[#allocation5 + $0x6f0] sm:$0xff]
    %v2128 = vld [vmem:[#allocation5 + $0x6f8] sm:$0xff]
    %v2129 = vld [vmem:[#allocation5 + $0x700] sm:$0xff]
    %v2130 = vld [vmem:[#allocation5 + $0x708] sm:$0xff]
    %v2131 = vld [vmem:[#allocation5 + $0x710] sm:$0xff]
    %v2132 = vld [vmem:[#allocation5 + $0x718] sm:$0xff]
    %v2133 = vld [vmem:[#allocation5 + $0x720] sm:$0xff]
    %v2134 = vld [vmem:[#allocation5 + $0x728] sm:$0xff]
    %v2135 = vld [vmem:[#allocation5 + $0x730] sm:$0xff]
    %v2136 = vld [vmem:[#allocation5 + $0x738] sm:$0xff]
    %v2137 = vld [vmem:[#allocation5 + $0x740] sm:$0xff]
    %v2138 = vld [vmem:[#allocation5 + $0x748] sm:$0xff]
    %v2139 = vld [vmem:[#allocation5 + $0x750] sm:$0xff]
    %v2140 = vld [vmem:[#allocation5 + $0x758] sm:$0xff]
    %v2141 = vld [vmem:[#allocation5 + $0x760] sm:$0xff]
    %v2142 = vld [vmem:[#allocation5 + $0x768] sm:$0xff]
    %v2143 = vld [vmem:[#allocation5 + $0x770] sm:$0xff]
    %v2144 = vld [vmem:[#allocation5 + $0x778] sm:$0xff]
    %v2145 = vld [vmem:[#allocation5 + $0x780] sm:$0xff]
    %v2146 = vld [vmem:[#allocation5 + $0x788] sm:$0xff]
    %v2147 = vld [vmem:[#allocation5 + $0x790] sm:$0xff]
    %v2148 = vld [vmem:[#allocation5 + $0x798] sm:$0xff]
    %v2149 = vld [vmem:[#allocation5 + $0x7a0] sm:$0xff]
    %v2150 = vld [vmem:[#allocation5 + $0x7a8] sm:$0xff]
    %v2151 = vld [vmem:[#allocation5 + $0x7b0] sm:$0xff]
    %v2152 = vld [vmem:[#allocation5 + $0x7b8] sm:$0xff]
    %v2153 = vld [vmem:[#allocation5 + $0x7c0] sm:$0xff]
    %v2154 = vld [vmem:[#allocation5 + $0x7c8] sm:$0xff]
    %v2155 = vld [vmem:[#allocation5 + $0x7d0] sm:$0xff]
    %v2156 = vld [vmem:[#allocation5 + $0x7d8] sm:$0xff]
    %v2157 = vld [vmem:[#allocation5 + $0x7e0] sm:$0xff]
    %v2158 = vld [vmem:[#allocation5 + $0x7e8] sm:$0xff]
    %v2159 = vld [vmem:[#allocation5 + $0x7f0] sm:$0xff]
    %v2160 = vld [vmem:[#allocation5 + $0x7f8] sm:$0xff]
    %v2161 = vld [vmem:[#allocation5 + $0x800] sm:$0xff]
    %v2162 = vld [vmem:[#allocation5 + $0x808] sm:$0xff]
    %v2163 = vld [vmem:[#allocation5 + $0x810] sm:$0xff]
    %v2164 = vld [vmem:[#allocation5 + $0x818] sm:$0xff]
    %v2165 = vld [vmem:[#allocation5 + $0x820] sm:$0xff]
    %v2166 = vld [vmem:[#allocation5 + $0x828] sm:$0xff]
    %v2167 = vld [vmem:[#allocation5 + $0x830] sm:$0xff]
    %v2168 = vld [vmem:[#allocation5 + $0x838] sm:$0xff]
    %v2169 = vld [vmem:[#allocation5 + $0x840] sm:$0xff]
    %v2170 = vld [vmem:[#allocation5 + $0x848] sm:$0xff]
    %v2171 = vld [vmem:[#allocation5 + $0x850] sm:$0xff]
    %v2172 = vld [vmem:[#allocation5 + $0x858] sm:$0xff]
    %v2173 = vld [vmem:[#allocation5 + $0x860] sm:$0xff]
    %v2174 = vld [vmem:[#allocation5 + $0x868] sm:$0xff]
    %v2175 = vld [vmem:[#allocation5 + $0x870] sm:$0xff]
    %v2176 = vld [vmem:[#allocation5 + $0x878] sm:$0xff]
    %v2177 = vld [vmem:[#allocation5 + $0x880] sm:$0xff]
    %v2178 = vld [vmem:[#allocation5 + $0x888] sm:$0xff]
    %v2179 = vld [vmem:[#allocation5 + $0x890] sm:$0xff]
    %v2180 = vld [vmem:[#allocation5 + $0x898] sm:$0xff]
    %v2181 = vld [vmem:[#allocation5 + $0x8a0] sm:$0xff]
    %v2182 = vld [vmem:[#allocation5 + $0x8a8] sm:$0xff]
    %v2183 = vld [vmem:[#allocation5 + $0x8b0] sm:$0xff]
    %v2184 = vld [vmem:[#allocation5 + $0x8b8] sm:$0xff]
    %v2185 = vld [vmem:[#allocation5 + $0x8c0] sm:$0xff]
    %v2186 = vld [vmem:[#allocation5 + $0x8c8] sm:$0xff]
    %v2187 = vld [vmem:[#allocation5 + $0x8d0] sm:$0xff]
    %v2188 = vld [vmem:[#allocation5 + $0x8d8] sm:$0xff]
    %v2189 = vld [vmem:[#allocation5 + $0x8e0] sm:$0xff]
    %v2190 = vld [vmem:[#allocation5 + $0x8e8] sm:$0xff]
    %v2191 = vld [vmem:[#allocation5 + $0x8f0] sm:$0xff]
    %v2192 = vld [vmem:[#allocation5 + $0x8f8] sm:$0xff]
    %v2289 = vunpack.c.l.b16 %v2097
    %v2290 = vunpack.c.h.b16 %v2097
    %v2291 = vunpack.c.l.b16 %v2098
    %v2292 = vunpack.c.h.b16 %v2098
    %v2293 = vunpack.c.l.b16 %v2099
    %v2294 = vunpack.c.h.b16 %v2099
    %v2295 = vunpack.c.l.b16 %v2100
    %v2296 = vunpack.c.h.b16 %v2100
    %v2297 = vunpack.c.l.b16 %v2101
    %v2298 = vunpack.c.h.b16 %v2101
    %v2299 = vunpack.c.l.b16 %v2102
    %v2300 = vunpack.c.h.b16 %v2102
    %v2301 = vunpack.c.l.b16 %v2103
    %v2302 = vunpack.c.h.b16 %v2103
    %v2303 = vunpack.c.l.b16 %v2104
    %v2304 = vunpack.c.h.b16 %v2104
    %v2305 = vunpack.c.l.b16 %v2105
    %v2306 = vunpack.c.h.b16 %v2105
    %v2307 = vunpack.c.l.b16 %v2106
    %v2308 = vunpack.c.h.b16 %v2106
    %v2309 = vunpack.c.l.b16 %v2107
    %v2310 = vunpack.c.h.b16 %v2107
    %v2311 = vunpack.c.l.b16 %v2108
    %v2312 = vunpack.c.h.b16 %v2108
    %v2313 = vunpack.c.l.b16 %v2109
    %v2314 = vunpack.c.h.b16 %v2109
    %v2315 = vunpack.c.l.b16 %v2110
    %v2316 = vunpack.c.h.b16 %v2110
    %v2317 = vunpack.c.l.b16 %v2111
    %v2318 = vunpack.c.h.b16 %v2111
    %v2319 = vunpack.c.l.b16 %v2112
    %v2320 = vunpack.c.h.b16 %v2112
    %v2321 = vunpack.c.l.b16 %v2113
    %v2322 = vunpack.c.h.b16 %v2113
    %v2323 = vunpack.c.l.b16 %v2114
    %v2324 = vunpack.c.h.b16 %v2114
    %v2325 = vunpack.c.l.b16 %v2115
    %v2326 = vunpack.c.h.b16 %v2115
    %v2327 = vunpack.c.l.b16 %v2116
    %v2328 = vunpack.c.h.b16 %v2116
    %v2329 = vunpack.c.l.b16 %v2117
    %v2330 = vunpack.c.h.b16 %v2117
    %v2331 = vunpack.c.l.b16 %v2118
    %v2332 = vunpack.c.h.b16 %v2118
    %v2333 = vunpack.c.l.b16 %v2119
    %v2334 = vunpack.c.h.b16 %v2119
    %v2335 = vunpack.c.l.b16 %v2120
    %v2336 = vunpack.c.h.b16 %v2120
    %v2337 = vunpack.c.l.b16 %v2121
    %v2338 = vunpack.c.h.b16 %v2121
    %v2339 = vunpack.c.l.b16 %v2122
    %v2340 = vunpack.c.h.b16 %v2122
    %v2341 = vunpack.c.l.b16 %v2123
    %v2342 = vunpack.c.h.b16 %v2123
    %v2343 = vunpack.c.l.b16 %v2124
    %v2344 = vunpack.c.h.b16 %v2124
    %v2345 = vunpack.c.l.b16 %v2125
    %v2346 = vunpack.c.h.b16 %v2125
    %v2347 = vunpack.c.l.b16 %v2126
    %v2348 = vunpack.c.h.b16 %v2126
    %v2349 = vunpack.c.l.b16 %v2127
    %v2350 = vunpack.c.h.b16 %v2127
    %v2351 = vunpack.c.l.b16 %v2128
    %v2352 = vunpack.c.h.b16 %v2128
    %v2353 = vunpack.c.l.b16 %v2129
    %v2354 = vunpack.c.h.b16 %v2129
    %v2355 = vunpack.c.l.b16 %v2130
    %v2356 = vunpack.c.h.b16 %v2130
    %v2357 = vunpack.c.l.b16 %v2131
    %v2358 = vunpack.c.h.b16 %v2131
    %v2359 = vunpack.c.l.b16 %v2132
    %v2360 = vunpack.c.h.b16 %v2132
    %v2361 = vunpack.c.l.b16 %v2133
    %v2362 = vunpack.c.h.b16 %v2133
    %v2363 = vunpack.c.l.b16 %v2134
    %v2364 = vunpack.c.h.b16 %v2134
    %v2365 = vunpack.c.l.b16 %v2135
    %v2366 = vunpack.c.h.b16 %v2135
    %v2367 = vunpack.c.l.b16 %v2136
    %v2368 = vunpack.c.h.b16 %v2136
    %v2369 = vunpack.c.l.b16 %v2137
    %v2370 = vunpack.c.h.b16 %v2137
    %v2371 = vunpack.c.l.b16 %v2138
    %v2372 = vunpack.c.h.b16 %v2138
    %v2373 = vunpack.c.l.b16 %v2139
    %v2374 = vunpack.c.h.b16 %v2139
    %v2375 = vunpack.c.l.b16 %v2140
    %v2376 = vunpack.c.h.b16 %v2140
    %v2377 = vunpack.c.l.b16 %v2141
    %v2378 = vunpack.c.h.b16 %v2141
    %v2379 = vunpack.c.l.b16 %v2142
    %v2380 = vunpack.c.h.b16 %v2142
    %v2381 = vunpack.c.l.b16 %v2143
    %v2382 = vunpack.c.h.b16 %v2143
    %v2383 = vunpack.c.l.b16 %v2144
    %v2384 = vunpack.c.h.b16 %v2144
    %v2385 = vunpack.c.l.b16 %v2145
    %v2386 = vunpack.c.h.b16 %v2145
    %v2387 = vunpack.c.l.b16 %v2146
    %v2388 = vunpack.c.h.b16 %v2146
    %v2389 = vunpack.c.l.b16 %v2147
    %v2390 = vunpack.c.h.b16 %v2147
    %v2391 = vunpack.c.l.b16 %v2148
    %v2392 = vunpack.c.h.b16 %v2148
    %v2393 = vunpack.c.l.b16 %v2149
    %v2394 = vunpack.c.h.b16 %v2149
    %v2395 = vunpack.c.l.b16 %v2150
    %v2396 = vunpack.c.h.b16 %v2150
    %v2397 = vunpack.c.l.b16 %v2151
    %v2398 = vunpack.c.h.b16 %v2151
    %v2399 = vunpack.c.l.b16 %v2152
    %v2400 = vunpack.c.h.b16 %v2152
    %v2401 = vunpack.c.l.b16 %v2153
    %v2402 = vunpack.c.h.b16 %v2153
    %v2403 = vunpack.c.l.b16 %v2154
    %v2404 = vunpack.c.h.b16 %v2154
    %v2405 = vunpack.c.l.b16 %v2155
    %v2406 = vunpack.c.h.b16 %v2155
    %v2407 = vunpack.c.l.b16 %v2156
    %v2408 = vunpack.c.h.b16 %v2156
    %v2409 = vunpack.c.l.b16 %v2157
    %v2410 = vunpack.c.h.b16 %v2157
    %v2411 = vunpack.c.l.b16 %v2158
    %v2412 = vunpack.c.h.b16 %v2158
    %v2413 = vunpack.c.l.b16 %v2159
    %v2414 = vunpack.c.h.b16 %v2159
    %v2415 = vunpack.c.l.b16 %v2160
    %v2416 = vunpack.c.h.b16 %v2160
    %v2417 = vunpack.c.l.b16 %v2161
    %v2418 = vunpack.c.h.b16 %v2161
    %v2419 = vunpack.c.l.b16 %v2162
    %v2420 = vunpack.c.h.b16 %v2162
    %v2421 = vunpack.c.l.b16 %v2163
    %v2422 = vunpack.c.h.b16 %v2163
    %v2423 = vunpack.c.l.b16 %v2164
    %v2424 = vunpack.c.h.b16 %v2164
    %v2425 = vunpack.c.l.b16 %v2165
    %v2426 = vunpack.c.h.b16 %v2165
    %v2427 = vunpack.c.l.b16 %v2166
    %v2428 = vunpack.c.h.b16 %v2166
    %v2429 = vunpack.c.l.b16 %v2167
    %v2430 = vunpack.c.h.b16 %v2167
    %v2431 = vunpack.c.l.b16 %v2168
    %v2432 = vunpack.c.h.b16 %v2168
    %v2433 = vunpack.c.l.b16 %v2169
    %v2434 = vunpack.c.h.b16 %v2169
    %v2435 = vunpack.c.l.b16 %v2170
    %v2436 = vunpack.c.h.b16 %v2170
    %v2437 = vunpack.c.l.b16 %v2171
    %v2438 = vunpack.c.h.b16 %v2171
    %v2439 = vunpack.c.l.b16 %v2172
    %v2440 = vunpack.c.h.b16 %v2172
    %v2441 = vunpack.c.l.b16 %v2173
    %v2442 = vunpack.c.h.b16 %v2173
    %v2443 = vunpack.c.l.b16 %v2174
    %v2444 = vunpack.c.h.b16 %v2174
    %v2445 = vunpack.c.l.b16 %v2175
    %v2446 = vunpack.c.h.b16 %v2175
    %v2447 = vunpack.c.l.b16 %v2176
    %v2448 = vunpack.c.h.b16 %v2176
    %v2449 = vunpack.c.l.b16 %v2177
    %v2450 = vunpack.c.h.b16 %v2177
    %v2451 = vunpack.c.l.b16 %v2178
    %v2452 = vunpack.c.h.b16 %v2178
    %v2453 = vunpack.c.l.b16 %v2179
    %v2454 = vunpack.c.h.b16 %v2179
    %v2455 = vunpack.c.l.b16 %v2180
    %v2456 = vunpack.c.h.b16 %v2180
    %v2457 = vunpack.c.l.b16 %v2181
    %v2458 = vunpack.c.h.b16 %v2181
    %v2459 = vunpack.c.l.b16 %v2182
    %v2460 = vunpack.c.h.b16 %v2182
    %v2461 = vunpack.c.l.b16 %v2183
    %v2462 = vunpack.c.h.b16 %v2183
    %v2463 = vunpack.c.l.b16 %v2184
    %v2464 = vunpack.c.h.b16 %v2184
    %v2465 = vunpack.c.l.b16 %v2185
    %v2466 = vunpack.c.h.b16 %v2185
    %v2467 = vunpack.c.l.b16 %v2186
    %v2468 = vunpack.c.h.b16 %v2186
    %v2469 = vunpack.c.l.b16 %v2187
    %v2470 = vunpack.c.h.b16 %v2187
    %v2471 = vunpack.c.l.b16 %v2188
    %v2472 = vunpack.c.h.b16 %v2188
    %v2473 = vunpack.c.l.b16 %v2189
    %v2474 = vunpack.c.h.b16 %v2189
    %v2475 = vunpack.c.l.b16 %v2190
    %v2476 = vunpack.c.h.b16 %v2190
    %v2477 = vunpack.c.l.b16 %v2191
    %v2478 = vunpack.c.h.b16 %v2191
    %v2479 = vunpack.c.l.b16 %v2192
    %v2480 = vunpack.c.h.b16 %v2192
    %v2481 = vpack.c.b16 %v2295, %v2289
    %v2482 = vpack.c.b16 %v2296, %v2290
    %v2483 = vpack.c.b16 %v2297, %v2291
    %v2484 = vpack.c.b16 %v2298, %v2292
    %v2485 = vpack.c.b16 %v2299, %v2293
    %v2486 = vpack.c.b16 %v2300, %v2294
    %v2487 = vpack.c.b16 %v2307, %v2301
    %v2488 = vpack.c.b16 %v2308, %v2302
    %v2489 = vpack.c.b16 %v2309, %v2303
    %v2490 = vpack.c.b16 %v2310, %v2304
    %v2491 = vpack.c.b16 %v2311, %v2305
    %v2492 = vpack.c.b16 %v2312, %v2306
    %v2493 = vpack.c.b16 %v2319, %v2313
    %v2494 = vpack.c.b16 %v2320, %v2314
    %v2495 = vpack.c.b16 %v2321, %v2315
    %v2496 = vpack.c.b16 %v2322, %v2316
    %v2497 = vpack.c.b16 %v2323, %v2317
    %v2498 = vpack.c.b16 %v2324, %v2318
    %v2499 = vpack.c.b16 %v2331, %v2325
    %v2500 = vpack.c.b16 %v2332, %v2326
    %v2501 = vpack.c.b16 %v2333, %v2327
    %v2502 = vpack.c.b16 %v2334, %v2328
    %v2503 = vpack.c.b16 %v2335, %v2329
    %v2504 = vpack.c.b16 %v2336, %v2330
    %v2505 = vpack.c.b16 %v2343, %v2337
    %v2506 = vpack.c.b16 %v2344, %v2338
    %v2507 = vpack.c.b16 %v2345, %v2339
    %v2508 = vpack.c.b16 %v2346, %v2340
    %v2509 = vpack.c.b16 %v2347, %v2341
    %v2510 = vpack.c.b16 %v2348, %v2342
    %v2511 = vpack.c.b16 %v2355, %v2349
    %v2512 = vpack.c.b16 %v2356, %v2350
    %v2513 = vpack.c.b16 %v2357, %v2351
    %v2514 = vpack.c.b16 %v2358, %v2352
    %v2515 = vpack.c.b16 %v2359, %v2353
    %v2516 = vpack.c.b16 %v2360, %v2354
    %v2517 = vpack.c.b16 %v2367, %v2361
    %v2518 = vpack.c.b16 %v2368, %v2362
    %v2519 = vpack.c.b16 %v2369, %v2363
    %v2520 = vpack.c.b16 %v2370, %v2364
    %v2521 = vpack.c.b16 %v2371, %v2365
    %v2522 = vpack.c.b16 %v2372, %v2366
    %v2523 = vpack.c.b16 %v2379, %v2373
    %v2524 = vpack.c.b16 %v2380, %v2374
    %v2525 = vpack.c.b16 %v2381, %v2375
    %v2526 = vpack.c.b16 %v2382, %v2376
    %v2527 = vpack.c.b16 %v2383, %v2377
    %v2528 = vpack.c.b16 %v2384, %v2378
    %v2529 = vpack.c.b16 %v2391, %v2385
    %v2530 = vpack.c.b16 %v2392, %v2386
    %v2531 = vpack.c.b16 %v2393, %v2387
    %v2532 = vpack.c.b16 %v2394, %v2388
    %v2533 = vpack.c.b16 %v2395, %v2389
    %v2534 = vpack.c.b16 %v2396, %v2390
    %v2535 = vpack.c.b16 %v2403, %v2397
    %v2536 = vpack.c.b16 %v2404, %v2398
    %v2537 = vpack.c.b16 %v2405, %v2399
    %v2538 = vpack.c.b16 %v2406, %v2400
    %v2539 = vpack.c.b16 %v2407, %v2401
    %v2540 = vpack.c.b16 %v2408, %v2402
    %v2541 = vpack.c.b16 %v2415, %v2409
    %v2542 = vpack.c.b16 %v2416, %v2410
    %v2543 = vpack.c.b16 %v2417, %v2411
    %v2544 = vpack.c.b16 %v2418, %v2412
    %v2545 = vpack.c.b16 %v2419, %v2413
    %v2546 = vpack.c.b16 %v2420, %v2414
    %v2547 = vpack.c.b16 %v2427, %v2421
    %v2548 = vpack.c.b16 %v2428, %v2422
    %v2549 = vpack.c.b16 %v2429, %v2423
    %v2550 = vpack.c.b16 %v2430, %v2424
    %v2551 = vpack.c.b16 %v2431, %v2425
    %v2552 = vpack.c.b16 %v2432, %v2426
    %v2553 = vpack.c.b16 %v2439, %v2433
    %v2554 = vpack.c.b16 %v2440, %v2434
    %v2555 = vpack.c.b16 %v2441, %v2435
    %v2556 = vpack.c.b16 %v2442, %v2436
    %v2557 = vpack.c.b16 %v2443, %v2437
    %v2558 = vpack.c.b16 %v2444, %v2438
    %v2559 = vpack.c.b16 %v2451, %v2445
    %v2560 = vpack.c.b16 %v2452, %v2446
    %v2561 = vpack.c.b16 %v2453, %v2447
    %v2562 = vpack.c.b16 %v2454, %v2448
    %v2563 = vpack.c.b16 %v2455, %v2449
    %v2564 = vpack.c.b16 %v2456, %v2450
    %v2565 = vpack.c.b16 %v2463, %v2457
    %v2566 = vpack.c.b16 %v2464, %v2458
    %v2567 = vpack.c.b16 %v2465, %v2459
    %v2568 = vpack.c.b16 %v2466, %v2460
    %v2569 = vpack.c.b16 %v2467, %v2461
    %v2570 = vpack.c.b16 %v2468, %v2462
    %v2571 = vpack.c.b16 %v2475, %v2469
    %v2572 = vpack.c.b16 %v2476, %v2470
    %v2573 = vpack.c.b16 %v2477, %v2471
    %v2574 = vpack.c.b16 %v2478, %v2472
    %v2575 = vpack.c.b16 %v2479, %v2473
    %v2576 = vpack.c.b16 %v2480, %v2474
    %2673 = vmatprep.subr.bf16.mxu0 %v2524
    %2674 = vmatpush1.bf16.msra.mxu0 %v2523
    %2675 = vmatprep.subr.bf16.mxu0 %v2518
    %2676 = vmatpush1.bf16.msra.mxu0 %v2517
    %2677 = vmatprep.subr.bf16.mxu0 %v2512
    %2678 = vmatpush1.bf16.msra.mxu0 %v2511
    %2679 = vmatprep.subr.bf16.mxu0 %v2506
    %2680 = vmatpush1.bf16.msra.mxu0 %v2505
    %2681 = vmatprep.subr.bf16.mxu0 %v2500
    %2682 = vmatpush1.bf16.msra.mxu0 %v2499
    %2683 = vmatprep.subr.bf16.mxu0 %v2494
    %2684 = vmatpush1.bf16.msra.mxu0 %v2493
    %2685 = vmatprep.subr.bf16.mxu0 %v2488
    %2686 = vmatpush1.bf16.msra.mxu0 %v2487
    %2687 = vmatprep.subr.bf16.mxu0 %v2482
    %2688 = vmatpush1.bf16.msra.mxu0 %v2481
    %2689 = vmatprep.subr.bf16.mxu0 %v2572
    %2690 = vmatpush2.bf16.msra.mxu0 %v2571
    %2691 = vmatprep.subr.bf16.mxu0 %v2566
    %2692 = vmatpush2.bf16.msra.mxu0 %v2565
    %2693 = vmatprep.subr.bf16.mxu0 %v2560
    %2694 = vmatpush2.bf16.msra.mxu0 %v2559
    %2695 = vmatprep.subr.bf16.mxu0 %v2554
    %2696 = vmatpush2.bf16.msra.mxu0 %v2553
    %2697 = vmatprep.subr.bf16.mxu0 %v2548
    %2698 = vmatpush2.bf16.msra.mxu0 %v2547
    %2699 = vmatprep.subr.bf16.mxu0 %v2542
    %2700 = vmatpush2.bf16.msra.mxu0 %v2541
    %2701 = vmatprep.subr.bf16.mxu0 %v2536
    %2702 = vmatpush2.bf16.msra.mxu0 %v2535
    %2703 = vmatprep.subr.bf16.mxu0 %v2530
    %2704 = vmatpush2.bf16.msra.mxu0 %v2529
    %2705 = vmatprep.mubr.bf16.mxu0 %v2096
    %2706 = vmatmul.mubr.bf16.gmra.mxu0 %v2095
    %v2707 = vpop.f32.mrf.mxu0
    %v2708 = vadd.f32 0.0, %v2707
    %v2709 = vpop.f32.mrf.mxu0
    %v2710 = vadd.f32 0.0, %v2709
    %v2711 = vpop.f32.mrf.mxu0
    %v2712 = vpop.f32.mrf.mxu0
    %2713 = vdwg.mxu0
    %2714 = vmatprep.subr.bf16.mxu0 %v2526
    %2715 = vmatpush1.bf16.msra.mxu0 %v2525
    %2716 = vmatprep.subr.bf16.mxu0 %v2520
    %2717 = vmatpush1.bf16.msra.mxu0 %v2519
    %2718 = vmatprep.subr.bf16.mxu0 %v2514
    %2719 = vmatpush1.bf16.msra.mxu0 %v2513
    %2720 = vmatprep.subr.bf16.mxu0 %v2508
    %2721 = vmatpush1.bf16.msra.mxu0 %v2507
    %2722 = vmatprep.subr.bf16.mxu0 %v2502
    %2723 = vmatpush1.bf16.msra.mxu0 %v2501
    %2724 = vmatprep.subr.bf16.mxu0 %v2496
    %2725 = vmatpush1.bf16.msra.mxu0 %v2495
    %2726 = vmatprep.subr.bf16.mxu0 %v2490
    %2727 = vmatpush1.bf16.msra.mxu0 %v2489
    %2728 = vmatprep.subr.bf16.mxu0 %v2484
    %2729 = vmatpush1.bf16.msra.mxu0 %v2483
    %2730 = vmatprep.subr.bf16.mxu0 %v2574
    %2731 = vmatpush2.bf16.msra.mxu0 %v2573
    %2732 = vmatprep.subr.bf16.mxu0 %v2568
    %2733 = vmatpush2.bf16.msra.mxu0 %v2567
    %2734 = vmatprep.subr.bf16.mxu0 %v2562
    %2735 = vmatpush2.bf16.msra.mxu0 %v2561
    %2736 = vmatprep.subr.bf16.mxu0 %v2556
    %2737 = vmatpush2.bf16.msra.mxu0 %v2555
    %2738 = vmatprep.subr.bf16.mxu0 %v2550
    %2739 = vmatpush2.bf16.msra.mxu0 %v2549
    %2740 = vmatprep.subr.bf16.mxu0 %v2544
    %2741 = vmatpush2.bf16.msra.mxu0 %v2543
    %2742 = vmatprep.subr.bf16.mxu0 %v2538
    %2743 = vmatpush2.bf16.msra.mxu0 %v2537
    %2744 = vmatprep.subr.bf16.mxu0 %v2532
    %2745 = vmatpush2.bf16.msra.mxu0 %v2531
    %2746 = vmatprep.mubr.bf16.mxu0 %v2096
    %2747 = vmatmul.mubr.bf16.gmra.mxu0 %v2095
    %v2748 = vpop.f32.mrf.mxu0
    %v2749 = vadd.f32 0.0, %v2748
    %v2750 = vpop.f32.mrf.mxu0
    %v2751 = vadd.f32 0.0, %v2750
    %v2752 = vpop.f32.mrf.mxu0
    %v2753 = vpop.f32.mrf.mxu0
    %2754 = vdwg.mxu0
    %2755 = vmatprep.subr.bf16.mxu0 %v2528
    %2756 = vmatpush1.bf16.msra.mxu0 %v2527
    %2757 = vmatprep.subr.bf16.mxu0 %v2522
    %2758 = vmatpush1.bf16.msra.mxu0 %v2521
    %2759 = vmatprep.subr.bf16.mxu0 %v2516
    %2760 = vmatpush1.bf16.msra.mxu0 %v2515
    %2761 = vmatprep.subr.bf16.mxu0 %v2510
    %2762 = vmatpush1.bf16.msra.mxu0 %v2509
    %2763 = vmatprep.subr.bf16.mxu0 %v2504
    %2764 = vmatpush1.bf16.msra.mxu0 %v2503
    %2765 = vmatprep.subr.bf16.mxu0 %v2498
    %2766 = vmatpush1.bf16.msra.mxu0 %v2497
    %2767 = vmatprep.subr.bf16.mxu0 %v2492
    %2768 = vmatpush1.bf16.msra.mxu0 %v2491
    %2769 = vmatprep.subr.bf16.mxu0 %v2486
    %2770 = vmatpush1.bf16.msra.mxu0 %v2485
    %2771 = vmatprep.subr.bf16.mxu0 %v2576
    %2772 = vmatpush2.bf16.msra.mxu0 %v2575
    %2773 = vmatprep.subr.bf16.mxu0 %v2570
    %2774 = vmatpush2.bf16.msra.mxu0 %v2569
    %2775 = vmatprep.subr.bf16.mxu0 %v2564
    %2776 = vmatpush2.bf16.msra.mxu0 %v2563
    %2777 = vmatprep.subr.bf16.mxu0 %v2558
    %2778 = vmatpush2.bf16.msra.mxu0 %v2557
    %2779 = vmatprep.subr.bf16.mxu0 %v2552
    %2780 = vmatpush2.bf16.msra.mxu0 %v2551
    %2781 = vmatprep.subr.bf16.mxu0 %v2546
    %2782 = vmatpush2.bf16.msra.mxu0 %v2545
    %2783 = vmatprep.subr.bf16.mxu0 %v2540
    %2784 = vmatpush2.bf16.msra.mxu0 %v2539
    %2785 = vmatprep.subr.bf16.mxu0 %v2534
    %2786 = vmatpush2.bf16.msra.mxu0 %v2533
    %2787 = vmatprep.mubr.bf16.mxu0 %v2096
    %2788 = vmatmul.mubr.bf16.gmra.mxu0 %v2095
    %v2789 = vpop.f32.mrf.mxu0
    %v2790 = vadd.f32 0.0, %v2789
    %v2791 = vpop.f32.mrf.mxu0
    %v2792 = vadd.f32 0.0, %v2791
    %v2793 = vpop.f32.mrf.mxu0
    %v2794 = vpop.f32.mrf.mxu0
    %2795 = vdwg.mxu0
    %v2796 = vadd.f32 %v2005, %v2708
    %v2797 = vadd.f32 %v2007, %v2710
    %v2798 = vadd.f32 %v2046, %v2749
    %v2799 = vadd.f32 %v2048, %v2751
    %v2800 = vadd.f32 %v2087, %v2790
    %v2801 = vadd.f32 %v2089, %v2792
    %v2802 = vld [vmem:[#allocation2 + $0x30] sm:$0xff]
    %v2803 = vld [vmem:[#allocation2 + $0x38] sm:$0xff]
    %v2804 = vpack.c.bf16 %v2802, %v2802
    %v2805 = vpack.c.bf16 %v2803, %v2803
    %v2806 = vld [vmem:[#allocation5 + $0x900] sm:$0xff]
    %v2807 = vld [vmem:[#allocation5 + $0x908] sm:$0xff]
    %v2808 = vld [vmem:[#allocation5 + $0x910] sm:$0xff]
    %v2809 = vld [vmem:[#allocation5 + $0x918] sm:$0xff]
    %v2810 = vld [vmem:[#allocation5 + $0x920] sm:$0xff]
    %v2811 = vld [vmem:[#allocation5 + $0x928] sm:$0xff]
    %v2812 = vld [vmem:[#allocation5 + $0x930] sm:$0xff]
    %v2813 = vld [vmem:[#allocation5 + $0x938] sm:$0xff]
    %v2814 = vld [vmem:[#allocation5 + $0x940] sm:$0xff]
    %v2815 = vld [vmem:[#allocation5 + $0x948] sm:$0xff]
    %v2816 = vld [vmem:[#allocation5 + $0x950] sm:$0xff]
    %v2817 = vld [vmem:[#allocation5 + $0x958] sm:$0xff]
    %v2818 = vld [vmem:[#allocation5 + $0x960] sm:$0xff]
    %v2819 = vld [vmem:[#allocation5 + $0x968] sm:$0xff]
    %v2820 = vld [vmem:[#allocation5 + $0x970] sm:$0xff]
    %v2821 = vld [vmem:[#allocation5 + $0x978] sm:$0xff]
    %v2822 = vld [vmem:[#allocation5 + $0x980] sm:$0xff]
    %v2823 = vld [vmem:[#allocation5 + $0x988] sm:$0xff]
    %v2824 = vld [vmem:[#allocation5 + $0x990] sm:$0xff]
    %v2825 = vld [vmem:[#allocation5 + $0x998] sm:$0xff]
    %v2826 = vld [vmem:[#allocation5 + $0x9a0] sm:$0xff]
    %v2827 = vld [vmem:[#allocation5 + $0x9a8] sm:$0xff]
    %v2828 = vld [vmem:[#allocation5 + $0x9b0] sm:$0xff]
    %v2829 = vld [vmem:[#allocation5 + $0x9b8] sm:$0xff]
    %v2830 = vld [vmem:[#allocation5 + $0x9c0] sm:$0xff]
    %v2831 = vld [vmem:[#allocation5 + $0x9c8] sm:$0xff]
    %v2832 = vld [vmem:[#allocation5 + $0x9d0] sm:$0xff]
    %v2833 = vld [vmem:[#allocation5 + $0x9d8] sm:$0xff]
    %v2834 = vld [vmem:[#allocation5 + $0x9e0] sm:$0xff]
    %v2835 = vld [vmem:[#allocation5 + $0x9e8] sm:$0xff]
    %v2836 = vld [vmem:[#allocation5 + $0x9f0] sm:$0xff]
    %v2837 = vld [vmem:[#allocation5 + $0x9f8] sm:$0xff]
    %v2838 = vld [vmem:[#allocation5 + $0xa00] sm:$0xff]
    %v2839 = vld [vmem:[#allocation5 + $0xa08] sm:$0xff]
    %v2840 = vld [vmem:[#allocation5 + $0xa10] sm:$0xff]
    %v2841 = vld [vmem:[#allocation5 + $0xa18] sm:$0xff]
    %v2842 = vld [vmem:[#allocation5 + $0xa20] sm:$0xff]
    %v2843 = vld [vmem:[#allocation5 + $0xa28] sm:$0xff]
    %v2844 = vld [vmem:[#allocation5 + $0xa30] sm:$0xff]
    %v2845 = vld [vmem:[#allocation5 + $0xa38] sm:$0xff]
    %v2846 = vld [vmem:[#allocation5 + $0xa40] sm:$0xff]
    %v2847 = vld [vmem:[#allocation5 + $0xa48] sm:$0xff]
    %v2848 = vld [vmem:[#allocation5 + $0xa50] sm:$0xff]
    %v2849 = vld [vmem:[#allocation5 + $0xa58] sm:$0xff]
    %v2850 = vld [vmem:[#allocation5 + $0xa60] sm:$0xff]
    %v2851 = vld [vmem:[#allocation5 + $0xa68] sm:$0xff]
    %v2852 = vld [vmem:[#allocation5 + $0xa70] sm:$0xff]
    %v2853 = vld [vmem:[#allocation5 + $0xa78] sm:$0xff]
    %v2854 = vld [vmem:[#allocation5 + $0xa80] sm:$0xff]
    %v2855 = vld [vmem:[#allocation5 + $0xa88] sm:$0xff]
    %v2856 = vld [vmem:[#allocation5 + $0xa90] sm:$0xff]
    %v2857 = vld [vmem:[#allocation5 + $0xa98] sm:$0xff]
    %v2858 = vld [vmem:[#allocation5 + $0xaa0] sm:$0xff]
    %v2859 = vld [vmem:[#allocation5 + $0xaa8] sm:$0xff]
    %v2860 = vld [vmem:[#allocation5 + $0xab0] sm:$0xff]
    %v2861 = vld [vmem:[#allocation5 + $0xab8] sm:$0xff]
    %v2862 = vld [vmem:[#allocation5 + $0xac0] sm:$0xff]
    %v2863 = vld [vmem:[#allocation5 + $0xac8] sm:$0xff]
    %v2864 = vld [vmem:[#allocation5 + $0xad0] sm:$0xff]
    %v2865 = vld [vmem:[#allocation5 + $0xad8] sm:$0xff]
    %v2866 = vld [vmem:[#allocation5 + $0xae0] sm:$0xff]
    %v2867 = vld [vmem:[#allocation5 + $0xae8] sm:$0xff]
    %v2868 = vld [vmem:[#allocation5 + $0xaf0] sm:$0xff]
    %v2869 = vld [vmem:[#allocation5 + $0xaf8] sm:$0xff]
    %v2870 = vld [vmem:[#allocation5 + $0xb00] sm:$0xff]
    %v2871 = vld [vmem:[#allocation5 + $0xb08] sm:$0xff]
    %v2872 = vld [vmem:[#allocation5 + $0xb10] sm:$0xff]
    %v2873 = vld [vmem:[#allocation5 + $0xb18] sm:$0xff]
    %v2874 = vld [vmem:[#allocation5 + $0xb20] sm:$0xff]
    %v2875 = vld [vmem:[#allocation5 + $0xb28] sm:$0xff]
    %v2876 = vld [vmem:[#allocation5 + $0xb30] sm:$0xff]
    %v2877 = vld [vmem:[#allocation5 + $0xb38] sm:$0xff]
    %v2878 = vld [vmem:[#allocation5 + $0xb40] sm:$0xff]
    %v2879 = vld [vmem:[#allocation5 + $0xb48] sm:$0xff]
    %v2880 = vld [vmem:[#allocation5 + $0xb50] sm:$0xff]
    %v2881 = vld [vmem:[#allocation5 + $0xb58] sm:$0xff]
    %v2882 = vld [vmem:[#allocation5 + $0xb60] sm:$0xff]
    %v2883 = vld [vmem:[#allocation5 + $0xb68] sm:$0xff]
    %v2884 = vld [vmem:[#allocation5 + $0xb70] sm:$0xff]
    %v2885 = vld [vmem:[#allocation5 + $0xb78] sm:$0xff]
    %v2886 = vld [vmem:[#allocation5 + $0xb80] sm:$0xff]
    %v2887 = vld [vmem:[#allocation5 + $0xb88] sm:$0xff]
    %v2888 = vld [vmem:[#allocation5 + $0xb90] sm:$0xff]
    %v2889 = vld [vmem:[#allocation5 + $0xb98] sm:$0xff]
    %v2890 = vld [vmem:[#allocation5 + $0xba0] sm:$0xff]
    %v2891 = vld [vmem:[#allocation5 + $0xba8] sm:$0xff]
    %v2892 = vld [vmem:[#allocation5 + $0xbb0] sm:$0xff]
    %v2893 = vld [vmem:[#allocation5 + $0xbb8] sm:$0xff]
    %v2894 = vld [vmem:[#allocation5 + $0xbc0] sm:$0xff]
    %v2895 = vld [vmem:[#allocation5 + $0xbc8] sm:$0xff]
    %v2896 = vld [vmem:[#allocation5 + $0xbd0] sm:$0xff]
    %v2897 = vld [vmem:[#allocation5 + $0xbd8] sm:$0xff]
    %v2898 = vld [vmem:[#allocation5 + $0xbe0] sm:$0xff]
    %v2899 = vld [vmem:[#allocation5 + $0xbe8] sm:$0xff]
    %v2900 = vld [vmem:[#allocation5 + $0xbf0] sm:$0xff]
    %v2901 = vld [vmem:[#allocation5 + $0xbf8] sm:$0xff]
    %v2998 = vunpack.c.l.b16 %v2806
    %v2999 = vunpack.c.h.b16 %v2806
    %v3000 = vunpack.c.l.b16 %v2807
    %v3001 = vunpack.c.h.b16 %v2807
    %v3002 = vunpack.c.l.b16 %v2808
    %v3003 = vunpack.c.h.b16 %v2808
    %v3004 = vunpack.c.l.b16 %v2809
    %v3005 = vunpack.c.h.b16 %v2809
    %v3006 = vunpack.c.l.b16 %v2810
    %v3007 = vunpack.c.h.b16 %v2810
    %v3008 = vunpack.c.l.b16 %v2811
    %v3009 = vunpack.c.h.b16 %v2811
    %v3010 = vunpack.c.l.b16 %v2812
    %v3011 = vunpack.c.h.b16 %v2812
    %v3012 = vunpack.c.l.b16 %v2813
    %v3013 = vunpack.c.h.b16 %v2813
    %v3014 = vunpack.c.l.b16 %v2814
    %v3015 = vunpack.c.h.b16 %v2814
    %v3016 = vunpack.c.l.b16 %v2815
    %v3017 = vunpack.c.h.b16 %v2815
    %v3018 = vunpack.c.l.b16 %v2816
    %v3019 = vunpack.c.h.b16 %v2816
    %v3020 = vunpack.c.l.b16 %v2817
    %v3021 = vunpack.c.h.b16 %v2817
    %v3022 = vunpack.c.l.b16 %v2818
    %v3023 = vunpack.c.h.b16 %v2818
    %v3024 = vunpack.c.l.b16 %v2819
    %v3025 = vunpack.c.h.b16 %v2819
    %v3026 = vunpack.c.l.b16 %v2820
    %v3027 = vunpack.c.h.b16 %v2820
    %v3028 = vunpack.c.l.b16 %v2821
    %v3029 = vunpack.c.h.b16 %v2821
    %v3030 = vunpack.c.l.b16 %v2822
    %v3031 = vunpack.c.h.b16 %v2822
    %v3032 = vunpack.c.l.b16 %v2823
    %v3033 = vunpack.c.h.b16 %v2823
    %v3034 = vunpack.c.l.b16 %v2824
    %v3035 = vunpack.c.h.b16 %v2824
    %v3036 = vunpack.c.l.b16 %v2825
    %v3037 = vunpack.c.h.b16 %v2825
    %v3038 = vunpack.c.l.b16 %v2826
    %v3039 = vunpack.c.h.b16 %v2826
    %v3040 = vunpack.c.l.b16 %v2827
    %v3041 = vunpack.c.h.b16 %v2827
    %v3042 = vunpack.c.l.b16 %v2828
    %v3043 = vunpack.c.h.b16 %v2828
    %v3044 = vunpack.c.l.b16 %v2829
    %v3045 = vunpack.c.h.b16 %v2829
    %v3046 = vunpack.c.l.b16 %v2830
    %v3047 = vunpack.c.h.b16 %v2830
    %v3048 = vunpack.c.l.b16 %v2831
    %v3049 = vunpack.c.h.b16 %v2831
    %v3050 = vunpack.c.l.b16 %v2832
    %v3051 = vunpack.c.h.b16 %v2832
    %v3052 = vunpack.c.l.b16 %v2833
    %v3053 = vunpack.c.h.b16 %v2833
    %v3054 = vunpack.c.l.b16 %v2834
    %v3055 = vunpack.c.h.b16 %v2834
    %v3056 = vunpack.c.l.b16 %v2835
    %v3057 = vunpack.c.h.b16 %v2835
    %v3058 = vunpack.c.l.b16 %v2836
    %v3059 = vunpack.c.h.b16 %v2836
    %v3060 = vunpack.c.l.b16 %v2837
    %v3061 = vunpack.c.h.b16 %v2837
    %v3062 = vunpack.c.l.b16 %v2838
    %v3063 = vunpack.c.h.b16 %v2838
    %v3064 = vunpack.c.l.b16 %v2839
    %v3065 = vunpack.c.h.b16 %v2839
    %v3066 = vunpack.c.l.b16 %v2840
    %v3067 = vunpack.c.h.b16 %v2840
    %v3068 = vunpack.c.l.b16 %v2841
    %v3069 = vunpack.c.h.b16 %v2841
    %v3070 = vunpack.c.l.b16 %v2842
    %v3071 = vunpack.c.h.b16 %v2842
    %v3072 = vunpack.c.l.b16 %v2843
    %v3073 = vunpack.c.h.b16 %v2843
    %v3074 = vunpack.c.l.b16 %v2844
    %v3075 = vunpack.c.h.b16 %v2844
    %v3076 = vunpack.c.l.b16 %v2845
    %v3077 = vunpack.c.h.b16 %v2845
    %v3078 = vunpack.c.l.b16 %v2846
    %v3079 = vunpack.c.h.b16 %v2846
    %v3080 = vunpack.c.l.b16 %v2847
    %v3081 = vunpack.c.h.b16 %v2847
    %v3082 = vunpack.c.l.b16 %v2848
    %v3083 = vunpack.c.h.b16 %v2848
    %v3084 = vunpack.c.l.b16 %v2849
    %v3085 = vunpack.c.h.b16 %v2849
    %v3086 = vunpack.c.l.b16 %v2850
    %v3087 = vunpack.c.h.b16 %v2850
    %v3088 = vunpack.c.l.b16 %v2851
    %v3089 = vunpack.c.h.b16 %v2851
    %v3090 = vunpack.c.l.b16 %v2852
    %v3091 = vunpack.c.h.b16 %v2852
    %v3092 = vunpack.c.l.b16 %v2853
    %v3093 = vunpack.c.h.b16 %v2853
    %v3094 = vunpack.c.l.b16 %v2854
    %v3095 = vunpack.c.h.b16 %v2854
    %v3096 = vunpack.c.l.b16 %v2855
    %v3097 = vunpack.c.h.b16 %v2855
    %v3098 = vunpack.c.l.b16 %v2856
    %v3099 = vunpack.c.h.b16 %v2856
    %v3100 = vunpack.c.l.b16 %v2857
    %v3101 = vunpack.c.h.b16 %v2857
    %v3102 = vunpack.c.l.b16 %v2858
    %v3103 = vunpack.c.h.b16 %v2858
    %v3104 = vunpack.c.l.b16 %v2859
    %v3105 = vunpack.c.h.b16 %v2859
    %v3106 = vunpack.c.l.b16 %v2860
    %v3107 = vunpack.c.h.b16 %v2860
    %v3108 = vunpack.c.l.b16 %v2861
    %v3109 = vunpack.c.h.b16 %v2861
    %v3110 = vunpack.c.l.b16 %v2862
    %v3111 = vunpack.c.h.b16 %v2862
    %v3112 = vunpack.c.l.b16 %v2863
    %v3113 = vunpack.c.h.b16 %v2863
    %v3114 = vunpack.c.l.b16 %v2864
    %v3115 = vunpack.c.h.b16 %v2864
    %v3116 = vunpack.c.l.b16 %v2865
    %v3117 = vunpack.c.h.b16 %v2865
    %v3118 = vunpack.c.l.b16 %v2866
    %v3119 = vunpack.c.h.b16 %v2866
    %v3120 = vunpack.c.l.b16 %v2867
    %v3121 = vunpack.c.h.b16 %v2867
    %v3122 = vunpack.c.l.b16 %v2868
    %v3123 = vunpack.c.h.b16 %v2868
    %v3124 = vunpack.c.l.b16 %v2869
    %v3125 = vunpack.c.h.b16 %v2869
    %v3126 = vunpack.c.l.b16 %v2870
    %v3127 = vunpack.c.h.b16 %v2870
    %v3128 = vunpack.c.l.b16 %v2871
    %v3129 = vunpack.c.h.b16 %v2871
    %v3130 = vunpack.c.l.b16 %v2872
    %v3131 = vunpack.c.h.b16 %v2872
    %v3132 = vunpack.c.l.b16 %v2873
    %v3133 = vunpack.c.h.b16 %v2873
    %v3134 = vunpack.c.l.b16 %v2874
    %v3135 = vunpack.c.h.b16 %v2874
    %v3136 = vunpack.c.l.b16 %v2875
    %v3137 = vunpack.c.h.b16 %v2875
    %v3138 = vunpack.c.l.b16 %v2876
    %v3139 = vunpack.c.h.b16 %v2876
    %v3140 = vunpack.c.l.b16 %v2877
    %v3141 = vunpack.c.h.b16 %v2877
    %v3142 = vunpack.c.l.b16 %v2878
    %v3143 = vunpack.c.h.b16 %v2878
    %v3144 = vunpack.c.l.b16 %v2879
    %v3145 = vunpack.c.h.b16 %v2879
    %v3146 = vunpack.c.l.b16 %v2880
    %v3147 = vunpack.c.h.b16 %v2880
    %v3148 = vunpack.c.l.b16 %v2881
    %v3149 = vunpack.c.h.b16 %v2881
    %v3150 = vunpack.c.l.b16 %v2882
    %v3151 = vunpack.c.h.b16 %v2882
    %v3152 = vunpack.c.l.b16 %v2883
    %v3153 = vunpack.c.h.b16 %v2883
    %v3154 = vunpack.c.l.b16 %v2884
    %v3155 = vunpack.c.h.b16 %v2884
    %v3156 = vunpack.c.l.b16 %v2885
    %v3157 = vunpack.c.h.b16 %v2885
    %v3158 = vunpack.c.l.b16 %v2886
    %v3159 = vunpack.c.h.b16 %v2886
    %v3160 = vunpack.c.l.b16 %v2887
    %v3161 = vunpack.c.h.b16 %v2887
    %v3162 = vunpack.c.l.b16 %v2888
    %v3163 = vunpack.c.h.b16 %v2888
    %v3164 = vunpack.c.l.b16 %v2889
    %v3165 = vunpack.c.h.b16 %v2889
    %v3166 = vunpack.c.l.b16 %v2890
    %v3167 = vunpack.c.h.b16 %v2890
    %v3168 = vunpack.c.l.b16 %v2891
    %v3169 = vunpack.c.h.b16 %v2891
    %v3170 = vunpack.c.l.b16 %v2892
    %v3171 = vunpack.c.h.b16 %v2892
    %v3172 = vunpack.c.l.b16 %v2893
    %v3173 = vunpack.c.h.b16 %v2893
    %v3174 = vunpack.c.l.b16 %v2894
    %v3175 = vunpack.c.h.b16 %v2894
    %v3176 = vunpack.c.l.b16 %v2895
    %v3177 = vunpack.c.h.b16 %v2895
    %v3178 = vunpack.c.l.b16 %v2896
    %v3179 = vunpack.c.h.b16 %v2896
    %v3180 = vunpack.c.l.b16 %v2897
    %v3181 = vunpack.c.h.b16 %v2897
    %v3182 = vunpack.c.l.b16 %v2898
    %v3183 = vunpack.c.h.b16 %v2898
    %v3184 = vunpack.c.l.b16 %v2899
    %v3185 = vunpack.c.h.b16 %v2899
    %v3186 = vunpack.c.l.b16 %v2900
    %v3187 = vunpack.c.h.b16 %v2900
    %v3188 = vunpack.c.l.b16 %v2901
    %v3189 = vunpack.c.h.b16 %v2901
    %v3190 = vpack.c.b16 %v3004, %v2998
    %v3191 = vpack.c.b16 %v3005, %v2999
    %v3192 = vpack.c.b16 %v3006, %v3000
    %v3193 = vpack.c.b16 %v3007, %v3001
    %v3194 = vpack.c.b16 %v3008, %v3002
    %v3195 = vpack.c.b16 %v3009, %v3003
    %v3196 = vpack.c.b16 %v3016, %v3010
    %v3197 = vpack.c.b16 %v3017, %v3011
    %v3198 = vpack.c.b16 %v3018, %v3012
    %v3199 = vpack.c.b16 %v3019, %v3013
    %v3200 = vpack.c.b16 %v3020, %v3014
    %v3201 = vpack.c.b16 %v3021, %v3015
    %v3202 = vpack.c.b16 %v3028, %v3022
    %v3203 = vpack.c.b16 %v3029, %v3023
    %v3204 = vpack.c.b16 %v3030, %v3024
    %v3205 = vpack.c.b16 %v3031, %v3025
    %v3206 = vpack.c.b16 %v3032, %v3026
    %v3207 = vpack.c.b16 %v3033, %v3027
    %v3208 = vpack.c.b16 %v3040, %v3034
    %v3209 = vpack.c.b16 %v3041, %v3035
    %v3210 = vpack.c.b16 %v3042, %v3036
    %v3211 = vpack.c.b16 %v3043, %v3037
    %v3212 = vpack.c.b16 %v3044, %v3038
    %v3213 = vpack.c.b16 %v3045, %v3039
    %v3214 = vpack.c.b16 %v3052, %v3046
    %v3215 = vpack.c.b16 %v3053, %v3047
    %v3216 = vpack.c.b16 %v3054, %v3048
    %v3217 = vpack.c.b16 %v3055, %v3049
    %v3218 = vpack.c.b16 %v3056, %v3050
    %v3219 = vpack.c.b16 %v3057, %v3051
    %v3220 = vpack.c.b16 %v3064, %v3058
    %v3221 = vpack.c.b16 %v3065, %v3059
    %v3222 = vpack.c.b16 %v3066, %v3060
    %v3223 = vpack.c.b16 %v3067, %v3061
    %v3224 = vpack.c.b16 %v3068, %v3062
    %v3225 = vpack.c.b16 %v3069, %v3063
    %v3226 = vpack.c.b16 %v3076, %v3070
    %v3227 = vpack.c.b16 %v3077, %v3071
    %v3228 = vpack.c.b16 %v3078, %v3072
    %v3229 = vpack.c.b16 %v3079, %v3073
    %v3230 = vpack.c.b16 %v3080, %v3074
    %v3231 = vpack.c.b16 %v3081, %v3075
    %v3232 = vpack.c.b16 %v3088, %v3082
    %v3233 = vpack.c.b16 %v3089, %v3083
    %v3234 = vpack.c.b16 %v3090, %v3084
    %v3235 = vpack.c.b16 %v3091, %v3085
    %v3236 = vpack.c.b16 %v3092, %v3086
    %v3237 = vpack.c.b16 %v3093, %v3087
    %v3238 = vpack.c.b16 %v3100, %v3094
    %v3239 = vpack.c.b16 %v3101, %v3095
    %v3240 = vpack.c.b16 %v3102, %v3096
    %v3241 = vpack.c.b16 %v3103, %v3097
    %v3242 = vpack.c.b16 %v3104, %v3098
    %v3243 = vpack.c.b16 %v3105, %v3099
    %v3244 = vpack.c.b16 %v3112, %v3106
    %v3245 = vpack.c.b16 %v3113, %v3107
    %v3246 = vpack.c.b16 %v3114, %v3108
    %v3247 = vpack.c.b16 %v3115, %v3109
    %v3248 = vpack.c.b16 %v3116, %v3110
    %v3249 = vpack.c.b16 %v3117, %v3111
    %v3250 = vpack.c.b16 %v3124, %v3118
    %v3251 = vpack.c.b16 %v3125, %v3119
    %v3252 = vpack.c.b16 %v3126, %v3120
    %v3253 = vpack.c.b16 %v3127, %v3121
    %v3254 = vpack.c.b16 %v3128, %v3122
    %v3255 = vpack.c.b16 %v3129, %v3123
    %v3256 = vpack.c.b16 %v3136, %v3130
    %v3257 = vpack.c.b16 %v3137, %v3131
    %v3258 = vpack.c.b16 %v3138, %v3132
    %v3259 = vpack.c.b16 %v3139, %v3133
    %v3260 = vpack.c.b16 %v3140, %v3134
    %v3261 = vpack.c.b16 %v3141, %v3135
    %v3262 = vpack.c.b16 %v3148, %v3142
    %v3263 = vpack.c.b16 %v3149, %v3143
    %v3264 = vpack.c.b16 %v3150, %v3144
    %v3265 = vpack.c.b16 %v3151, %v3145
    %v3266 = vpack.c.b16 %v3152, %v3146
    %v3267 = vpack.c.b16 %v3153, %v3147
    %v3268 = vpack.c.b16 %v3160, %v3154
    %v3269 = vpack.c.b16 %v3161, %v3155
    %v3270 = vpack.c.b16 %v3162, %v3156
    %v3271 = vpack.c.b16 %v3163, %v3157
    %v3272 = vpack.c.b16 %v3164, %v3158
    %v3273 = vpack.c.b16 %v3165, %v3159
    %v3274 = vpack.c.b16 %v3172, %v3166
    %v3275 = vpack.c.b16 %v3173, %v3167
    %v3276 = vpack.c.b16 %v3174, %v3168
    %v3277 = vpack.c.b16 %v3175, %v3169
    %v3278 = vpack.c.b16 %v3176, %v3170
    %v3279 = vpack.c.b16 %v3177, %v3171
    %v3280 = vpack.c.b16 %v3184, %v3178
    %v3281 = vpack.c.b16 %v3185, %v3179
    %v3282 = vpack.c.b16 %v3186, %v3180
    %v3283 = vpack.c.b16 %v3187, %v3181
    %v3284 = vpack.c.b16 %v3188, %v3182
    %v3285 = vpack.c.b16 %v3189, %v3183
    %3382 = vmatprep.subr.bf16.mxu0 %v3233
    %3383 = vmatpush1.bf16.msra.mxu0 %v3232
    %3384 = vmatprep.subr.bf16.mxu0 %v3227
    %3385 = vmatpush1.bf16.msra.mxu0 %v3226
    %3386 = vmatprep.subr.bf16.mxu0 %v3221
    %3387 = vmatpush1.bf16.msra.mxu0 %v3220
    %3388 = vmatprep.subr.bf16.mxu0 %v3215
    %3389 = vmatpush1.bf16.msra.mxu0 %v3214
    %3390 = vmatprep.subr.bf16.mxu0 %v3209
    %3391 = vmatpush1.bf16.msra.mxu0 %v3208
    %3392 = vmatprep.subr.bf16.mxu0 %v3203
    %3393 = vmatpush1.bf16.msra.mxu0 %v3202
    %3394 = vmatprep.subr.bf16.mxu0 %v3197
    %3395 = vmatpush1.bf16.msra.mxu0 %v3196
    %3396 = vmatprep.subr.bf16.mxu0 %v3191
    %3397 = vmatpush1.bf16.msra.mxu0 %v3190
    %3398 = vmatprep.subr.bf16.mxu0 %v3281
    %3399 = vmatpush2.bf16.msra.mxu0 %v3280
    %3400 = vmatprep.subr.bf16.mxu0 %v3275
    %3401 = vmatpush2.bf16.msra.mxu0 %v3274
    %3402 = vmatprep.subr.bf16.mxu0 %v3269
    %3403 = vmatpush2.bf16.msra.mxu0 %v3268
    %3404 = vmatprep.subr.bf16.mxu0 %v3263
    %3405 = vmatpush2.bf16.msra.mxu0 %v3262
    %3406 = vmatprep.subr.bf16.mxu0 %v3257
    %3407 = vmatpush2.bf16.msra.mxu0 %v3256
    %3408 = vmatprep.subr.bf16.mxu0 %v3251
    %3409 = vmatpush2.bf16.msra.mxu0 %v3250
    %3410 = vmatprep.subr.bf16.mxu0 %v3245
    %3411 = vmatpush2.bf16.msra.mxu0 %v3244
    %3412 = vmatprep.subr.bf16.mxu0 %v3239
    %3413 = vmatpush2.bf16.msra.mxu0 %v3238
    %3414 = vmatprep.mubr.bf16.mxu0 %v2805
    %3415 = vmatmul.mubr.bf16.gmra.mxu0 %v2804
    %v3416 = vpop.f32.mrf.mxu0
    %v3417 = vadd.f32 0.0, %v3416
    %v3418 = vpop.f32.mrf.mxu0
    %v3419 = vadd.f32 0.0, %v3418
    %v3420 = vpop.f32.mrf.mxu0
    %v3421 = vpop.f32.mrf.mxu0
    %3422 = vdwg.mxu0
    %3423 = vmatprep.subr.bf16.mxu0 %v3235
    %3424 = vmatpush1.bf16.msra.mxu0 %v3234
    %3425 = vmatprep.subr.bf16.mxu0 %v3229
    %3426 = vmatpush1.bf16.msra.mxu0 %v3228
    %3427 = vmatprep.subr.bf16.mxu0 %v3223
    %3428 = vmatpush1.bf16.msra.mxu0 %v3222
    %3429 = vmatprep.subr.bf16.mxu0 %v3217
    %3430 = vmatpush1.bf16.msra.mxu0 %v3216
    %3431 = vmatprep.subr.bf16.mxu0 %v3211
    %3432 = vmatpush1.bf16.msra.mxu0 %v3210
    %3433 = vmatprep.subr.bf16.mxu0 %v3205
    %3434 = vmatpush1.bf16.msra.mxu0 %v3204
    %3435 = vmatprep.subr.bf16.mxu0 %v3199
    %3436 = vmatpush1.bf16.msra.mxu0 %v3198
    %3437 = vmatprep.subr.bf16.mxu0 %v3193
    %3438 = vmatpush1.bf16.msra.mxu0 %v3192
    %3439 = vmatprep.subr.bf16.mxu0 %v3283
    %3440 = vmatpush2.bf16.msra.mxu0 %v3282
    %3441 = vmatprep.subr.bf16.mxu0 %v3277
    %3442 = vmatpush2.bf16.msra.mxu0 %v3276
    %3443 = vmatprep.subr.bf16.mxu0 %v3271
    %3444 = vmatpush2.bf16.msra.mxu0 %v3270
    %3445 = vmatprep.subr.bf16.mxu0 %v3265
    %3446 = vmatpush2.bf16.msra.mxu0 %v3264
    %3447 = vmatprep.subr.bf16.mxu0 %v3259
    %3448 = vmatpush2.bf16.msra.mxu0 %v3258
    %3449 = vmatprep.subr.bf16.mxu0 %v3253
    %3450 = vmatpush2.bf16.msra.mxu0 %v3252
    %3451 = vmatprep.subr.bf16.mxu0 %v3247
    %3452 = vmatpush2.bf16.msra.mxu0 %v3246
    %3453 = vmatprep.subr.bf16.mxu0 %v3241
    %3454 = vmatpush2.bf16.msra.mxu0 %v3240
    %3455 = vmatprep.mubr.bf16.mxu0 %v2805
    %3456 = vmatmul.mubr.bf16.gmra.mxu0 %v2804
    %v3457 = vpop.f32.mrf.mxu0
    %v3458 = vadd.f32 0.0, %v3457
    %v3459 = vpop.f32.mrf.mxu0
    %v3460 = vadd.f32 0.0, %v3459
    %v3461 = vpop.f32.mrf.mxu0
    %v3462 = vpop.f32.mrf.mxu0
    %3463 = vdwg.mxu0
    %3464 = vmatprep.subr.bf16.mxu0 %v3237
    %3465 = vmatpush1.bf16.msra.mxu0 %v3236
    %3466 = vmatprep.subr.bf16.mxu0 %v3231
    %3467 = vmatpush1.bf16.msra.mxu0 %v3230
    %3468 = vmatprep.subr.bf16.mxu0 %v3225
    %3469 = vmatpush1.bf16.msra.mxu0 %v3224
    %3470 = vmatprep.subr.bf16.mxu0 %v3219
    %3471 = vmatpush1.bf16.msra.mxu0 %v3218
    %3472 = vmatprep.subr.bf16.mxu0 %v3213
    %3473 = vmatpush1.bf16.msra.mxu0 %v3212
    %3474 = vmatprep.subr.bf16.mxu0 %v3207
    %3475 = vmatpush1.bf16.msra.mxu0 %v3206
    %3476 = vmatprep.subr.bf16.mxu0 %v3201
    %3477 = vmatpush1.bf16.msra.mxu0 %v3200
    %3478 = vmatprep.subr.bf16.mxu0 %v3195
    %3479 = vmatpush1.bf16.msra.mxu0 %v3194
    %3480 = vmatprep.subr.bf16.mxu0 %v3285
    %3481 = vmatpush2.bf16.msra.mxu0 %v3284
    %3482 = vmatprep.subr.bf16.mxu0 %v3279
    %3483 = vmatpush2.bf16.msra.mxu0 %v3278
    %3484 = vmatprep.subr.bf16.mxu0 %v3273
    %3485 = vmatpush2.bf16.msra.mxu0 %v3272
    %3486 = vmatprep.subr.bf16.mxu0 %v3267
    %3487 = vmatpush2.bf16.msra.mxu0 %v3266
    %3488 = vmatprep.subr.bf16.mxu0 %v3261
    %3489 = vmatpush2.bf16.msra.mxu0 %v3260
    %3490 = vmatprep.subr.bf16.mxu0 %v3255
    %3491 = vmatpush2.bf16.msra.mxu0 %v3254
    %3492 = vmatprep.subr.bf16.mxu0 %v3249
    %3493 = vmatpush2.bf16.msra.mxu0 %v3248
    %3494 = vmatprep.subr.bf16.mxu0 %v3243
    %3495 = vmatpush2.bf16.msra.mxu0 %v3242
    %3496 = vmatprep.mubr.bf16.mxu0 %v2805
    %3497 = vmatmul.mubr.bf16.gmra.mxu0 %v2804
    %v3498 = vpop.f32.mrf.mxu0
    %v3499 = vadd.f32 0.0, %v3498
    %v3500 = vpop.f32.mrf.mxu0
    %v3501 = vadd.f32 0.0, %v3500
    %v3502 = vpop.f32.mrf.mxu0
    %v3503 = vpop.f32.mrf.mxu0
    %3504 = vdwg.mxu0
    %v3505 = vadd.f32 %v2796, %v3417
    %v3506 = vadd.f32 %v2797, %v3419
    %v3507 = vadd.f32 %v2798, %v3458
    %v3508 = vadd.f32 %v2799, %v3460
    %v3509 = vadd.f32 %v2800, %v3499
    %v3510 = vadd.f32 %v2801, %v3501
    %v3511 = vld [vmem:[#allocation2 + $0x40] sm:$0xff]
    %v3512 = vld [vmem:[#allocation2 + $0x48] sm:$0xff]
    %v3513 = vpack.c.bf16 %v3511, %v3511
    %v3514 = vpack.c.bf16 %v3512, %v3512
    %v3515 = vld [vmem:[#allocation5 + $0xc00] sm:$0xff]
    %v3516 = vld [vmem:[#allocation5 + $0xc08] sm:$0xff]
    %v3517 = vld [vmem:[#allocation5 + $0xc10] sm:$0xff]
    %v3518 = vld [vmem:[#allocation5 + $0xc18] sm:$0xff]
    %v3519 = vld [vmem:[#allocation5 + $0xc20] sm:$0xff]
    %v3520 = vld [vmem:[#allocation5 + $0xc28] sm:$0xff]
    %v3521 = vld [vmem:[#allocation5 + $0xc30] sm:$0xff]
    %v3522 = vld [vmem:[#allocation5 + $0xc38] sm:$0xff]
    %v3523 = vld [vmem:[#allocation5 + $0xc40] sm:$0xff]
    %v3524 = vld [vmem:[#allocation5 + $0xc48] sm:$0xff]
    %v3525 = vld [vmem:[#allocation5 + $0xc50] sm:$0xff]
    %v3526 = vld [vmem:[#allocation5 + $0xc58] sm:$0xff]
    %v3527 = vld [vmem:[#allocation5 + $0xc60] sm:$0xff]
    %v3528 = vld [vmem:[#allocation5 + $0xc68] sm:$0xff]
    %v3529 = vld [vmem:[#allocation5 + $0xc70] sm:$0xff]
    %v3530 = vld [vmem:[#allocation5 + $0xc78] sm:$0xff]
    %v3531 = vld [vmem:[#allocation5 + $0xc80] sm:$0xff]
    %v3532 = vld [vmem:[#allocation5 + $0xc88] sm:$0xff]
    %v3533 = vld [vmem:[#allocation5 + $0xc90] sm:$0xff]
    %v3534 = vld [vmem:[#allocation5 + $0xc98] sm:$0xff]
    %v3535 = vld [vmem:[#allocation5 + $0xca0] sm:$0xff]
    %v3536 = vld [vmem:[#allocation5 + $0xca8] sm:$0xff]
    %v3537 = vld [vmem:[#allocation5 + $0xcb0] sm:$0xff]
    %v3538 = vld [vmem:[#allocation5 + $0xcb8] sm:$0xff]
    %v3539 = vld [vmem:[#allocation5 + $0xcc0] sm:$0xff]
    %v3540 = vld [vmem:[#allocation5 + $0xcc8] sm:$0xff]
    %v3541 = vld [vmem:[#allocation5 + $0xcd0] sm:$0xff]
    %v3542 = vld [vmem:[#allocation5 + $0xcd8] sm:$0xff]
    %v3543 = vld [vmem:[#allocation5 + $0xce0] sm:$0xff]
    %v3544 = vld [vmem:[#allocation5 + $0xce8] sm:$0xff]
    %v3545 = vld [vmem:[#allocation5 + $0xcf0] sm:$0xff]
    %v3546 = vld [vmem:[#allocation5 + $0xcf8] sm:$0xff]
    %v3547 = vld [vmem:[#allocation5 + $0xd00] sm:$0xff]
    %v3548 = vld [vmem:[#allocation5 + $0xd08] sm:$0xff]
    %v3549 = vld [vmem:[#allocation5 + $0xd10] sm:$0xff]
    %v3550 = vld [vmem:[#allocation5 + $0xd18] sm:$0xff]
    %v3551 = vld [vmem:[#allocation5 + $0xd20] sm:$0xff]
    %v3552 = vld [vmem:[#allocation5 + $0xd28] sm:$0xff]
    %v3553 = vld [vmem:[#allocation5 + $0xd30] sm:$0xff]
    %v3554 = vld [vmem:[#allocation5 + $0xd38] sm:$0xff]
    %v3555 = vld [vmem:[#allocation5 + $0xd40] sm:$0xff]
    %v3556 = vld [vmem:[#allocation5 + $0xd48] sm:$0xff]
    %v3557 = vld [vmem:[#allocation5 + $0xd50] sm:$0xff]
    %v3558 = vld [vmem:[#allocation5 + $0xd58] sm:$0xff]
    %v3559 = vld [vmem:[#allocation5 + $0xd60] sm:$0xff]
    %v3560 = vld [vmem:[#allocation5 + $0xd68] sm:$0xff]
    %v3561 = vld [vmem:[#allocation5 + $0xd70] sm:$0xff]
    %v3562 = vld [vmem:[#allocation5 + $0xd78] sm:$0xff]
    %v3563 = vld [vmem:[#allocation5 + $0xd80] sm:$0xff]
    %v3564 = vld [vmem:[#allocation5 + $0xd88] sm:$0xff]
    %v3565 = vld [vmem:[#allocation5 + $0xd90] sm:$0xff]
    %v3566 = vld [vmem:[#allocation5 + $0xd98] sm:$0xff]
    %v3567 = vld [vmem:[#allocation5 + $0xda0] sm:$0xff]
    %v3568 = vld [vmem:[#allocation5 + $0xda8] sm:$0xff]
    %v3569 = vld [vmem:[#allocation5 + $0xdb0] sm:$0xff]
    %v3570 = vld [vmem:[#allocation5 + $0xdb8] sm:$0xff]
    %v3571 = vld [vmem:[#allocation5 + $0xdc0] sm:$0xff]
    %v3572 = vld [vmem:[#allocation5 + $0xdc8] sm:$0xff]
    %v3573 = vld [vmem:[#allocation5 + $0xdd0] sm:$0xff]
    %v3574 = vld [vmem:[#allocation5 + $0xdd8] sm:$0xff]
    %v3575 = vld [vmem:[#allocation5 + $0xde0] sm:$0xff]
    %v3576 = vld [vmem:[#allocation5 + $0xde8] sm:$0xff]
    %v3577 = vld [vmem:[#allocation5 + $0xdf0] sm:$0xff]
    %v3578 = vld [vmem:[#allocation5 + $0xdf8] sm:$0xff]
    %v3579 = vld [vmem:[#allocation5 + $0xe00] sm:$0xff]
    %v3580 = vld [vmem:[#allocation5 + $0xe08] sm:$0xff]
    %v3581 = vld [vmem:[#allocation5 + $0xe10] sm:$0xff]
    %v3582 = vld [vmem:[#allocation5 + $0xe18] sm:$0xff]
    %v3583 = vld [vmem:[#allocation5 + $0xe20] sm:$0xff]
    %v3584 = vld [vmem:[#allocation5 + $0xe28] sm:$0xff]
    %v3585 = vld [vmem:[#allocation5 + $0xe30] sm:$0xff]
    %v3586 = vld [vmem:[#allocation5 + $0xe38] sm:$0xff]
    %v3587 = vld [vmem:[#allocation5 + $0xe40] sm:$0xff]
    %v3588 = vld [vmem:[#allocation5 + $0xe48] sm:$0xff]
    %v3589 = vld [vmem:[#allocation5 + $0xe50] sm:$0xff]
    %v3590 = vld [vmem:[#allocation5 + $0xe58] sm:$0xff]
    %v3591 = vld [vmem:[#allocation5 + $0xe60] sm:$0xff]
    %v3592 = vld [vmem:[#allocation5 + $0xe68] sm:$0xff]
    %v3593 = vld [vmem:[#allocation5 + $0xe70] sm:$0xff]
    %v3594 = vld [vmem:[#allocation5 + $0xe78] sm:$0xff]
    %v3595 = vld [vmem:[#allocation5 + $0xe80] sm:$0xff]
    %v3596 = vld [vmem:[#allocation5 + $0xe88] sm:$0xff]
    %v3597 = vld [vmem:[#allocation5 + $0xe90] sm:$0xff]
    %v3598 = vld [vmem:[#allocation5 + $0xe98] sm:$0xff]
    %v3599 = vld [vmem:[#allocation5 + $0xea0] sm:$0xff]
    %v3600 = vld [vmem:[#allocation5 + $0xea8] sm:$0xff]
    %v3601 = vld [vmem:[#allocation5 + $0xeb0] sm:$0xff]
    %v3602 = vld [vmem:[#allocation5 + $0xeb8] sm:$0xff]
    %v3603 = vld [vmem:[#allocation5 + $0xec0] sm:$0xff]
    %v3604 = vld [vmem:[#allocation5 + $0xec8] sm:$0xff]
    %v3605 = vld [vmem:[#allocation5 + $0xed0] sm:$0xff]
    %v3606 = vld [vmem:[#allocation5 + $0xed8] sm:$0xff]
    %v3607 = vld [vmem:[#allocation5 + $0xee0] sm:$0xff]
    %v3608 = vld [vmem:[#allocation5 + $0xee8] sm:$0xff]
    %v3609 = vld [vmem:[#allocation5 + $0xef0] sm:$0xff]
    %v3610 = vld [vmem:[#allocation5 + $0xef8] sm:$0xff]
    %v3707 = vunpack.c.l.b16 %v3515
    %v3708 = vunpack.c.h.b16 %v3515
    %v3709 = vunpack.c.l.b16 %v3516
    %v3710 = vunpack.c.h.b16 %v3516
    %v3711 = vunpack.c.l.b16 %v3517
    %v3712 = vunpack.c.h.b16 %v3517
    %v3713 = vunpack.c.l.b16 %v3518
    %v3714 = vunpack.c.h.b16 %v3518
    %v3715 = vunpack.c.l.b16 %v3519
    %v3716 = vunpack.c.h.b16 %v3519
    %v3717 = vunpack.c.l.b16 %v3520
    %v3718 = vunpack.c.h.b16 %v3520
    %v3719 = vunpack.c.l.b16 %v3521
    %v3720 = vunpack.c.h.b16 %v3521
    %v3721 = vunpack.c.l.b16 %v3522
    %v3722 = vunpack.c.h.b16 %v3522
    %v3723 = vunpack.c.l.b16 %v3523
    %v3724 = vunpack.c.h.b16 %v3523
    %v3725 = vunpack.c.l.b16 %v3524
    %v3726 = vunpack.c.h.b16 %v3524
    %v3727 = vunpack.c.l.b16 %v3525
    %v3728 = vunpack.c.h.b16 %v3525
    %v3729 = vunpack.c.l.b16 %v3526
    %v3730 = vunpack.c.h.b16 %v3526
    %v3731 = vunpack.c.l.b16 %v3527
    %v3732 = vunpack.c.h.b16 %v3527
    %v3733 = vunpack.c.l.b16 %v3528
    %v3734 = vunpack.c.h.b16 %v3528
    %v3735 = vunpack.c.l.b16 %v3529
    %v3736 = vunpack.c.h.b16 %v3529
    %v3737 = vunpack.c.l.b16 %v3530
    %v3738 = vunpack.c.h.b16 %v3530
    %v3739 = vunpack.c.l.b16 %v3531
    %v3740 = vunpack.c.h.b16 %v3531
    %v3741 = vunpack.c.l.b16 %v3532
    %v3742 = vunpack.c.h.b16 %v3532
    %v3743 = vunpack.c.l.b16 %v3533
    %v3744 = vunpack.c.h.b16 %v3533
    %v3745 = vunpack.c.l.b16 %v3534
    %v3746 = vunpack.c.h.b16 %v3534
    %v3747 = vunpack.c.l.b16 %v3535
    %v3748 = vunpack.c.h.b16 %v3535
    %v3749 = vunpack.c.l.b16 %v3536
    %v3750 = vunpack.c.h.b16 %v3536
    %v3751 = vunpack.c.l.b16 %v3537
    %v3752 = vunpack.c.h.b16 %v3537
    %v3753 = vunpack.c.l.b16 %v3538
    %v3754 = vunpack.c.h.b16 %v3538
    %v3755 = vunpack.c.l.b16 %v3539
    %v3756 = vunpack.c.h.b16 %v3539
    %v3757 = vunpack.c.l.b16 %v3540
    %v3758 = vunpack.c.h.b16 %v3540
    %v3759 = vunpack.c.l.b16 %v3541
    %v3760 = vunpack.c.h.b16 %v3541
    %v3761 = vunpack.c.l.b16 %v3542
    %v3762 = vunpack.c.h.b16 %v3542
    %v3763 = vunpack.c.l.b16 %v3543
    %v3764 = vunpack.c.h.b16 %v3543
    %v3765 = vunpack.c.l.b16 %v3544
    %v3766 = vunpack.c.h.b16 %v3544
    %v3767 = vunpack.c.l.b16 %v3545
    %v3768 = vunpack.c.h.b16 %v3545
    %v3769 = vunpack.c.l.b16 %v3546
    %v3770 = vunpack.c.h.b16 %v3546
    %v3771 = vunpack.c.l.b16 %v3547
    %v3772 = vunpack.c.h.b16 %v3547
    %v3773 = vunpack.c.l.b16 %v3548
    %v3774 = vunpack.c.h.b16 %v3548
    %v3775 = vunpack.c.l.b16 %v3549
    %v3776 = vunpack.c.h.b16 %v3549
    %v3777 = vunpack.c.l.b16 %v3550
    %v3778 = vunpack.c.h.b16 %v3550
    %v3779 = vunpack.c.l.b16 %v3551
    %v3780 = vunpack.c.h.b16 %v3551
    %v3781 = vunpack.c.l.b16 %v3552
    %v3782 = vunpack.c.h.b16 %v3552
    %v3783 = vunpack.c.l.b16 %v3553
    %v3784 = vunpack.c.h.b16 %v3553
    %v3785 = vunpack.c.l.b16 %v3554
    %v3786 = vunpack.c.h.b16 %v3554
    %v3787 = vunpack.c.l.b16 %v3555
    %v3788 = vunpack.c.h.b16 %v3555
    %v3789 = vunpack.c.l.b16 %v3556
    %v3790 = vunpack.c.h.b16 %v3556
    %v3791 = vunpack.c.l.b16 %v3557
    %v3792 = vunpack.c.h.b16 %v3557
    %v3793 = vunpack.c.l.b16 %v3558
    %v3794 = vunpack.c.h.b16 %v3558
    %v3795 = vunpack.c.l.b16 %v3559
    %v3796 = vunpack.c.h.b16 %v3559
    %v3797 = vunpack.c.l.b16 %v3560
    %v3798 = vunpack.c.h.b16 %v3560
    %v3799 = vunpack.c.l.b16 %v3561
    %v3800 = vunpack.c.h.b16 %v3561
    %v3801 = vunpack.c.l.b16 %v3562
    %v3802 = vunpack.c.h.b16 %v3562
    %v3803 = vunpack.c.l.b16 %v3563
    %v3804 = vunpack.c.h.b16 %v3563
    %v3805 = vunpack.c.l.b16 %v3564
    %v3806 = vunpack.c.h.b16 %v3564
    %v3807 = vunpack.c.l.b16 %v3565
    %v3808 = vunpack.c.h.b16 %v3565
    %v3809 = vunpack.c.l.b16 %v3566
    %v3810 = vunpack.c.h.b16 %v3566
    %v3811 = vunpack.c.l.b16 %v3567
    %v3812 = vunpack.c.h.b16 %v3567
    %v3813 = vunpack.c.l.b16 %v3568
    %v3814 = vunpack.c.h.b16 %v3568
    %v3815 = vunpack.c.l.b16 %v3569
    %v3816 = vunpack.c.h.b16 %v3569
    %v3817 = vunpack.c.l.b16 %v3570
    %v3818 = vunpack.c.h.b16 %v3570
    %v3819 = vunpack.c.l.b16 %v3571
    %v3820 = vunpack.c.h.b16 %v3571
    %v3821 = vunpack.c.l.b16 %v3572
    %v3822 = vunpack.c.h.b16 %v3572
    %v3823 = vunpack.c.l.b16 %v3573
    %v3824 = vunpack.c.h.b16 %v3573
    %v3825 = vunpack.c.l.b16 %v3574
    %v3826 = vunpack.c.h.b16 %v3574
    %v3827 = vunpack.c.l.b16 %v3575
    %v3828 = vunpack.c.h.b16 %v3575
    %v3829 = vunpack.c.l.b16 %v3576
    %v3830 = vunpack.c.h.b16 %v3576
    %v3831 = vunpack.c.l.b16 %v3577
    %v3832 = vunpack.c.h.b16 %v3577
    %v3833 = vunpack.c.l.b16 %v3578
    %v3834 = vunpack.c.h.b16 %v3578
    %v3835 = vunpack.c.l.b16 %v3579
    %v3836 = vunpack.c.h.b16 %v3579
    %v3837 = vunpack.c.l.b16 %v3580
    %v3838 = vunpack.c.h.b16 %v3580
    %v3839 = vunpack.c.l.b16 %v3581
    %v3840 = vunpack.c.h.b16 %v3581
    %v3841 = vunpack.c.l.b16 %v3582
    %v3842 = vunpack.c.h.b16 %v3582
    %v3843 = vunpack.c.l.b16 %v3583
    %v3844 = vunpack.c.h.b16 %v3583
    %v3845 = vunpack.c.l.b16 %v3584
    %v3846 = vunpack.c.h.b16 %v3584
    %v3847 = vunpack.c.l.b16 %v3585
    %v3848 = vunpack.c.h.b16 %v3585
    %v3849 = vunpack.c.l.b16 %v3586
    %v3850 = vunpack.c.h.b16 %v3586
    %v3851 = vunpack.c.l.b16 %v3587
    %v3852 = vunpack.c.h.b16 %v3587
    %v3853 = vunpack.c.l.b16 %v3588
    %v3854 = vunpack.c.h.b16 %v3588
    %v3855 = vunpack.c.l.b16 %v3589
    %v3856 = vunpack.c.h.b16 %v3589
    %v3857 = vunpack.c.l.b16 %v3590
    %v3858 = vunpack.c.h.b16 %v3590
    %v3859 = vunpack.c.l.b16 %v3591
    %v3860 = vunpack.c.h.b16 %v3591
    %v3861 = vunpack.c.l.b16 %v3592
    %v3862 = vunpack.c.h.b16 %v3592
    %v3863 = vunpack.c.l.b16 %v3593
    %v3864 = vunpack.c.h.b16 %v3593
    %v3865 = vunpack.c.l.b16 %v3594
    %v3866 = vunpack.c.h.b16 %v3594
    %v3867 = vunpack.c.l.b16 %v3595
    %v3868 = vunpack.c.h.b16 %v3595
    %v3869 = vunpack.c.l.b16 %v3596
    %v3870 = vunpack.c.h.b16 %v3596
    %v3871 = vunpack.c.l.b16 %v3597
    %v3872 = vunpack.c.h.b16 %v3597
    %v3873 = vunpack.c.l.b16 %v3598
    %v3874 = vunpack.c.h.b16 %v3598
    %v3875 = vunpack.c.l.b16 %v3599
    %v3876 = vunpack.c.h.b16 %v3599
    %v3877 = vunpack.c.l.b16 %v3600
    %v3878 = vunpack.c.h.b16 %v3600
    %v3879 = vunpack.c.l.b16 %v3601
    %v3880 = vunpack.c.h.b16 %v3601
    %v3881 = vunpack.c.l.b16 %v3602
    %v3882 = vunpack.c.h.b16 %v3602
    %v3883 = vunpack.c.l.b16 %v3603
    %v3884 = vunpack.c.h.b16 %v3603
    %v3885 = vunpack.c.l.b16 %v3604
    %v3886 = vunpack.c.h.b16 %v3604
    %v3887 = vunpack.c.l.b16 %v3605
    %v3888 = vunpack.c.h.b16 %v3605
    %v3889 = vunpack.c.l.b16 %v3606
    %v3890 = vunpack.c.h.b16 %v3606
    %v3891 = vunpack.c.l.b16 %v3607
    %v3892 = vunpack.c.h.b16 %v3607
    %v3893 = vunpack.c.l.b16 %v3608
    %v3894 = vunpack.c.h.b16 %v3608
    %v3895 = vunpack.c.l.b16 %v3609
    %v3896 = vunpack.c.h.b16 %v3609
    %v3897 = vunpack.c.l.b16 %v3610
    %v3898 = vunpack.c.h.b16 %v3610
    %v3899 = vpack.c.b16 %v3713, %v3707
    %v3900 = vpack.c.b16 %v3714, %v3708
    %v3901 = vpack.c.b16 %v3715, %v3709
    %v3902 = vpack.c.b16 %v3716, %v3710
    %v3903 = vpack.c.b16 %v3717, %v3711
    %v3904 = vpack.c.b16 %v3718, %v3712
    %v3905 = vpack.c.b16 %v3725, %v3719
    %v3906 = vpack.c.b16 %v3726, %v3720
    %v3907 = vpack.c.b16 %v3727, %v3721
    %v3908 = vpack.c.b16 %v3728, %v3722
    %v3909 = vpack.c.b16 %v3729, %v3723
    %v3910 = vpack.c.b16 %v3730, %v3724
    %v3911 = vpack.c.b16 %v3737, %v3731
    %v3912 = vpack.c.b16 %v3738, %v3732
    %v3913 = vpack.c.b16 %v3739, %v3733
    %v3914 = vpack.c.b16 %v3740, %v3734
    %v3915 = vpack.c.b16 %v3741, %v3735
    %v3916 = vpack.c.b16 %v3742, %v3736
    %v3917 = vpack.c.b16 %v3749, %v3743
    %v3918 = vpack.c.b16 %v3750, %v3744
    %v3919 = vpack.c.b16 %v3751, %v3745
    %v3920 = vpack.c.b16 %v3752, %v3746
    %v3921 = vpack.c.b16 %v3753, %v3747
    %v3922 = vpack.c.b16 %v3754, %v3748
    %v3923 = vpack.c.b16 %v3761, %v3755
    %v3924 = vpack.c.b16 %v3762, %v3756
    %v3925 = vpack.c.b16 %v3763, %v3757
    %v3926 = vpack.c.b16 %v3764, %v3758
    %v3927 = vpack.c.b16 %v3765, %v3759
    %v3928 = vpack.c.b16 %v3766, %v3760
    %v3929 = vpack.c.b16 %v3773, %v3767
    %v3930 = vpack.c.b16 %v3774, %v3768
    %v3931 = vpack.c.b16 %v3775, %v3769
    %v3932 = vpack.c.b16 %v3776, %v3770
    %v3933 = vpack.c.b16 %v3777, %v3771
    %v3934 = vpack.c.b16 %v3778, %v3772
    %v3935 = vpack.c.b16 %v3785, %v3779
    %v3936 = vpack.c.b16 %v3786, %v3780
    %v3937 = vpack.c.b16 %v3787, %v3781
    %v3938 = vpack.c.b16 %v3788, %v3782
    %v3939 = vpack.c.b16 %v3789, %v3783
    %v3940 = vpack.c.b16 %v3790, %v3784
    %v3941 = vpack.c.b16 %v3797, %v3791
    %v3942 = vpack.c.b16 %v3798, %v3792
    %v3943 = vpack.c.b16 %v3799, %v3793
    %v3944 = vpack.c.b16 %v3800, %v3794
    %v3945 = vpack.c.b16 %v3801, %v3795
    %v3946 = vpack.c.b16 %v3802, %v3796
    %v3947 = vpack.c.b16 %v3809, %v3803
    %v3948 = vpack.c.b16 %v3810, %v3804
    %v3949 = vpack.c.b16 %v3811, %v3805
    %v3950 = vpack.c.b16 %v3812, %v3806
    %v3951 = vpack.c.b16 %v3813, %v3807
    %v3952 = vpack.c.b16 %v3814, %v3808
    %v3953 = vpack.c.b16 %v3821, %v3815
    %v3954 = vpack.c.b16 %v3822, %v3816
    %v3955 = vpack.c.b16 %v3823, %v3817
    %v3956 = vpack.c.b16 %v3824, %v3818
    %v3957 = vpack.c.b16 %v3825, %v3819
    %v3958 = vpack.c.b16 %v3826, %v3820
    %v3959 = vpack.c.b16 %v3833, %v3827
    %v3960 = vpack.c.b16 %v3834, %v3828
    %v3961 = vpack.c.b16 %v3835, %v3829
    %v3962 = vpack.c.b16 %v3836, %v3830
    %v3963 = vpack.c.b16 %v3837, %v3831
    %v3964 = vpack.c.b16 %v3838, %v3832
    %v3965 = vpack.c.b16 %v3845, %v3839
    %v3966 = vpack.c.b16 %v3846, %v3840
    %v3967 = vpack.c.b16 %v3847, %v3841
    %v3968 = vpack.c.b16 %v3848, %v3842
    %v3969 = vpack.c.b16 %v3849, %v3843
    %v3970 = vpack.c.b16 %v3850, %v3844
    %v3971 = vpack.c.b16 %v3857, %v3851
    %v3972 = vpack.c.b16 %v3858, %v3852
    %v3973 = vpack.c.b16 %v3859, %v3853
    %v3974 = vpack.c.b16 %v3860, %v3854
    %v3975 = vpack.c.b16 %v3861, %v3855
    %v3976 = vpack.c.b16 %v3862, %v3856
    %v3977 = vpack.c.b16 %v3869, %v3863
    %v3978 = vpack.c.b16 %v3870, %v3864
    %v3979 = vpack.c.b16 %v3871, %v3865
    %v3980 = vpack.c.b16 %v3872, %v3866
    %v3981 = vpack.c.b16 %v3873, %v3867
    %v3982 = vpack.c.b16 %v3874, %v3868
    %v3983 = vpack.c.b16 %v3881, %v3875
    %v3984 = vpack.c.b16 %v3882, %v3876
    %v3985 = vpack.c.b16 %v3883, %v3877
    %v3986 = vpack.c.b16 %v3884, %v3878
    %v3987 = vpack.c.b16 %v3885, %v3879
    %v3988 = vpack.c.b16 %v3886, %v3880
    %v3989 = vpack.c.b16 %v3893, %v3887
    %v3990 = vpack.c.b16 %v3894, %v3888
    %v3991 = vpack.c.b16 %v3895, %v3889
    %v3992 = vpack.c.b16 %v3896, %v3890
    %v3993 = vpack.c.b16 %v3897, %v3891
    %v3994 = vpack.c.b16 %v3898, %v3892
    %4091 = vmatprep.subr.bf16.mxu0 %v3942
    %4092 = vmatpush1.bf16.msra.mxu0 %v3941
    %4093 = vmatprep.subr.bf16.mxu0 %v3936
    %4094 = vmatpush1.bf16.msra.mxu0 %v3935
    %4095 = vmatprep.subr.bf16.mxu0 %v3930
    %4096 = vmatpush1.bf16.msra.mxu0 %v3929
    %4097 = vmatprep.subr.bf16.mxu0 %v3924
    %4098 = vmatpush1.bf16.msra.mxu0 %v3923
    %4099 = vmatprep.subr.bf16.mxu0 %v3918
    %4100 = vmatpush1.bf16.msra.mxu0 %v3917
    %4101 = vmatprep.subr.bf16.mxu0 %v3912
    %4102 = vmatpush1.bf16.msra.mxu0 %v3911
    %4103 = vmatprep.subr.bf16.mxu0 %v3906
    %4104 = vmatpush1.bf16.msra.mxu0 %v3905
    %4105 = vmatprep.subr.bf16.mxu0 %v3900
    %4106 = vmatpush1.bf16.msra.mxu0 %v3899
    %4107 = vmatprep.subr.bf16.mxu0 %v3990
    %4108 = vmatpush2.bf16.msra.mxu0 %v3989
    %4109 = vmatprep.subr.bf16.mxu0 %v3984
    %4110 = vmatpush2.bf16.msra.mxu0 %v3983
    %4111 = vmatprep.subr.bf16.mxu0 %v3978
    %4112 = vmatpush2.bf16.msra.mxu0 %v3977
    %4113 = vmatprep.subr.bf16.mxu0 %v3972
    %4114 = vmatpush2.bf16.msra.mxu0 %v3971
    %4115 = vmatprep.subr.bf16.mxu0 %v3966
    %4116 = vmatpush2.bf16.msra.mxu0 %v3965
    %4117 = vmatprep.subr.bf16.mxu0 %v3960
    %4118 = vmatpush2.bf16.msra.mxu0 %v3959
    %4119 = vmatprep.subr.bf16.mxu0 %v3954
    %4120 = vmatpush2.bf16.msra.mxu0 %v3953
    %4121 = vmatprep.subr.bf16.mxu0 %v3948
    %4122 = vmatpush2.bf16.msra.mxu0 %v3947
    %4123 = vmatprep.mubr.bf16.mxu0 %v3514
    %4124 = vmatmul.mubr.bf16.gmra.mxu0 %v3513
    %v4125 = vpop.f32.mrf.mxu0
    %v4126 = vadd.f32 0.0, %v4125
    %v4127 = vpop.f32.mrf.mxu0
    %v4128 = vadd.f32 0.0, %v4127
    %v4129 = vpop.f32.mrf.mxu0
    %v4130 = vpop.f32.mrf.mxu0
    %4131 = vdwg.mxu0
    %4132 = vmatprep.subr.bf16.mxu0 %v3944
    %4133 = vmatpush1.bf16.msra.mxu0 %v3943
    %4134 = vmatprep.subr.bf16.mxu0 %v3938
    %4135 = vmatpush1.bf16.msra.mxu0 %v3937
    %4136 = vmatprep.subr.bf16.mxu0 %v3932
    %4137 = vmatpush1.bf16.msra.mxu0 %v3931
    %4138 = vmatprep.subr.bf16.mxu0 %v3926
    %4139 = vmatpush1.bf16.msra.mxu0 %v3925
    %4140 = vmatprep.subr.bf16.mxu0 %v3920
    %4141 = vmatpush1.bf16.msra.mxu0 %v3919
    %4142 = vmatprep.subr.bf16.mxu0 %v3914
    %4143 = vmatpush1.bf16.msra.mxu0 %v3913
    %4144 = vmatprep.subr.bf16.mxu0 %v3908
    %4145 = vmatpush1.bf16.msra.mxu0 %v3907
    %4146 = vmatprep.subr.bf16.mxu0 %v3902
    %4147 = vmatpush1.bf16.msra.mxu0 %v3901
    %4148 = vmatprep.subr.bf16.mxu0 %v3992
    %4149 = vmatpush2.bf16.msra.mxu0 %v3991
    %4150 = vmatprep.subr.bf16.mxu0 %v3986
    %4151 = vmatpush2.bf16.msra.mxu0 %v3985
    %4152 = vmatprep.subr.bf16.mxu0 %v3980
    %4153 = vmatpush2.bf16.msra.mxu0 %v3979
    %4154 = vmatprep.subr.bf16.mxu0 %v3974
    %4155 = vmatpush2.bf16.msra.mxu0 %v3973
    %4156 = vmatprep.subr.bf16.mxu0 %v3968
    %4157 = vmatpush2.bf16.msra.mxu0 %v3967
    %4158 = vmatprep.subr.bf16.mxu0 %v3962
    %4159 = vmatpush2.bf16.msra.mxu0 %v3961
    %4160 = vmatprep.subr.bf16.mxu0 %v3956
    %4161 = vmatpush2.bf16.msra.mxu0 %v3955
    %4162 = vmatprep.subr.bf16.mxu0 %v3950
    %4163 = vmatpush2.bf16.msra.mxu0 %v3949
    %4164 = vmatprep.mubr.bf16.mxu0 %v3514
    %4165 = vmatmul.mubr.bf16.gmra.mxu0 %v3513
    %v4166 = vpop.f32.mrf.mxu0
    %v4167 = vadd.f32 0.0, %v4166
    %v4168 = vpop.f32.mrf.mxu0
    %v4169 = vadd.f32 0.0, %v4168
    %v4170 = vpop.f32.mrf.mxu0
    %v4171 = vpop.f32.mrf.mxu0
    %4172 = vdwg.mxu0
    %4173 = vmatprep.subr.bf16.mxu0 %v3946
    %4174 = vmatpush1.bf16.msra.mxu0 %v3945
    %4175 = vmatprep.subr.bf16.mxu0 %v3940
    %4176 = vmatpush1.bf16.msra.mxu0 %v3939
    %4177 = vmatprep.subr.bf16.mxu0 %v3934
    %4178 = vmatpush1.bf16.msra.mxu0 %v3933
    %4179 = vmatprep.subr.bf16.mxu0 %v3928
    %4180 = vmatpush1.bf16.msra.mxu0 %v3927
    %4181 = vmatprep.subr.bf16.mxu0 %v3922
    %4182 = vmatpush1.bf16.msra.mxu0 %v3921
    %4183 = vmatprep.subr.bf16.mxu0 %v3916
    %4184 = vmatpush1.bf16.msra.mxu0 %v3915
    %4185 = vmatprep.subr.bf16.mxu0 %v3910
    %4186 = vmatpush1.bf16.msra.mxu0 %v3909
    %4187 = vmatprep.subr.bf16.mxu0 %v3904
    %4188 = vmatpush1.bf16.msra.mxu0 %v3903
    %4189 = vmatprep.subr.bf16.mxu0 %v3994
    %4190 = vmatpush2.bf16.msra.mxu0 %v3993
    %4191 = vmatprep.subr.bf16.mxu0 %v3988
    %4192 = vmatpush2.bf16.msra.mxu0 %v3987
    %4193 = vmatprep.subr.bf16.mxu0 %v3982
    %4194 = vmatpush2.bf16.msra.mxu0 %v3981
    %4195 = vmatprep.subr.bf16.mxu0 %v3976
    %4196 = vmatpush2.bf16.msra.mxu0 %v3975
    %4197 = vmatprep.subr.bf16.mxu0 %v3970
    %4198 = vmatpush2.bf16.msra.mxu0 %v3969
    %4199 = vmatprep.subr.bf16.mxu0 %v3964
    %4200 = vmatpush2.bf16.msra.mxu0 %v3963
    %4201 = vmatprep.subr.bf16.mxu0 %v3958
    %4202 = vmatpush2.bf16.msra.mxu0 %v3957
    %4203 = vmatprep.subr.bf16.mxu0 %v3952
    %4204 = vmatpush2.bf16.msra.mxu0 %v3951
    %4205 = vmatprep.mubr.bf16.mxu0 %v3514
    %4206 = vmatmul.mubr.bf16.gmra.mxu0 %v3513
    %v4207 = vpop.f32.mrf.mxu0
    %v4208 = vadd.f32 0.0, %v4207
    %v4209 = vpop.f32.mrf.mxu0
    %v4210 = vadd.f32 0.0, %v4209
    %v4211 = vpop.f32.mrf.mxu0
    %v4212 = vpop.f32.mrf.mxu0
    %4213 = vdwg.mxu0
    %v4214 = vadd.f32 %v3505, %v4126
    %v4215 = vadd.f32 %v3506, %v4128
    %v4216 = vadd.f32 %v3507, %v4167
    %v4217 = vadd.f32 %v3508, %v4169
    %v4218 = vadd.f32 %v3509, %v4208
    %v4219 = vadd.f32 %v3510, %v4210
    %v4220 = vld [vmem:[#allocation2 + $0x50] sm:$0xff]
    %v4221 = vld [vmem:[#allocation2 + $0x58] sm:$0xff]
    %v4222 = vpack.c.bf16 %v4220, %v4220
    %v4223 = vpack.c.bf16 %v4221, %v4221
    %v4224 = vld [vmem:[#allocation5 + $0xf00] sm:$0xff]
    %v4225 = vld [vmem:[#allocation5 + $0xf08] sm:$0xff]
    %v4226 = vld [vmem:[#allocation5 + $0xf10] sm:$0xff]
    %v4227 = vld [vmem:[#allocation5 + $0xf18] sm:$0xff]
    %v4228 = vld [vmem:[#allocation5 + $0xf20] sm:$0xff]
    %v4229 = vld [vmem:[#allocation5 + $0xf28] sm:$0xff]
    %v4230 = vld [vmem:[#allocation5 + $0xf30] sm:$0xff]
    %v4231 = vld [vmem:[#allocation5 + $0xf38] sm:$0xff]
    %v4232 = vld [vmem:[#allocation5 + $0xf40] sm:$0xff]
    %v4233 = vld [vmem:[#allocation5 + $0xf48] sm:$0xff]
    %v4234 = vld [vmem:[#allocation5 + $0xf50] sm:$0xff]
    %v4235 = vld [vmem:[#allocation5 + $0xf58] sm:$0xff]
    %v4236 = vld [vmem:[#allocation5 + $0xf60] sm:$0xff]
    %v4237 = vld [vmem:[#allocation5 + $0xf68] sm:$0xff]
    %v4238 = vld [vmem:[#allocation5 + $0xf70] sm:$0xff]
    %v4239 = vld [vmem:[#allocation5 + $0xf78] sm:$0xff]
    %v4240 = vld [vmem:[#allocation5 + $0xf80] sm:$0xff]
    %v4241 = vld [vmem:[#allocation5 + $0xf88] sm:$0xff]
    %v4242 = vld [vmem:[#allocation5 + $0xf90] sm:$0xff]
    %v4243 = vld [vmem:[#allocation5 + $0xf98] sm:$0xff]
    %v4244 = vld [vmem:[#allocation5 + $0xfa0] sm:$0xff]
    %v4245 = vld [vmem:[#allocation5 + $0xfa8] sm:$0xff]
    %v4246 = vld [vmem:[#allocation5 + $0xfb0] sm:$0xff]
    %v4247 = vld [vmem:[#allocation5 + $0xfb8] sm:$0xff]
    %v4248 = vld [vmem:[#allocation5 + $0xfc0] sm:$0xff]
    %v4249 = vld [vmem:[#allocation5 + $0xfc8] sm:$0xff]
    %v4250 = vld [vmem:[#allocation5 + $0xfd0] sm:$0xff]
    %v4251 = vld [vmem:[#allocation5 + $0xfd8] sm:$0xff]
    %v4252 = vld [vmem:[#allocation5 + $0xfe0] sm:$0xff]
    %v4253 = vld [vmem:[#allocation5 + $0xfe8] sm:$0xff]
    %v4254 = vld [vmem:[#allocation5 + $0xff0] sm:$0xff]
    %v4255 = vld [vmem:[#allocation5 + $0xff8] sm:$0xff]
    %v4256 = vld [vmem:[#allocation5 + $0x1000] sm:$0xff]
    %v4257 = vld [vmem:[#allocation5 + $0x1008] sm:$0xff]
    %v4258 = vld [vmem:[#allocation5 + $0x1010] sm:$0xff]
    %v4259 = vld [vmem:[#allocation5 + $0x1018] sm:$0xff]
    %v4260 = vld [vmem:[#allocation5 + $0x1020] sm:$0xff]
    %v4261 = vld [vmem:[#allocation5 + $0x1028] sm:$0xff]
    %v4262 = vld [vmem:[#allocation5 + $0x1030] sm:$0xff]
    %v4263 = vld [vmem:[#allocation5 + $0x1038] sm:$0xff]
    %v4264 = vld [vmem:[#allocation5 + $0x1040] sm:$0xff]
    %v4265 = vld [vmem:[#allocation5 + $0x1048] sm:$0xff]
    %v4266 = vld [vmem:[#allocation5 + $0x1050] sm:$0xff]
    %v4267 = vld [vmem:[#allocation5 + $0x1058] sm:$0xff]
    %v4268 = vld [vmem:[#allocation5 + $0x1060] sm:$0xff]
    %v4269 = vld [vmem:[#allocation5 + $0x1068] sm:$0xff]
    %v4270 = vld [vmem:[#allocation5 + $0x1070] sm:$0xff]
    %v4271 = vld [vmem:[#allocation5 + $0x1078] sm:$0xff]
    %v4272 = vld [vmem:[#allocation5 + $0x1080] sm:$0xff]
    %v4273 = vld [vmem:[#allocation5 + $0x1088] sm:$0xff]
    %v4274 = vld [vmem:[#allocation5 + $0x1090] sm:$0xff]
    %v4275 = vld [vmem:[#allocation5 + $0x1098] sm:$0xff]
    %v4276 = vld [vmem:[#allocation5 + $0x10a0] sm:$0xff]
    %v4277 = vld [vmem:[#allocation5 + $0x10a8] sm:$0xff]
    %v4278 = vld [vmem:[#allocation5 + $0x10b0] sm:$0xff]
    %v4279 = vld [vmem:[#allocation5 + $0x10b8] sm:$0xff]
    %v4280 = vld [vmem:[#allocation5 + $0x10c0] sm:$0xff]
    %v4281 = vld [vmem:[#allocation5 + $0x10c8] sm:$0xff]
    %v4282 = vld [vmem:[#allocation5 + $0x10d0] sm:$0xff]
    %v4283 = vld [vmem:[#allocation5 + $0x10d8] sm:$0xff]
    %v4284 = vld [vmem:[#allocation5 + $0x10e0] sm:$0xff]
    %v4285 = vld [vmem:[#allocation5 + $0x10e8] sm:$0xff]
    %v4286 = vld [vmem:[#allocation5 + $0x10f0] sm:$0xff]
    %v4287 = vld [vmem:[#allocation5 + $0x10f8] sm:$0xff]
    %v4288 = vld [vmem:[#allocation5 + $0x1100] sm:$0xff]
    %v4289 = vld [vmem:[#allocation5 + $0x1108] sm:$0xff]
    %v4290 = vld [vmem:[#allocation5 + $0x1110] sm:$0xff]
    %v4291 = vld [vmem:[#allocation5 + $0x1118] sm:$0xff]
    %v4292 = vld [vmem:[#allocation5 + $0x1120] sm:$0xff]
    %v4293 = vld [vmem:[#allocation5 + $0x1128] sm:$0xff]
    %v4294 = vld [vmem:[#allocation5 + $0x1130] sm:$0xff]
    %v4295 = vld [vmem:[#allocation5 + $0x1138] sm:$0xff]
    %v4296 = vld [vmem:[#allocation5 + $0x1140] sm:$0xff]
    %v4297 = vld [vmem:[#allocation5 + $0x1148] sm:$0xff]
    %v4298 = vld [vmem:[#allocation5 + $0x1150] sm:$0xff]
    %v4299 = vld [vmem:[#allocation5 + $0x1158] sm:$0xff]
    %v4300 = vld [vmem:[#allocation5 + $0x1160] sm:$0xff]
    %v4301 = vld [vmem:[#allocation5 + $0x1168] sm:$0xff]
    %v4302 = vld [vmem:[#allocation5 + $0x1170] sm:$0xff]
    %v4303 = vld [vmem:[#allocation5 + $0x1178] sm:$0xff]
    %v4304 = vld [vmem:[#allocation5 + $0x1180] sm:$0xff]
    %v4305 = vld [vmem:[#allocation5 + $0x1188] sm:$0xff]
    %v4306 = vld [vmem:[#allocation5 + $0x1190] sm:$0xff]
    %v4307 = vld [vmem:[#allocation5 + $0x1198] sm:$0xff]
    %v4308 = vld [vmem:[#allocation5 + $0x11a0] sm:$0xff]
    %v4309 = vld [vmem:[#allocation5 + $0x11a8] sm:$0xff]
    %v4310 = vld [vmem:[#allocation5 + $0x11b0] sm:$0xff]
    %v4311 = vld [vmem:[#allocation5 + $0x11b8] sm:$0xff]
    %v4312 = vld [vmem:[#allocation5 + $0x11c0] sm:$0xff]
    %v4313 = vld [vmem:[#allocation5 + $0x11c8] sm:$0xff]
    %v4314 = vld [vmem:[#allocation5 + $0x11d0] sm:$0xff]
    %v4315 = vld [vmem:[#allocation5 + $0x11d8] sm:$0xff]
    %v4316 = vld [vmem:[#allocation5 + $0x11e0] sm:$0xff]
    %v4317 = vld [vmem:[#allocation5 + $0x11e8] sm:$0xff]
    %v4318 = vld [vmem:[#allocation5 + $0x11f0] sm:$0xff]
    %v4319 = vld [vmem:[#allocation5 + $0x11f8] sm:$0xff]
    %v4416 = vunpack.c.l.b16 %v4224
    %v4417 = vunpack.c.h.b16 %v4224
    %v4418 = vunpack.c.l.b16 %v4225
    %v4419 = vunpack.c.h.b16 %v4225
    %v4420 = vunpack.c.l.b16 %v4226
    %v4421 = vunpack.c.h.b16 %v4226
    %v4422 = vunpack.c.l.b16 %v4227
    %v4423 = vunpack.c.h.b16 %v4227
    %v4424 = vunpack.c.l.b16 %v4228
    %v4425 = vunpack.c.h.b16 %v4228
    %v4426 = vunpack.c.l.b16 %v4229
    %v4427 = vunpack.c.h.b16 %v4229
    %v4428 = vunpack.c.l.b16 %v4230
    %v4429 = vunpack.c.h.b16 %v4230
    %v4430 = vunpack.c.l.b16 %v4231
    %v4431 = vunpack.c.h.b16 %v4231
    %v4432 = vunpack.c.l.b16 %v4232
    %v4433 = vunpack.c.h.b16 %v4232
    %v4434 = vunpack.c.l.b16 %v4233
    %v4435 = vunpack.c.h.b16 %v4233
    %v4436 = vunpack.c.l.b16 %v4234
    %v4437 = vunpack.c.h.b16 %v4234
    %v4438 = vunpack.c.l.b16 %v4235
    %v4439 = vunpack.c.h.b16 %v4235
    %v4440 = vunpack.c.l.b16 %v4236
    %v4441 = vunpack.c.h.b16 %v4236
    %v4442 = vunpack.c.l.b16 %v4237
    %v4443 = vunpack.c.h.b16 %v4237
    %v4444 = vunpack.c.l.b16 %v4238
    %v4445 = vunpack.c.h.b16 %v4238
    %v4446 = vunpack.c.l.b16 %v4239
    %v4447 = vunpack.c.h.b16 %v4239
    %v4448 = vunpack.c.l.b16 %v4240
    %v4449 = vunpack.c.h.b16 %v4240
    %v4450 = vunpack.c.l.b16 %v4241
    %v4451 = vunpack.c.h.b16 %v4241
    %v4452 = vunpack.c.l.b16 %v4242
    %v4453 = vunpack.c.h.b16 %v4242
    %v4454 = vunpack.c.l.b16 %v4243
    %v4455 = vunpack.c.h.b16 %v4243
    %v4456 = vunpack.c.l.b16 %v4244
    %v4457 = vunpack.c.h.b16 %v4244
    %v4458 = vunpack.c.l.b16 %v4245
    %v4459 = vunpack.c.h.b16 %v4245
    %v4460 = vunpack.c.l.b16 %v4246
    %v4461 = vunpack.c.h.b16 %v4246
    %v4462 = vunpack.c.l.b16 %v4247
    %v4463 = vunpack.c.h.b16 %v4247
    %v4464 = vunpack.c.l.b16 %v4248
    %v4465 = vunpack.c.h.b16 %v4248
    %v4466 = vunpack.c.l.b16 %v4249
    %v4467 = vunpack.c.h.b16 %v4249
    %v4468 = vunpack.c.l.b16 %v4250
    %v4469 = vunpack.c.h.b16 %v4250
    %v4470 = vunpack.c.l.b16 %v4251
    %v4471 = vunpack.c.h.b16 %v4251
    %v4472 = vunpack.c.l.b16 %v4252
    %v4473 = vunpack.c.h.b16 %v4252
    %v4474 = vunpack.c.l.b16 %v4253
    %v4475 = vunpack.c.h.b16 %v4253
    %v4476 = vunpack.c.l.b16 %v4254
    %v4477 = vunpack.c.h.b16 %v4254
    %v4478 = vunpack.c.l.b16 %v4255
    %v4479 = vunpack.c.h.b16 %v4255
    %v4480 = vunpack.c.l.b16 %v4256
    %v4481 = vunpack.c.h.b16 %v4256
    %v4482 = vunpack.c.l.b16 %v4257
    %v4483 = vunpack.c.h.b16 %v4257
    %v4484 = vunpack.c.l.b16 %v4258
    %v4485 = vunpack.c.h.b16 %v4258
    %v4486 = vunpack.c.l.b16 %v4259
    %v4487 = vunpack.c.h.b16 %v4259
    %v4488 = vunpack.c.l.b16 %v4260
    %v4489 = vunpack.c.h.b16 %v4260
    %v4490 = vunpack.c.l.b16 %v4261
    %v4491 = vunpack.c.h.b16 %v4261
    %v4492 = vunpack.c.l.b16 %v4262
    %v4493 = vunpack.c.h.b16 %v4262
    %v4494 = vunpack.c.l.b16 %v4263
    %v4495 = vunpack.c.h.b16 %v4263
    %v4496 = vunpack.c.l.b16 %v4264
    %v4497 = vunpack.c.h.b16 %v4264
    %v4498 = vunpack.c.l.b16 %v4265
    %v4499 = vunpack.c.h.b16 %v4265
    %v4500 = vunpack.c.l.b16 %v4266
    %v4501 = vunpack.c.h.b16 %v4266
    %v4502 = vunpack.c.l.b16 %v4267
    %v4503 = vunpack.c.h.b16 %v4267
    %v4504 = vunpack.c.l.b16 %v4268
    %v4505 = vunpack.c.h.b16 %v4268
    %v4506 = vunpack.c.l.b16 %v4269
    %v4507 = vunpack.c.h.b16 %v4269
    %v4508 = vunpack.c.l.b16 %v4270
    %v4509 = vunpack.c.h.b16 %v4270
    %v4510 = vunpack.c.l.b16 %v4271
    %v4511 = vunpack.c.h.b16 %v4271
    %v4512 = vunpack.c.l.b16 %v4272
    %v4513 = vunpack.c.h.b16 %v4272
    %v4514 = vunpack.c.l.b16 %v4273
    %v4515 = vunpack.c.h.b16 %v4273
    %v4516 = vunpack.c.l.b16 %v4274
    %v4517 = vunpack.c.h.b16 %v4274
    %v4518 = vunpack.c.l.b16 %v4275
    %v4519 = vunpack.c.h.b16 %v4275
    %v4520 = vunpack.c.l.b16 %v4276
    %v4521 = vunpack.c.h.b16 %v4276
    %v4522 = vunpack.c.l.b16 %v4277
    %v4523 = vunpack.c.h.b16 %v4277
    %v4524 = vunpack.c.l.b16 %v4278
    %v4525 = vunpack.c.h.b16 %v4278
    %v4526 = vunpack.c.l.b16 %v4279
    %v4527 = vunpack.c.h.b16 %v4279
    %v4528 = vunpack.c.l.b16 %v4280
    %v4529 = vunpack.c.h.b16 %v4280
    %v4530 = vunpack.c.l.b16 %v4281
    %v4531 = vunpack.c.h.b16 %v4281
    %v4532 = vunpack.c.l.b16 %v4282
    %v4533 = vunpack.c.h.b16 %v4282
    %v4534 = vunpack.c.l.b16 %v4283
    %v4535 = vunpack.c.h.b16 %v4283
    %v4536 = vunpack.c.l.b16 %v4284
    %v4537 = vunpack.c.h.b16 %v4284
    %v4538 = vunpack.c.l.b16 %v4285
    %v4539 = vunpack.c.h.b16 %v4285
    %v4540 = vunpack.c.l.b16 %v4286
    %v4541 = vunpack.c.h.b16 %v4286
    %v4542 = vunpack.c.l.b16 %v4287
    %v4543 = vunpack.c.h.b16 %v4287
    %v4544 = vunpack.c.l.b16 %v4288
    %v4545 = vunpack.c.h.b16 %v4288
    %v4546 = vunpack.c.l.b16 %v4289
    %v4547 = vunpack.c.h.b16 %v4289
    %v4548 = vunpack.c.l.b16 %v4290
    %v4549 = vunpack.c.h.b16 %v4290
    %v4550 = vunpack.c.l.b16 %v4291
    %v4551 = vunpack.c.h.b16 %v4291
    %v4552 = vunpack.c.l.b16 %v4292
    %v4553 = vunpack.c.h.b16 %v4292
    %v4554 = vunpack.c.l.b16 %v4293
    %v4555 = vunpack.c.h.b16 %v4293
    %v4556 = vunpack.c.l.b16 %v4294
    %v4557 = vunpack.c.h.b16 %v4294
    %v4558 = vunpack.c.l.b16 %v4295
    %v4559 = vunpack.c.h.b16 %v4295
    %v4560 = vunpack.c.l.b16 %v4296
    %v4561 = vunpack.c.h.b16 %v4296
    %v4562 = vunpack.c.l.b16 %v4297
    %v4563 = vunpack.c.h.b16 %v4297
    %v4564 = vunpack.c.l.b16 %v4298
    %v4565 = vunpack.c.h.b16 %v4298
    %v4566 = vunpack.c.l.b16 %v4299
    %v4567 = vunpack.c.h.b16 %v4299
    %v4568 = vunpack.c.l.b16 %v4300
    %v4569 = vunpack.c.h.b16 %v4300
    %v4570 = vunpack.c.l.b16 %v4301
    %v4571 = vunpack.c.h.b16 %v4301
    %v4572 = vunpack.c.l.b16 %v4302
    %v4573 = vunpack.c.h.b16 %v4302
    %v4574 = vunpack.c.l.b16 %v4303
    %v4575 = vunpack.c.h.b16 %v4303
    %v4576 = vunpack.c.l.b16 %v4304
    %v4577 = vunpack.c.h.b16 %v4304
    %v4578 = vunpack.c.l.b16 %v4305
    %v4579 = vunpack.c.h.b16 %v4305
    %v4580 = vunpack.c.l.b16 %v4306
    %v4581 = vunpack.c.h.b16 %v4306
    %v4582 = vunpack.c.l.b16 %v4307
    %v4583 = vunpack.c.h.b16 %v4307
    %v4584 = vunpack.c.l.b16 %v4308
    %v4585 = vunpack.c.h.b16 %v4308
    %v4586 = vunpack.c.l.b16 %v4309
    %v4587 = vunpack.c.h.b16 %v4309
    %v4588 = vunpack.c.l.b16 %v4310
    %v4589 = vunpack.c.h.b16 %v4310
    %v4590 = vunpack.c.l.b16 %v4311
    %v4591 = vunpack.c.h.b16 %v4311
    %v4592 = vunpack.c.l.b16 %v4312
    %v4593 = vunpack.c.h.b16 %v4312
    %v4594 = vunpack.c.l.b16 %v4313
    %v4595 = vunpack.c.h.b16 %v4313
    %v4596 = vunpack.c.l.b16 %v4314
    %v4597 = vunpack.c.h.b16 %v4314
    %v4598 = vunpack.c.l.b16 %v4315
    %v4599 = vunpack.c.h.b16 %v4315
    %v4600 = vunpack.c.l.b16 %v4316
    %v4601 = vunpack.c.h.b16 %v4316
    %v4602 = vunpack.c.l.b16 %v4317
    %v4603 = vunpack.c.h.b16 %v4317
    %v4604 = vunpack.c.l.b16 %v4318
    %v4605 = vunpack.c.h.b16 %v4318
    %v4606 = vunpack.c.l.b16 %v4319
    %v4607 = vunpack.c.h.b16 %v4319
    %v4608 = vpack.c.b16 %v4422, %v4416
    %v4609 = vpack.c.b16 %v4423, %v4417
    %v4610 = vpack.c.b16 %v4424, %v4418
    %v4611 = vpack.c.b16 %v4425, %v4419
    %v4612 = vpack.c.b16 %v4426, %v4420
    %v4613 = vpack.c.b16 %v4427, %v4421
    %v4614 = vpack.c.b16 %v4434, %v4428
    %v4615 = vpack.c.b16 %v4435, %v4429
    %v4616 = vpack.c.b16 %v4436, %v4430
    %v4617 = vpack.c.b16 %v4437, %v4431
    %v4618 = vpack.c.b16 %v4438, %v4432
    %v4619 = vpack.c.b16 %v4439, %v4433
    %v4620 = vpack.c.b16 %v4446, %v4440
    %v4621 = vpack.c.b16 %v4447, %v4441
    %v4622 = vpack.c.b16 %v4448, %v4442
    %v4623 = vpack.c.b16 %v4449, %v4443
    %v4624 = vpack.c.b16 %v4450, %v4444
    %v4625 = vpack.c.b16 %v4451, %v4445
    %v4626 = vpack.c.b16 %v4458, %v4452
    %v4627 = vpack.c.b16 %v4459, %v4453
    %v4628 = vpack.c.b16 %v4460, %v4454
    %v4629 = vpack.c.b16 %v4461, %v4455
    %v4630 = vpack.c.b16 %v4462, %v4456
    %v4631 = vpack.c.b16 %v4463, %v4457
    %v4632 = vpack.c.b16 %v4470, %v4464
    %v4633 = vpack.c.b16 %v4471, %v4465
    %v4634 = vpack.c.b16 %v4472, %v4466
    %v4635 = vpack.c.b16 %v4473, %v4467
    %v4636 = vpack.c.b16 %v4474, %v4468
    %v4637 = vpack.c.b16 %v4475, %v4469
    %v4638 = vpack.c.b16 %v4482, %v4476
    %v4639 = vpack.c.b16 %v4483, %v4477
    %v4640 = vpack.c.b16 %v4484, %v4478
    %v4641 = vpack.c.b16 %v4485, %v4479
    %v4642 = vpack.c.b16 %v4486, %v4480
    %v4643 = vpack.c.b16 %v4487, %v4481
    %v4644 = vpack.c.b16 %v4494, %v4488
    %v4645 = vpack.c.b16 %v4495, %v4489
    %v4646 = vpack.c.b16 %v4496, %v4490
    %v4647 = vpack.c.b16 %v4497, %v4491
    %v4648 = vpack.c.b16 %v4498, %v4492
    %v4649 = vpack.c.b16 %v4499, %v4493
    %v4650 = vpack.c.b16 %v4506, %v4500
    %v4651 = vpack.c.b16 %v4507, %v4501
    %v4652 = vpack.c.b16 %v4508, %v4502
    %v4653 = vpack.c.b16 %v4509, %v4503
    %v4654 = vpack.c.b16 %v4510, %v4504
    %v4655 = vpack.c.b16 %v4511, %v4505
    %v4656 = vpack.c.b16 %v4518, %v4512
    %v4657 = vpack.c.b16 %v4519, %v4513
    %v4658 = vpack.c.b16 %v4520, %v4514
    %v4659 = vpack.c.b16 %v4521, %v4515
    %v4660 = vpack.c.b16 %v4522, %v4516
    %v4661 = vpack.c.b16 %v4523, %v4517
    %v4662 = vpack.c.b16 %v4530, %v4524
    %v4663 = vpack.c.b16 %v4531, %v4525
    %v4664 = vpack.c.b16 %v4532, %v4526
    %v4665 = vpack.c.b16 %v4533, %v4527
    %v4666 = vpack.c.b16 %v4534, %v4528
    %v4667 = vpack.c.b16 %v4535, %v4529
    %v4668 = vpack.c.b16 %v4542, %v4536
    %v4669 = vpack.c.b16 %v4543, %v4537
    %v4670 = vpack.c.b16 %v4544, %v4538
    %v4671 = vpack.c.b16 %v4545, %v4539
    %v4672 = vpack.c.b16 %v4546, %v4540
    %v4673 = vpack.c.b16 %v4547, %v4541
    %v4674 = vpack.c.b16 %v4554, %v4548
    %v4675 = vpack.c.b16 %v4555, %v4549
    %v4676 = vpack.c.b16 %v4556, %v4550
    %v4677 = vpack.c.b16 %v4557, %v4551
    %v4678 = vpack.c.b16 %v4558, %v4552
    %v4679 = vpack.c.b16 %v4559, %v4553
    %v4680 = vpack.c.b16 %v4566, %v4560
    %v4681 = vpack.c.b16 %v4567, %v4561
    %v4682 = vpack.c.b16 %v4568, %v4562
    %v4683 = vpack.c.b16 %v4569, %v4563
    %v4684 = vpack.c.b16 %v4570, %v4564
    %v4685 = vpack.c.b16 %v4571, %v4565
    %v4686 = vpack.c.b16 %v4578, %v4572
    %v4687 = vpack.c.b16 %v4579, %v4573
    %v4688 = vpack.c.b16 %v4580, %v4574
    %v4689 = vpack.c.b16 %v4581, %v4575
    %v4690 = vpack.c.b16 %v4582, %v4576
    %v4691 = vpack.c.b16 %v4583, %v4577
    %v4692 = vpack.c.b16 %v4590, %v4584
    %v4693 = vpack.c.b16 %v4591, %v4585
    %v4694 = vpack.c.b16 %v4592, %v4586
    %v4695 = vpack.c.b16 %v4593, %v4587
    %v4696 = vpack.c.b16 %v4594, %v4588
    %v4697 = vpack.c.b16 %v4595, %v4589
    %v4698 = vpack.c.b16 %v4602, %v4596
    %v4699 = vpack.c.b16 %v4603, %v4597
    %v4700 = vpack.c.b16 %v4604, %v4598
    %v4701 = vpack.c.b16 %v4605, %v4599
    %v4702 = vpack.c.b16 %v4606, %v4600
    %v4703 = vpack.c.b16 %v4607, %v4601
    %4800 = vmatprep.subr.bf16.mxu0 %v4651
    %4801 = vmatpush1.bf16.msra.mxu0 %v4650
    %4802 = vmatprep.subr.bf16.mxu0 %v4645
    %4803 = vmatpush1.bf16.msra.mxu0 %v4644
    %4804 = vmatprep.subr.bf16.mxu0 %v4639
    %4805 = vmatpush1.bf16.msra.mxu0 %v4638
    %4806 = vmatprep.subr.bf16.mxu0 %v4633
    %4807 = vmatpush1.bf16.msra.mxu0 %v4632
    %4808 = vmatprep.subr.bf16.mxu0 %v4627
    %4809 = vmatpush1.bf16.msra.mxu0 %v4626
    %4810 = vmatprep.subr.bf16.mxu0 %v4621
    %4811 = vmatpush1.bf16.msra.mxu0 %v4620
    %4812 = vmatprep.subr.bf16.mxu0 %v4615
    %4813 = vmatpush1.bf16.msra.mxu0 %v4614
    %4814 = vmatprep.subr.bf16.mxu0 %v4609
    %4815 = vmatpush1.bf16.msra.mxu0 %v4608
    %4816 = vmatprep.subr.bf16.mxu0 %v4699
    %4817 = vmatpush2.bf16.msra.mxu0 %v4698
    %4818 = vmatprep.subr.bf16.mxu0 %v4693
    %4819 = vmatpush2.bf16.msra.mxu0 %v4692
    %4820 = vmatprep.subr.bf16.mxu0 %v4687
    %4821 = vmatpush2.bf16.msra.mxu0 %v4686
    %4822 = vmatprep.subr.bf16.mxu0 %v4681
    %4823 = vmatpush2.bf16.msra.mxu0 %v4680
    %4824 = vmatprep.subr.bf16.mxu0 %v4675
    %4825 = vmatpush2.bf16.msra.mxu0 %v4674
    %4826 = vmatprep.subr.bf16.mxu0 %v4669
    %4827 = vmatpush2.bf16.msra.mxu0 %v4668
    %4828 = vmatprep.subr.bf16.mxu0 %v4663
    %4829 = vmatpush2.bf16.msra.mxu0 %v4662
    %4830 = vmatprep.subr.bf16.mxu0 %v4657
    %4831 = vmatpush2.bf16.msra.mxu0 %v4656
    %4832 = vmatprep.mubr.bf16.mxu0 %v4223
    %4833 = vmatmul.mubr.bf16.gmra.mxu0 %v4222
    %v4834 = vpop.f32.mrf.mxu0
    %v4835 = vadd.f32 0.0, %v4834
    %v4836 = vpop.f32.mrf.mxu0
    %v4837 = vadd.f32 0.0, %v4836
    %v4838 = vpop.f32.mrf.mxu0
    %v4839 = vpop.f32.mrf.mxu0
    %4840 = vdwg.mxu0
    %4841 = vmatprep.subr.bf16.mxu0 %v4653
    %4842 = vmatpush1.bf16.msra.mxu0 %v4652
    %4843 = vmatprep.subr.bf16.mxu0 %v4647
    %4844 = vmatpush1.bf16.msra.mxu0 %v4646
    %4845 = vmatprep.subr.bf16.mxu0 %v4641
    %4846 = vmatpush1.bf16.msra.mxu0 %v4640
    %4847 = vmatprep.subr.bf16.mxu0 %v4635
    %4848 = vmatpush1.bf16.msra.mxu0 %v4634
    %4849 = vmatprep.subr.bf16.mxu0 %v4629
    %4850 = vmatpush1.bf16.msra.mxu0 %v4628
    %4851 = vmatprep.subr.bf16.mxu0 %v4623
    %4852 = vmatpush1.bf16.msra.mxu0 %v4622
    %4853 = vmatprep.subr.bf16.mxu0 %v4617
    %4854 = vmatpush1.bf16.msra.mxu0 %v4616
    %4855 = vmatprep.subr.bf16.mxu0 %v4611
    %4856 = vmatpush1.bf16.msra.mxu0 %v4610
    %4857 = vmatprep.subr.bf16.mxu0 %v4701
    %4858 = vmatpush2.bf16.msra.mxu0 %v4700
    %4859 = vmatprep.subr.bf16.mxu0 %v4695
    %4860 = vmatpush2.bf16.msra.mxu0 %v4694
    %4861 = vmatprep.subr.bf16.mxu0 %v4689
    %4862 = vmatpush2.bf16.msra.mxu0 %v4688
    %4863 = vmatprep.subr.bf16.mxu0 %v4683
    %4864 = vmatpush2.bf16.msra.mxu0 %v4682
    %4865 = vmatprep.subr.bf16.mxu0 %v4677
    %4866 = vmatpush2.bf16.msra.mxu0 %v4676
    %4867 = vmatprep.subr.bf16.mxu0 %v4671
    %4868 = vmatpush2.bf16.msra.mxu0 %v4670
    %4869 = vmatprep.subr.bf16.mxu0 %v4665
    %4870 = vmatpush2.bf16.msra.mxu0 %v4664
    %4871 = vmatprep.subr.bf16.mxu0 %v4659
    %4872 = vmatpush2.bf16.msra.mxu0 %v4658
    %4873 = vmatprep.mubr.bf16.mxu0 %v4223
    %4874 = vmatmul.mubr.bf16.gmra.mxu0 %v4222
    %v4875 = vpop.f32.mrf.mxu0
    %v4876 = vadd.f32 0.0, %v4875
    %v4877 = vpop.f32.mrf.mxu0
    %v4878 = vadd.f32 0.0, %v4877
    %v4879 = vpop.f32.mrf.mxu0
    %v4880 = vpop.f32.mrf.mxu0
    %4881 = vdwg.mxu0
    %4882 = vmatprep.subr.bf16.mxu0 %v4655
    %4883 = vmatpush1.bf16.msra.mxu0 %v4654
    %4884 = vmatprep.subr.bf16.mxu0 %v4649
    %4885 = vmatpush1.bf16.msra.mxu0 %v4648
    %4886 = vmatprep.subr.bf16.mxu0 %v4643
    %4887 = vmatpush1.bf16.msra.mxu0 %v4642
    %4888 = vmatprep.subr.bf16.mxu0 %v4637
    %4889 = vmatpush1.bf16.msra.mxu0 %v4636
    %4890 = vmatprep.subr.bf16.mxu0 %v4631
    %4891 = vmatpush1.bf16.msra.mxu0 %v4630
    %4892 = vmatprep.subr.bf16.mxu0 %v4625
    %4893 = vmatpush1.bf16.msra.mxu0 %v4624
    %4894 = vmatprep.subr.bf16.mxu0 %v4619
    %4895 = vmatpush1.bf16.msra.mxu0 %v4618
    %4896 = vmatprep.subr.bf16.mxu0 %v4613
    %4897 = vmatpush1.bf16.msra.mxu0 %v4612
    %4898 = vmatprep.subr.bf16.mxu0 %v4703
    %4899 = vmatpush2.bf16.msra.mxu0 %v4702
    %4900 = vmatprep.subr.bf16.mxu0 %v4697
    %4901 = vmatpush2.bf16.msra.mxu0 %v4696
    %4902 = vmatprep.subr.bf16.mxu0 %v4691
    %4903 = vmatpush2.bf16.msra.mxu0 %v4690
    %4904 = vmatprep.subr.bf16.mxu0 %v4685
    %4905 = vmatpush2.bf16.msra.mxu0 %v4684
    %4906 = vmatprep.subr.bf16.mxu0 %v4679
    %4907 = vmatpush2.bf16.msra.mxu0 %v4678
    %4908 = vmatprep.subr.bf16.mxu0 %v4673
    %4909 = vmatpush2.bf16.msra.mxu0 %v4672
    %4910 = vmatprep.subr.bf16.mxu0 %v4667
    %4911 = vmatpush2.bf16.msra.mxu0 %v4666
    %4912 = vmatprep.subr.bf16.mxu0 %v4661
    %4913 = vmatpush2.bf16.msra.mxu0 %v4660
    %4914 = vmatprep.mubr.bf16.mxu0 %v4223
    %4915 = vmatmul.mubr.bf16.gmra.mxu0 %v4222
    %v4916 = vpop.f32.mrf.mxu0
    %v4917 = vadd.f32 0.0, %v4916
    %v4918 = vpop.f32.mrf.mxu0
    %v4919 = vadd.f32 0.0, %v4918
    %v4920 = vpop.f32.mrf.mxu0
    %v4921 = vpop.f32.mrf.mxu0
    %4922 = vdwg.mxu0
    %v4923 = vadd.f32 %v4214, %v4835
    %v4924 = vadd.f32 %v4215, %v4837
    %v4925 = vadd.f32 %v4216, %v4876
    %v4926 = vadd.f32 %v4217, %v4878
    %v4927 = vadd.f32 %v4218, %v4917
    %v4928 = vadd.f32 %v4219, %v4919
    %v4929 = vld [vmem:[#allocation2 + $0x60] sm:$0xff]
    %v4930 = vld [vmem:[#allocation2 + $0x68] sm:$0xff]
    %v4931 = vpack.c.bf16 %v4929, %v4929
    %v4932 = vpack.c.bf16 %v4930, %v4930
    %v4933 = vld [vmem:[#allocation5 + $0x1200] sm:$0xff]
    %v4934 = vld [vmem:[#allocation5 + $0x1208] sm:$0xff]
    %v4935 = vld [vmem:[#allocation5 + $0x1210] sm:$0xff]
    %v4936 = vld [vmem:[#allocation5 + $0x1218] sm:$0xff]
    %v4937 = vld [vmem:[#allocation5 + $0x1220] sm:$0xff]
    %v4938 = vld [vmem:[#allocation5 + $0x1228] sm:$0xff]
    %v4939 = vld [vmem:[#allocation5 + $0x1230] sm:$0xff]
    %v4940 = vld [vmem:[#allocation5 + $0x1238] sm:$0xff]
    %v4941 = vld [vmem:[#allocation5 + $0x1240] sm:$0xff]
    %v4942 = vld [vmem:[#allocation5 + $0x1248] sm:$0xff]
    %v4943 = vld [vmem:[#allocation5 + $0x1250] sm:$0xff]
    %v4944 = vld [vmem:[#allocation5 + $0x1258] sm:$0xff]
    %v4945 = vld [vmem:[#allocation5 + $0x1260] sm:$0xff]
    %v4946 = vld [vmem:[#allocation5 + $0x1268] sm:$0xff]
    %v4947 = vld [vmem:[#allocation5 + $0x1270] sm:$0xff]
    %v4948 = vld [vmem:[#allocation5 + $0x1278] sm:$0xff]
    %v4949 = vld [vmem:[#allocation5 + $0x1280] sm:$0xff]
    %v4950 = vld [vmem:[#allocation5 + $0x1288] sm:$0xff]
    %v4951 = vld [vmem:[#allocation5 + $0x1290] sm:$0xff]
    %v4952 = vld [vmem:[#allocation5 + $0x1298] sm:$0xff]
    %v4953 = vld [vmem:[#allocation5 + $0x12a0] sm:$0xff]
    %v4954 = vld [vmem:[#allocation5 + $0x12a8] sm:$0xff]
    %v4955 = vld [vmem:[#allocation5 + $0x12b0] sm:$0xff]
    %v4956 = vld [vmem:[#allocation5 + $0x12b8] sm:$0xff]
    %v4957 = vld [vmem:[#allocation5 + $0x12c0] sm:$0xff]
    %v4958 = vld [vmem:[#allocation5 + $0x12c8] sm:$0xff]
    %v4959 = vld [vmem:[#allocation5 + $0x12d0] sm:$0xff]
    %v4960 = vld [vmem:[#allocation5 + $0x12d8] sm:$0xff]
    %v4961 = vld [vmem:[#allocation5 + $0x12e0] sm:$0xff]
    %v4962 = vld [vmem:[#allocation5 + $0x12e8] sm:$0xff]
    %v4963 = vld [vmem:[#allocation5 + $0x12f0] sm:$0xff]
    %v4964 = vld [vmem:[#allocation5 + $0x12f8] sm:$0xff]
    %v4965 = vld [vmem:[#allocation5 + $0x1300] sm:$0xff]
    %v4966 = vld [vmem:[#allocation5 + $0x1308] sm:$0xff]
    %v4967 = vld [vmem:[#allocation5 + $0x1310] sm:$0xff]
    %v4968 = vld [vmem:[#allocation5 + $0x1318] sm:$0xff]
    %v4969 = vld [vmem:[#allocation5 + $0x1320] sm:$0xff]
    %v4970 = vld [vmem:[#allocation5 + $0x1328] sm:$0xff]
    %v4971 = vld [vmem:[#allocation5 + $0x1330] sm:$0xff]
    %v4972 = vld [vmem:[#allocation5 + $0x1338] sm:$0xff]
    %v4973 = vld [vmem:[#allocation5 + $0x1340] sm:$0xff]
    %v4974 = vld [vmem:[#allocation5 + $0x1348] sm:$0xff]
    %v4975 = vld [vmem:[#allocation5 + $0x1350] sm:$0xff]
    %v4976 = vld [vmem:[#allocation5 + $0x1358] sm:$0xff]
    %v4977 = vld [vmem:[#allocation5 + $0x1360] sm:$0xff]
    %v4978 = vld [vmem:[#allocation5 + $0x1368] sm:$0xff]
    %v4979 = vld [vmem:[#allocation5 + $0x1370] sm:$0xff]
    %v4980 = vld [vmem:[#allocation5 + $0x1378] sm:$0xff]
    %v4981 = vld [vmem:[#allocation5 + $0x1380] sm:$0xff]
    %v4982 = vld [vmem:[#allocation5 + $0x1388] sm:$0xff]
    %v4983 = vld [vmem:[#allocation5 + $0x1390] sm:$0xff]
    %v4984 = vld [vmem:[#allocation5 + $0x1398] sm:$0xff]
    %v4985 = vld [vmem:[#allocation5 + $0x13a0] sm:$0xff]
    %v4986 = vld [vmem:[#allocation5 + $0x13a8] sm:$0xff]
    %v4987 = vld [vmem:[#allocation5 + $0x13b0] sm:$0xff]
    %v4988 = vld [vmem:[#allocation5 + $0x13b8] sm:$0xff]
    %v4989 = vld [vmem:[#allocation5 + $0x13c0] sm:$0xff]
    %v4990 = vld [vmem:[#allocation5 + $0x13c8] sm:$0xff]
    %v4991 = vld [vmem:[#allocation5 + $0x13d0] sm:$0xff]
    %v4992 = vld [vmem:[#allocation5 + $0x13d8] sm:$0xff]
    %v4993 = vld [vmem:[#allocation5 + $0x13e0] sm:$0xff]
    %v4994 = vld [vmem:[#allocation5 + $0x13e8] sm:$0xff]
    %v4995 = vld [vmem:[#allocation5 + $0x13f0] sm:$0xff]
    %v4996 = vld [vmem:[#allocation5 + $0x13f8] sm:$0xff]
    %v4997 = vld [vmem:[#allocation5 + $0x1400] sm:$0xff]
    %v4998 = vld [vmem:[#allocation5 + $0x1408] sm:$0xff]
    %v4999 = vld [vmem:[#allocation5 + $0x1410] sm:$0xff]
    %v5000 = vld [vmem:[#allocation5 + $0x1418] sm:$0xff]
    %v5001 = vld [vmem:[#allocation5 + $0x1420] sm:$0xff]
    %v5002 = vld [vmem:[#allocation5 + $0x1428] sm:$0xff]
    %v5003 = vld [vmem:[#allocation5 + $0x1430] sm:$0xff]
    %v5004 = vld [vmem:[#allocation5 + $0x1438] sm:$0xff]
    %v5005 = vld [vmem:[#allocation5 + $0x1440] sm:$0xff]
    %v5006 = vld [vmem:[#allocation5 + $0x1448] sm:$0xff]
    %v5007 = vld [vmem:[#allocation5 + $0x1450] sm:$0xff]
    %v5008 = vld [vmem:[#allocation5 + $0x1458] sm:$0xff]
    %v5009 = vld [vmem:[#allocation5 + $0x1460] sm:$0xff]
    %v5010 = vld [vmem:[#allocation5 + $0x1468] sm:$0xff]
    %v5011 = vld [vmem:[#allocation5 + $0x1470] sm:$0xff]
    %v5012 = vld [vmem:[#allocation5 + $0x1478] sm:$0xff]
    %v5013 = vld [vmem:[#allocation5 + $0x1480] sm:$0xff]
    %v5014 = vld [vmem:[#allocation5 + $0x1488] sm:$0xff]
    %v5015 = vld [vmem:[#allocation5 + $0x1490] sm:$0xff]
    %v5016 = vld [vmem:[#allocation5 + $0x1498] sm:$0xff]
    %v5017 = vld [vmem:[#allocation5 + $0x14a0] sm:$0xff]
    %v5018 = vld [vmem:[#allocation5 + $0x14a8] sm:$0xff]
    %v5019 = vld [vmem:[#allocation5 + $0x14b0] sm:$0xff]
    %v5020 = vld [vmem:[#allocation5 + $0x14b8] sm:$0xff]
    %v5021 = vld [vmem:[#allocation5 + $0x14c0] sm:$0xff]
    %v5022 = vld [vmem:[#allocation5 + $0x14c8] sm:$0xff]
    %v5023 = vld [vmem:[#allocation5 + $0x14d0] sm:$0xff]
    %v5024 = vld [vmem:[#allocation5 + $0x14d8] sm:$0xff]
    %v5025 = vld [vmem:[#allocation5 + $0x14e0] sm:$0xff]
    %v5026 = vld [vmem:[#allocation5 + $0x14e8] sm:$0xff]
    %v5027 = vld [vmem:[#allocation5 + $0x14f0] sm:$0xff]
    %v5028 = vld [vmem:[#allocation5 + $0x14f8] sm:$0xff]
    %v5125 = vunpack.c.l.b16 %v4933
    %v5126 = vunpack.c.h.b16 %v4933
    %v5127 = vunpack.c.l.b16 %v4934
    %v5128 = vunpack.c.h.b16 %v4934
    %v5129 = vunpack.c.l.b16 %v4935
    %v5130 = vunpack.c.h.b16 %v4935
    %v5131 = vunpack.c.l.b16 %v4936
    %v5132 = vunpack.c.h.b16 %v4936
    %v5133 = vunpack.c.l.b16 %v4937
    %v5134 = vunpack.c.h.b16 %v4937
    %v5135 = vunpack.c.l.b16 %v4938
    %v5136 = vunpack.c.h.b16 %v4938
    %v5137 = vunpack.c.l.b16 %v4939
    %v5138 = vunpack.c.h.b16 %v4939
    %v5139 = vunpack.c.l.b16 %v4940
    %v5140 = vunpack.c.h.b16 %v4940
    %v5141 = vunpack.c.l.b16 %v4941
    %v5142 = vunpack.c.h.b16 %v4941
    %v5143 = vunpack.c.l.b16 %v4942
    %v5144 = vunpack.c.h.b16 %v4942
    %v5145 = vunpack.c.l.b16 %v4943
    %v5146 = vunpack.c.h.b16 %v4943
    %v5147 = vunpack.c.l.b16 %v4944
    %v5148 = vunpack.c.h.b16 %v4944
    %v5149 = vunpack.c.l.b16 %v4945
    %v5150 = vunpack.c.h.b16 %v4945
    %v5151 = vunpack.c.l.b16 %v4946
    %v5152 = vunpack.c.h.b16 %v4946
    %v5153 = vunpack.c.l.b16 %v4947
    %v5154 = vunpack.c.h.b16 %v4947
    %v5155 = vunpack.c.l.b16 %v4948
    %v5156 = vunpack.c.h.b16 %v4948
    %v5157 = vunpack.c.l.b16 %v4949
    %v5158 = vunpack.c.h.b16 %v4949
    %v5159 = vunpack.c.l.b16 %v4950
    %v5160 = vunpack.c.h.b16 %v4950
    %v5161 = vunpack.c.l.b16 %v4951
    %v5162 = vunpack.c.h.b16 %v4951
    %v5163 = vunpack.c.l.b16 %v4952
    %v5164 = vunpack.c.h.b16 %v4952
    %v5165 = vunpack.c.l.b16 %v4953
    %v5166 = vunpack.c.h.b16 %v4953
    %v5167 = vunpack.c.l.b16 %v4954
    %v5168 = vunpack.c.h.b16 %v4954
    %v5169 = vunpack.c.l.b16 %v4955
    %v5170 = vunpack.c.h.b16 %v4955
    %v5171 = vunpack.c.l.b16 %v4956
    %v5172 = vunpack.c.h.b16 %v4956
    %v5173 = vunpack.c.l.b16 %v4957
    %v5174 = vunpack.c.h.b16 %v4957
    %v5175 = vunpack.c.l.b16 %v4958
    %v5176 = vunpack.c.h.b16 %v4958
    %v5177 = vunpack.c.l.b16 %v4959
    %v5178 = vunpack.c.h.b16 %v4959
    %v5179 = vunpack.c.l.b16 %v4960
    %v5180 = vunpack.c.h.b16 %v4960
    %v5181 = vunpack.c.l.b16 %v4961
    %v5182 = vunpack.c.h.b16 %v4961
    %v5183 = vunpack.c.l.b16 %v4962
    %v5184 = vunpack.c.h.b16 %v4962
    %v5185 = vunpack.c.l.b16 %v4963
    %v5186 = vunpack.c.h.b16 %v4963
    %v5187 = vunpack.c.l.b16 %v4964
    %v5188 = vunpack.c.h.b16 %v4964
    %v5189 = vunpack.c.l.b16 %v4965
    %v5190 = vunpack.c.h.b16 %v4965
    %v5191 = vunpack.c.l.b16 %v4966
    %v5192 = vunpack.c.h.b16 %v4966
    %v5193 = vunpack.c.l.b16 %v4967
    %v5194 = vunpack.c.h.b16 %v4967
    %v5195 = vunpack.c.l.b16 %v4968
    %v5196 = vunpack.c.h.b16 %v4968
    %v5197 = vunpack.c.l.b16 %v4969
    %v5198 = vunpack.c.h.b16 %v4969
    %v5199 = vunpack.c.l.b16 %v4970
    %v5200 = vunpack.c.h.b16 %v4970
    %v5201 = vunpack.c.l.b16 %v4971
    %v5202 = vunpack.c.h.b16 %v4971
    %v5203 = vunpack.c.l.b16 %v4972
    %v5204 = vunpack.c.h.b16 %v4972
    %v5205 = vunpack.c.l.b16 %v4973
    %v5206 = vunpack.c.h.b16 %v4973
    %v5207 = vunpack.c.l.b16 %v4974
    %v5208 = vunpack.c.h.b16 %v4974
    %v5209 = vunpack.c.l.b16 %v4975
    %v5210 = vunpack.c.h.b16 %v4975
    %v5211 = vunpack.c.l.b16 %v4976
    %v5212 = vunpack.c.h.b16 %v4976
    %v5213 = vunpack.c.l.b16 %v4977
    %v5214 = vunpack.c.h.b16 %v4977
    %v5215 = vunpack.c.l.b16 %v4978
    %v5216 = vunpack.c.h.b16 %v4978
    %v5217 = vunpack.c.l.b16 %v4979
    %v5218 = vunpack.c.h.b16 %v4979
    %v5219 = vunpack.c.l.b16 %v4980
    %v5220 = vunpack.c.h.b16 %v4980
    %v5221 = vunpack.c.l.b16 %v4981
    %v5222 = vunpack.c.h.b16 %v4981
    %v5223 = vunpack.c.l.b16 %v4982
    %v5224 = vunpack.c.h.b16 %v4982
    %v5225 = vunpack.c.l.b16 %v4983
    %v5226 = vunpack.c.h.b16 %v4983
    %v5227 = vunpack.c.l.b16 %v4984
    %v5228 = vunpack.c.h.b16 %v4984
    %v5229 = vunpack.c.l.b16 %v4985
    %v5230 = vunpack.c.h.b16 %v4985
    %v5231 = vunpack.c.l.b16 %v4986
    %v5232 = vunpack.c.h.b16 %v4986
    %v5233 = vunpack.c.l.b16 %v4987
    %v5234 = vunpack.c.h.b16 %v4987
    %v5235 = vunpack.c.l.b16 %v4988
    %v5236 = vunpack.c.h.b16 %v4988
    %v5237 = vunpack.c.l.b16 %v4989
    %v5238 = vunpack.c.h.b16 %v4989
    %v5239 = vunpack.c.l.b16 %v4990
    %v5240 = vunpack.c.h.b16 %v4990
    %v5241 = vunpack.c.l.b16 %v4991
    %v5242 = vunpack.c.h.b16 %v4991
    %v5243 = vunpack.c.l.b16 %v4992
    %v5244 = vunpack.c.h.b16 %v4992
    %v5245 = vunpack.c.l.b16 %v4993
    %v5246 = vunpack.c.h.b16 %v4993
    %v5247 = vunpack.c.l.b16 %v4994
    %v5248 = vunpack.c.h.b16 %v4994
    %v5249 = vunpack.c.l.b16 %v4995
    %v5250 = vunpack.c.h.b16 %v4995
    %v5251 = vunpack.c.l.b16 %v4996
    %v5252 = vunpack.c.h.b16 %v4996
    %v5253 = vunpack.c.l.b16 %v4997
    %v5254 = vunpack.c.h.b16 %v4997
    %v5255 = vunpack.c.l.b16 %v4998
    %v5256 = vunpack.c.h.b16 %v4998
    %v5257 = vunpack.c.l.b16 %v4999
    %v5258 = vunpack.c.h.b16 %v4999
    %v5259 = vunpack.c.l.b16 %v5000
    %v5260 = vunpack.c.h.b16 %v5000
    %v5261 = vunpack.c.l.b16 %v5001
    %v5262 = vunpack.c.h.b16 %v5001
    %v5263 = vunpack.c.l.b16 %v5002
    %v5264 = vunpack.c.h.b16 %v5002
    %v5265 = vunpack.c.l.b16 %v5003
    %v5266 = vunpack.c.h.b16 %v5003
    %v5267 = vunpack.c.l.b16 %v5004
    %v5268 = vunpack.c.h.b16 %v5004
    %v5269 = vunpack.c.l.b16 %v5005
    %v5270 = vunpack.c.h.b16 %v5005
    %v5271 = vunpack.c.l.b16 %v5006
    %v5272 = vunpack.c.h.b16 %v5006
    %v5273 = vunpack.c.l.b16 %v5007
    %v5274 = vunpack.c.h.b16 %v5007
    %v5275 = vunpack.c.l.b16 %v5008
    %v5276 = vunpack.c.h.b16 %v5008
    %v5277 = vunpack.c.l.b16 %v5009
    %v5278 = vunpack.c.h.b16 %v5009
    %v5279 = vunpack.c.l.b16 %v5010
    %v5280 = vunpack.c.h.b16 %v5010
    %v5281 = vunpack.c.l.b16 %v5011
    %v5282 = vunpack.c.h.b16 %v5011
    %v5283 = vunpack.c.l.b16 %v5012
    %v5284 = vunpack.c.h.b16 %v5012
    %v5285 = vunpack.c.l.b16 %v5013
    %v5286 = vunpack.c.h.b16 %v5013
    %v5287 = vunpack.c.l.b16 %v5014
    %v5288 = vunpack.c.h.b16 %v5014
    %v5289 = vunpack.c.l.b16 %v5015
    %v5290 = vunpack.c.h.b16 %v5015
    %v5291 = vunpack.c.l.b16 %v5016
    %v5292 = vunpack.c.h.b16 %v5016
    %v5293 = vunpack.c.l.b16 %v5017
    %v5294 = vunpack.c.h.b16 %v5017
    %v5295 = vunpack.c.l.b16 %v5018
    %v5296 = vunpack.c.h.b16 %v5018
    %v5297 = vunpack.c.l.b16 %v5019
    %v5298 = vunpack.c.h.b16 %v5019
    %v5299 = vunpack.c.l.b16 %v5020
    %v5300 = vunpack.c.h.b16 %v5020
    %v5301 = vunpack.c.l.b16 %v5021
    %v5302 = vunpack.c.h.b16 %v5021
    %v5303 = vunpack.c.l.b16 %v5022
    %v5304 = vunpack.c.h.b16 %v5022
    %v5305 = vunpack.c.l.b16 %v5023
    %v5306 = vunpack.c.h.b16 %v5023
    %v5307 = vunpack.c.l.b16 %v5024
    %v5308 = vunpack.c.h.b16 %v5024
    %v5309 = vunpack.c.l.b16 %v5025
    %v5310 = vunpack.c.h.b16 %v5025
    %v5311 = vunpack.c.l.b16 %v5026
    %v5312 = vunpack.c.h.b16 %v5026
    %v5313 = vunpack.c.l.b16 %v5027
    %v5314 = vunpack.c.h.b16 %v5027
    %v5315 = vunpack.c.l.b16 %v5028
    %v5316 = vunpack.c.h.b16 %v5028
    %v5317 = vpack.c.b16 %v5131, %v5125
    %v5318 = vpack.c.b16 %v5132, %v5126
    %v5319 = vpack.c.b16 %v5133, %v5127
    %v5320 = vpack.c.b16 %v5134, %v5128
    %v5321 = vpack.c.b16 %v5135, %v5129
    %v5322 = vpack.c.b16 %v5136, %v5130
    %v5323 = vpack.c.b16 %v5143, %v5137
    %v5324 = vpack.c.b16 %v5144, %v5138
    %v5325 = vpack.c.b16 %v5145, %v5139
    %v5326 = vpack.c.b16 %v5146, %v5140
    %v5327 = vpack.c.b16 %v5147, %v5141
    %v5328 = vpack.c.b16 %v5148, %v5142
    %v5329 = vpack.c.b16 %v5155, %v5149
    %v5330 = vpack.c.b16 %v5156, %v5150
    %v5331 = vpack.c.b16 %v5157, %v5151
    %v5332 = vpack.c.b16 %v5158, %v5152
    %v5333 = vpack.c.b16 %v5159, %v5153
    %v5334 = vpack.c.b16 %v5160, %v5154
    %v5335 = vpack.c.b16 %v5167, %v5161
    %v5336 = vpack.c.b16 %v5168, %v5162
    %v5337 = vpack.c.b16 %v5169, %v5163
    %v5338 = vpack.c.b16 %v5170, %v5164
    %v5339 = vpack.c.b16 %v5171, %v5165
    %v5340 = vpack.c.b16 %v5172, %v5166
    %v5341 = vpack.c.b16 %v5179, %v5173
    %v5342 = vpack.c.b16 %v5180, %v5174
    %v5343 = vpack.c.b16 %v5181, %v5175
    %v5344 = vpack.c.b16 %v5182, %v5176
    %v5345 = vpack.c.b16 %v5183, %v5177
    %v5346 = vpack.c.b16 %v5184, %v5178
    %v5347 = vpack.c.b16 %v5191, %v5185
    %v5348 = vpack.c.b16 %v5192, %v5186
    %v5349 = vpack.c.b16 %v5193, %v5187
    %v5350 = vpack.c.b16 %v5194, %v5188
    %v5351 = vpack.c.b16 %v5195, %v5189
    %v5352 = vpack.c.b16 %v5196, %v5190
    %v5353 = vpack.c.b16 %v5203, %v5197
    %v5354 = vpack.c.b16 %v5204, %v5198
    %v5355 = vpack.c.b16 %v5205, %v5199
    %v5356 = vpack.c.b16 %v5206, %v5200
    %v5357 = vpack.c.b16 %v5207, %v5201
    %v5358 = vpack.c.b16 %v5208, %v5202
    %v5359 = vpack.c.b16 %v5215, %v5209
    %v5360 = vpack.c.b16 %v5216, %v5210
    %v5361 = vpack.c.b16 %v5217, %v5211
    %v5362 = vpack.c.b16 %v5218, %v5212
    %v5363 = vpack.c.b16 %v5219, %v5213
    %v5364 = vpack.c.b16 %v5220, %v5214
    %v5365 = vpack.c.b16 %v5227, %v5221
    %v5366 = vpack.c.b16 %v5228, %v5222
    %v5367 = vpack.c.b16 %v5229, %v5223
    %v5368 = vpack.c.b16 %v5230, %v5224
    %v5369 = vpack.c.b16 %v5231, %v5225
    %v5370 = vpack.c.b16 %v5232, %v5226
    %v5371 = vpack.c.b16 %v5239, %v5233
    %v5372 = vpack.c.b16 %v5240, %v5234
    %v5373 = vpack.c.b16 %v5241, %v5235
    %v5374 = vpack.c.b16 %v5242, %v5236
    %v5375 = vpack.c.b16 %v5243, %v5237
    %v5376 = vpack.c.b16 %v5244, %v5238
    %v5377 = vpack.c.b16 %v5251, %v5245
    %v5378 = vpack.c.b16 %v5252, %v5246
    %v5379 = vpack.c.b16 %v5253, %v5247
    %v5380 = vpack.c.b16 %v5254, %v5248
    %v5381 = vpack.c.b16 %v5255, %v5249
    %v5382 = vpack.c.b16 %v5256, %v5250
    %v5383 = vpack.c.b16 %v5263, %v5257
    %v5384 = vpack.c.b16 %v5264, %v5258
    %v5385 = vpack.c.b16 %v5265, %v5259
    %v5386 = vpack.c.b16 %v5266, %v5260
    %v5387 = vpack.c.b16 %v5267, %v5261
    %v5388 = vpack.c.b16 %v5268, %v5262
    %v5389 = vpack.c.b16 %v5275, %v5269
    %v5390 = vpack.c.b16 %v5276, %v5270
    %v5391 = vpack.c.b16 %v5277, %v5271
    %v5392 = vpack.c.b16 %v5278, %v5272
    %v5393 = vpack.c.b16 %v5279, %v5273
    %v5394 = vpack.c.b16 %v5280, %v5274
    %v5395 = vpack.c.b16 %v5287, %v5281
    %v5396 = vpack.c.b16 %v5288, %v5282
    %v5397 = vpack.c.b16 %v5289, %v5283
    %v5398 = vpack.c.b16 %v5290, %v5284
    %v5399 = vpack.c.b16 %v5291, %v5285
    %v5400 = vpack.c.b16 %v5292, %v5286
    %v5401 = vpack.c.b16 %v5299, %v5293
    %v5402 = vpack.c.b16 %v5300, %v5294
    %v5403 = vpack.c.b16 %v5301, %v5295
    %v5404 = vpack.c.b16 %v5302, %v5296
    %v5405 = vpack.c.b16 %v5303, %v5297
    %v5406 = vpack.c.b16 %v5304, %v5298
    %v5407 = vpack.c.b16 %v5311, %v5305
    %v5408 = vpack.c.b16 %v5312, %v5306
    %v5409 = vpack.c.b16 %v5313, %v5307
    %v5410 = vpack.c.b16 %v5314, %v5308
    %v5411 = vpack.c.b16 %v5315, %v5309
    %v5412 = vpack.c.b16 %v5316, %v5310
    %5509 = vmatprep.subr.bf16.mxu0 %v5360
    %5510 = vmatpush1.bf16.msra.mxu0 %v5359
    %5511 = vmatprep.subr.bf16.mxu0 %v5354
    %5512 = vmatpush1.bf16.msra.mxu0 %v5353
    %5513 = vmatprep.subr.bf16.mxu0 %v5348
    %5514 = vmatpush1.bf16.msra.mxu0 %v5347
    %5515 = vmatprep.subr.bf16.mxu0 %v5342
    %5516 = vmatpush1.bf16.msra.mxu0 %v5341
    %5517 = vmatprep.subr.bf16.mxu0 %v5336
    %5518 = vmatpush1.bf16.msra.mxu0 %v5335
    %5519 = vmatprep.subr.bf16.mxu0 %v5330
    %5520 = vmatpush1.bf16.msra.mxu0 %v5329
    %5521 = vmatprep.subr.bf16.mxu0 %v5324
    %5522 = vmatpush1.bf16.msra.mxu0 %v5323
    %5523 = vmatprep.subr.bf16.mxu0 %v5318
    %5524 = vmatpush1.bf16.msra.mxu0 %v5317
    %5525 = vmatprep.subr.bf16.mxu0 %v5408
    %5526 = vmatpush2.bf16.msra.mxu0 %v5407
    %5527 = vmatprep.subr.bf16.mxu0 %v5402
    %5528 = vmatpush2.bf16.msra.mxu0 %v5401
    %5529 = vmatprep.subr.bf16.mxu0 %v5396
    %5530 = vmatpush2.bf16.msra.mxu0 %v5395
    %5531 = vmatprep.subr.bf16.mxu0 %v5390
    %5532 = vmatpush2.bf16.msra.mxu0 %v5389
    %5533 = vmatprep.subr.bf16.mxu0 %v5384
    %5534 = vmatpush2.bf16.msra.mxu0 %v5383
    %5535 = vmatprep.subr.bf16.mxu0 %v5378
    %5536 = vmatpush2.bf16.msra.mxu0 %v5377
    %5537 = vmatprep.subr.bf16.mxu0 %v5372
    %5538 = vmatpush2.bf16.msra.mxu0 %v5371
    %5539 = vmatprep.subr.bf16.mxu0 %v5366
    %5540 = vmatpush2.bf16.msra.mxu0 %v5365
    %5541 = vmatprep.mubr.bf16.mxu0 %v4932
    %5542 = vmatmul.mubr.bf16.gmra.mxu0 %v4931
    %v5543 = vpop.f32.mrf.mxu0
    %v5544 = vadd.f32 0.0, %v5543
    %v5545 = vpop.f32.mrf.mxu0
    %v5546 = vadd.f32 0.0, %v5545
    %v5547 = vpop.f32.mrf.mxu0
    %v5548 = vpop.f32.mrf.mxu0
    %5549 = vdwg.mxu0
    %5550 = vmatprep.subr.bf16.mxu0 %v5362
    %5551 = vmatpush1.bf16.msra.mxu0 %v5361
    %5552 = vmatprep.subr.bf16.mxu0 %v5356
    %5553 = vmatpush1.bf16.msra.mxu0 %v5355
    %5554 = vmatprep.subr.bf16.mxu0 %v5350
    %5555 = vmatpush1.bf16.msra.mxu0 %v5349
    %5556 = vmatprep.subr.bf16.mxu0 %v5344
    %5557 = vmatpush1.bf16.msra.mxu0 %v5343
    %5558 = vmatprep.subr.bf16.mxu0 %v5338
    %5559 = vmatpush1.bf16.msra.mxu0 %v5337
    %5560 = vmatprep.subr.bf16.mxu0 %v5332
    %5561 = vmatpush1.bf16.msra.mxu0 %v5331
    %5562 = vmatprep.subr.bf16.mxu0 %v5326
    %5563 = vmatpush1.bf16.msra.mxu0 %v5325
    %5564 = vmatprep.subr.bf16.mxu0 %v5320
    %5565 = vmatpush1.bf16.msra.mxu0 %v5319
    %5566 = vmatprep.subr.bf16.mxu0 %v5410
    %5567 = vmatpush2.bf16.msra.mxu0 %v5409
    %5568 = vmatprep.subr.bf16.mxu0 %v5404
    %5569 = vmatpush2.bf16.msra.mxu0 %v5403
    %5570 = vmatprep.subr.bf16.mxu0 %v5398
    %5571 = vmatpush2.bf16.msra.mxu0 %v5397
    %5572 = vmatprep.subr.bf16.mxu0 %v5392
    %5573 = vmatpush2.bf16.msra.mxu0 %v5391
    %5574 = vmatprep.subr.bf16.mxu0 %v5386
    %5575 = vmatpush2.bf16.msra.mxu0 %v5385
    %5576 = vmatprep.subr.bf16.mxu0 %v5380
    %5577 = vmatpush2.bf16.msra.mxu0 %v5379
    %5578 = vmatprep.subr.bf16.mxu0 %v5374
    %5579 = vmatpush2.bf16.msra.mxu0 %v5373
    %5580 = vmatprep.subr.bf16.mxu0 %v5368
    %5581 = vmatpush2.bf16.msra.mxu0 %v5367
    %5582 = vmatprep.mubr.bf16.mxu0 %v4932
    %5583 = vmatmul.mubr.bf16.gmra.mxu0 %v4931
    %v5584 = vpop.f32.mrf.mxu0
    %v5585 = vadd.f32 0.0, %v5584
    %v5586 = vpop.f32.mrf.mxu0
    %v5587 = vadd.f32 0.0, %v5586
    %v5588 = vpop.f32.mrf.mxu0
    %v5589 = vpop.f32.mrf.mxu0
    %5590 = vdwg.mxu0
    %5591 = vmatprep.subr.bf16.mxu0 %v5364
    %5592 = vmatpush1.bf16.msra.mxu0 %v5363
    %5593 = vmatprep.subr.bf16.mxu0 %v5358
    %5594 = vmatpush1.bf16.msra.mxu0 %v5357
    %5595 = vmatprep.subr.bf16.mxu0 %v5352
    %5596 = vmatpush1.bf16.msra.mxu0 %v5351
    %5597 = vmatprep.subr.bf16.mxu0 %v5346
    %5598 = vmatpush1.bf16.msra.mxu0 %v5345
    %5599 = vmatprep.subr.bf16.mxu0 %v5340
    %5600 = vmatpush1.bf16.msra.mxu0 %v5339
    %5601 = vmatprep.subr.bf16.mxu0 %v5334
    %5602 = vmatpush1.bf16.msra.mxu0 %v5333
    %5603 = vmatprep.subr.bf16.mxu0 %v5328
    %5604 = vmatpush1.bf16.msra.mxu0 %v5327
    %5605 = vmatprep.subr.bf16.mxu0 %v5322
    %5606 = vmatpush1.bf16.msra.mxu0 %v5321
    %5607 = vmatprep.subr.bf16.mxu0 %v5412
    %5608 = vmatpush2.bf16.msra.mxu0 %v5411
    %5609 = vmatprep.subr.bf16.mxu0 %v5406
    %5610 = vmatpush2.bf16.msra.mxu0 %v5405
    %5611 = vmatprep.subr.bf16.mxu0 %v5400
    %5612 = vmatpush2.bf16.msra.mxu0 %v5399
    %5613 = vmatprep.subr.bf16.mxu0 %v5394
    %5614 = vmatpush2.bf16.msra.mxu0 %v5393
    %5615 = vmatprep.subr.bf16.mxu0 %v5388
    %5616 = vmatpush2.bf16.msra.mxu0 %v5387
    %5617 = vmatprep.subr.bf16.mxu0 %v5382
    %5618 = vmatpush2.bf16.msra.mxu0 %v5381
    %5619 = vmatprep.subr.bf16.mxu0 %v5376
    %5620 = vmatpush2.bf16.msra.mxu0 %v5375
    %5621 = vmatprep.subr.bf16.mxu0 %v5370
    %5622 = vmatpush2.bf16.msra.mxu0 %v5369
    %5623 = vmatprep.mubr.bf16.mxu0 %v4932
    %5624 = vmatmul.mubr.bf16.gmra.mxu0 %v4931
    %v5625 = vpop.f32.mrf.mxu0
    %v5626 = vadd.f32 0.0, %v5625
    %v5627 = vpop.f32.mrf.mxu0
    %v5628 = vadd.f32 0.0, %v5627
    %v5629 = vpop.f32.mrf.mxu0
    %v5630 = vpop.f32.mrf.mxu0
    %5631 = vdwg.mxu0
    %v5632 = vadd.f32 %v4923, %v5544
    %v5633 = vadd.f32 %v4924, %v5546
    %v5634 = vadd.f32 %v4925, %v5585
    %v5635 = vadd.f32 %v4926, %v5587
    %v5636 = vadd.f32 %v4927, %v5626
    %v5637 = vadd.f32 %v4928, %v5628
    %v5638 = vld [vmem:[#allocation2 + $0x70] sm:$0xff]
    %v5639 = vld [vmem:[#allocation2 + $0x78] sm:$0xff]
    %v5640 = vpack.c.bf16 %v5638, %v5638
    %v5641 = vpack.c.bf16 %v5639, %v5639
    %v5642 = vld [vmem:[#allocation5 + $0x1500] sm:$0xff]
    %v5643 = vld [vmem:[#allocation5 + $0x1508] sm:$0xff]
    %v5644 = vld [vmem:[#allocation5 + $0x1510] sm:$0xff]
    %v5645 = vld [vmem:[#allocation5 + $0x1518] sm:$0xff]
    %v5646 = vld [vmem:[#allocation5 + $0x1520] sm:$0xff]
    %v5647 = vld [vmem:[#allocation5 + $0x1528] sm:$0xff]
    %v5648 = vld [vmem:[#allocation5 + $0x1530] sm:$0xff]
    %v5649 = vld [vmem:[#allocation5 + $0x1538] sm:$0xff]
    %v5650 = vld [vmem:[#allocation5 + $0x1540] sm:$0xff]
    %v5651 = vld [vmem:[#allocation5 + $0x1548] sm:$0xff]
    %v5652 = vld [vmem:[#allocation5 + $0x1550] sm:$0xff]
    %v5653 = vld [vmem:[#allocation5 + $0x1558] sm:$0xff]
    %v5654 = vld [vmem:[#allocation5 + $0x1560] sm:$0xff]
    %v5655 = vld [vmem:[#allocation5 + $0x1568] sm:$0xff]
    %v5656 = vld [vmem:[#allocation5 + $0x1570] sm:$0xff]
    %v5657 = vld [vmem:[#allocation5 + $0x1578] sm:$0xff]
    %v5658 = vld [vmem:[#allocation5 + $0x1580] sm:$0xff]
    %v5659 = vld [vmem:[#allocation5 + $0x1588] sm:$0xff]
    %v5660 = vld [vmem:[#allocation5 + $0x1590] sm:$0xff]
    %v5661 = vld [vmem:[#allocation5 + $0x1598] sm:$0xff]
    %v5662 = vld [vmem:[#allocation5 + $0x15a0] sm:$0xff]
    %v5663 = vld [vmem:[#allocation5 + $0x15a8] sm:$0xff]
    %v5664 = vld [vmem:[#allocation5 + $0x15b0] sm:$0xff]
    %v5665 = vld [vmem:[#allocation5 + $0x15b8] sm:$0xff]
    %v5666 = vld [vmem:[#allocation5 + $0x15c0] sm:$0xff]
    %v5667 = vld [vmem:[#allocation5 + $0x15c8] sm:$0xff]
    %v5668 = vld [vmem:[#allocation5 + $0x15d0] sm:$0xff]
    %v5669 = vld [vmem:[#allocation5 + $0x15d8] sm:$0xff]
    %v5670 = vld [vmem:[#allocation5 + $0x15e0] sm:$0xff]
    %v5671 = vld [vmem:[#allocation5 + $0x15e8] sm:$0xff]
    %v5672 = vld [vmem:[#allocation5 + $0x15f0] sm:$0xff]
    %v5673 = vld [vmem:[#allocation5 + $0x15f8] sm:$0xff]
    %v5674 = vld [vmem:[#allocation5 + $0x1600] sm:$0xff]
    %v5675 = vld [vmem:[#allocation5 + $0x1608] sm:$0xff]
    %v5676 = vld [vmem:[#allocation5 + $0x1610] sm:$0xff]
    %v5677 = vld [vmem:[#allocation5 + $0x1618] sm:$0xff]
    %v5678 = vld [vmem:[#allocation5 + $0x1620] sm:$0xff]
    %v5679 = vld [vmem:[#allocation5 + $0x1628] sm:$0xff]
    %v5680 = vld [vmem:[#allocation5 + $0x1630] sm:$0xff]
    %v5681 = vld [vmem:[#allocation5 + $0x1638] sm:$0xff]
    %v5682 = vld [vmem:[#allocation5 + $0x1640] sm:$0xff]
    %v5683 = vld [vmem:[#allocation5 + $0x1648] sm:$0xff]
    %v5684 = vld [vmem:[#allocation5 + $0x1650] sm:$0xff]
    %v5685 = vld [vmem:[#allocation5 + $0x1658] sm:$0xff]
    %v5686 = vld [vmem:[#allocation5 + $0x1660] sm:$0xff]
    %v5687 = vld [vmem:[#allocation5 + $0x1668] sm:$0xff]
    %v5688 = vld [vmem:[#allocation5 + $0x1670] sm:$0xff]
    %v5689 = vld [vmem:[#allocation5 + $0x1678] sm:$0xff]
    %v5690 = vld [vmem:[#allocation5 + $0x1680] sm:$0xff]
    %v5691 = vld [vmem:[#allocation5 + $0x1688] sm:$0xff]
    %v5692 = vld [vmem:[#allocation5 + $0x1690] sm:$0xff]
    %v5693 = vld [vmem:[#allocation5 + $0x1698] sm:$0xff]
    %v5694 = vld [vmem:[#allocation5 + $0x16a0] sm:$0xff]
    %v5695 = vld [vmem:[#allocation5 + $0x16a8] sm:$0xff]
    %v5696 = vld [vmem:[#allocation5 + $0x16b0] sm:$0xff]
    %v5697 = vld [vmem:[#allocation5 + $0x16b8] sm:$0xff]
    %v5698 = vld [vmem:[#allocation5 + $0x16c0] sm:$0xff]
    %v5699 = vld [vmem:[#allocation5 + $0x16c8] sm:$0xff]
    %v5700 = vld [vmem:[#allocation5 + $0x16d0] sm:$0xff]
    %v5701 = vld [vmem:[#allocation5 + $0x16d8] sm:$0xff]
    %v5702 = vld [vmem:[#allocation5 + $0x16e0] sm:$0xff]
    %v5703 = vld [vmem:[#allocation5 + $0x16e8] sm:$0xff]
    %v5704 = vld [vmem:[#allocation5 + $0x16f0] sm:$0xff]
    %v5705 = vld [vmem:[#allocation5 + $0x16f8] sm:$0xff]
    %v5706 = vld [vmem:[#allocation5 + $0x1700] sm:$0xff]
    %v5707 = vld [vmem:[#allocation5 + $0x1708] sm:$0xff]
    %v5708 = vld [vmem:[#allocation5 + $0x1710] sm:$0xff]
    %v5709 = vld [vmem:[#allocation5 + $0x1718] sm:$0xff]
    %v5710 = vld [vmem:[#allocation5 + $0x1720] sm:$0xff]
    %v5711 = vld [vmem:[#allocation5 + $0x1728] sm:$0xff]
    %v5712 = vld [vmem:[#allocation5 + $0x1730] sm:$0xff]
    %v5713 = vld [vmem:[#allocation5 + $0x1738] sm:$0xff]
    %v5714 = vld [vmem:[#allocation5 + $0x1740] sm:$0xff]
    %v5715 = vld [vmem:[#allocation5 + $0x1748] sm:$0xff]
    %v5716 = vld [vmem:[#allocation5 + $0x1750] sm:$0xff]
    %v5717 = vld [vmem:[#allocation5 + $0x1758] sm:$0xff]
    %v5718 = vld [vmem:[#allocation5 + $0x1760] sm:$0xff]
    %v5719 = vld [vmem:[#allocation5 + $0x1768] sm:$0xff]
    %v5720 = vld [vmem:[#allocation5 + $0x1770] sm:$0xff]
    %v5721 = vld [vmem:[#allocation5 + $0x1778] sm:$0xff]
    %v5722 = vld [vmem:[#allocation5 + $0x1780] sm:$0xff]
    %v5723 = vld [vmem:[#allocation5 + $0x1788] sm:$0xff]
    %v5724 = vld [vmem:[#allocation5 + $0x1790] sm:$0xff]
    %v5725 = vld [vmem:[#allocation5 + $0x1798] sm:$0xff]
    %v5726 = vld [vmem:[#allocation5 + $0x17a0] sm:$0xff]
    %v5727 = vld [vmem:[#allocation5 + $0x17a8] sm:$0xff]
    %v5728 = vld [vmem:[#allocation5 + $0x17b0] sm:$0xff]
    %v5729 = vld [vmem:[#allocation5 + $0x17b8] sm:$0xff]
    %v5730 = vld [vmem:[#allocation5 + $0x17c0] sm:$0xff]
    %v5731 = vld [vmem:[#allocation5 + $0x17c8] sm:$0xff]
    %v5732 = vld [vmem:[#allocation5 + $0x17d0] sm:$0xff]
    %v5733 = vld [vmem:[#allocation5 + $0x17d8] sm:$0xff]
    %v5734 = vld [vmem:[#allocation5 + $0x17e0] sm:$0xff]
    %v5735 = vld [vmem:[#allocation5 + $0x17e8] sm:$0xff]
    %v5736 = vld [vmem:[#allocation5 + $0x17f0] sm:$0xff]
    %v5737 = vld [vmem:[#allocation5 + $0x17f8] sm:$0xff]
    %v5834 = vunpack.c.l.b16 %v5642
    %v5835 = vunpack.c.h.b16 %v5642
    %v5836 = vunpack.c.l.b16 %v5643
    %v5837 = vunpack.c.h.b16 %v5643
    %v5838 = vunpack.c.l.b16 %v5644
    %v5839 = vunpack.c.h.b16 %v5644
    %v5840 = vunpack.c.l.b16 %v5645
    %v5841 = vunpack.c.h.b16 %v5645
    %v5842 = vunpack.c.l.b16 %v5646
    %v5843 = vunpack.c.h.b16 %v5646
    %v5844 = vunpack.c.l.b16 %v5647
    %v5845 = vunpack.c.h.b16 %v5647
    %v5846 = vunpack.c.l.b16 %v5648
    %v5847 = vunpack.c.h.b16 %v5648
    %v5848 = vunpack.c.l.b16 %v5649
    %v5849 = vunpack.c.h.b16 %v5649
    %v5850 = vunpack.c.l.b16 %v5650
    %v5851 = vunpack.c.h.b16 %v5650
    %v5852 = vunpack.c.l.b16 %v5651
    %v5853 = vunpack.c.h.b16 %v5651
    %v5854 = vunpack.c.l.b16 %v5652
    %v5855 = vunpack.c.h.b16 %v5652
    %v5856 = vunpack.c.l.b16 %v5653
    %v5857 = vunpack.c.h.b16 %v5653
    %v5858 = vunpack.c.l.b16 %v5654
    %v5859 = vunpack.c.h.b16 %v5654
    %v5860 = vunpack.c.l.b16 %v5655
    %v5861 = vunpack.c.h.b16 %v5655
    %v5862 = vunpack.c.l.b16 %v5656
    %v5863 = vunpack.c.h.b16 %v5656
    %v5864 = vunpack.c.l.b16 %v5657
    %v5865 = vunpack.c.h.b16 %v5657
    %v5866 = vunpack.c.l.b16 %v5658
    %v5867 = vunpack.c.h.b16 %v5658
    %v5868 = vunpack.c.l.b16 %v5659
    %v5869 = vunpack.c.h.b16 %v5659
    %v5870 = vunpack.c.l.b16 %v5660
    %v5871 = vunpack.c.h.b16 %v5660
    %v5872 = vunpack.c.l.b16 %v5661
    %v5873 = vunpack.c.h.b16 %v5661
    %v5874 = vunpack.c.l.b16 %v5662
    %v5875 = vunpack.c.h.b16 %v5662
    %v5876 = vunpack.c.l.b16 %v5663
    %v5877 = vunpack.c.h.b16 %v5663
    %v5878 = vunpack.c.l.b16 %v5664
    %v5879 = vunpack.c.h.b16 %v5664
    %v5880 = vunpack.c.l.b16 %v5665
    %v5881 = vunpack.c.h.b16 %v5665
    %v5882 = vunpack.c.l.b16 %v5666
    %v5883 = vunpack.c.h.b16 %v5666
    %v5884 = vunpack.c.l.b16 %v5667
    %v5885 = vunpack.c.h.b16 %v5667
    %v5886 = vunpack.c.l.b16 %v5668
    %v5887 = vunpack.c.h.b16 %v5668
    %v5888 = vunpack.c.l.b16 %v5669
    %v5889 = vunpack.c.h.b16 %v5669
    %v5890 = vunpack.c.l.b16 %v5670
    %v5891 = vunpack.c.h.b16 %v5670
    %v5892 = vunpack.c.l.b16 %v5671
    %v5893 = vunpack.c.h.b16 %v5671
    %v5894 = vunpack.c.l.b16 %v5672
    %v5895 = vunpack.c.h.b16 %v5672
    %v5896 = vunpack.c.l.b16 %v5673
    %v5897 = vunpack.c.h.b16 %v5673
    %v5898 = vunpack.c.l.b16 %v5674
    %v5899 = vunpack.c.h.b16 %v5674
    %v5900 = vunpack.c.l.b16 %v5675
    %v5901 = vunpack.c.h.b16 %v5675
    %v5902 = vunpack.c.l.b16 %v5676
    %v5903 = vunpack.c.h.b16 %v5676
    %v5904 = vunpack.c.l.b16 %v5677
    %v5905 = vunpack.c.h.b16 %v5677
    %v5906 = vunpack.c.l.b16 %v5678
    %v5907 = vunpack.c.h.b16 %v5678
    %v5908 = vunpack.c.l.b16 %v5679
    %v5909 = vunpack.c.h.b16 %v5679
    %v5910 = vunpack.c.l.b16 %v5680
    %v5911 = vunpack.c.h.b16 %v5680
    %v5912 = vunpack.c.l.b16 %v5681
    %v5913 = vunpack.c.h.b16 %v5681
    %v5914 = vunpack.c.l.b16 %v5682
    %v5915 = vunpack.c.h.b16 %v5682
    %v5916 = vunpack.c.l.b16 %v5683
    %v5917 = vunpack.c.h.b16 %v5683
    %v5918 = vunpack.c.l.b16 %v5684
    %v5919 = vunpack.c.h.b16 %v5684
    %v5920 = vunpack.c.l.b16 %v5685
    %v5921 = vunpack.c.h.b16 %v5685
    %v5922 = vunpack.c.l.b16 %v5686
    %v5923 = vunpack.c.h.b16 %v5686
    %v5924 = vunpack.c.l.b16 %v5687
    %v5925 = vunpack.c.h.b16 %v5687
    %v5926 = vunpack.c.l.b16 %v5688
    %v5927 = vunpack.c.h.b16 %v5688
    %v5928 = vunpack.c.l.b16 %v5689
    %v5929 = vunpack.c.h.b16 %v5689
    %v5930 = vunpack.c.l.b16 %v5690
    %v5931 = vunpack.c.h.b16 %v5690
    %v5932 = vunpack.c.l.b16 %v5691
    %v5933 = vunpack.c.h.b16 %v5691
    %v5934 = vunpack.c.l.b16 %v5692
    %v5935 = vunpack.c.h.b16 %v5692
    %v5936 = vunpack.c.l.b16 %v5693
    %v5937 = vunpack.c.h.b16 %v5693
    %v5938 = vunpack.c.l.b16 %v5694
    %v5939 = vunpack.c.h.b16 %v5694
    %v5940 = vunpack.c.l.b16 %v5695
    %v5941 = vunpack.c.h.b16 %v5695
    %v5942 = vunpack.c.l.b16 %v5696
    %v5943 = vunpack.c.h.b16 %v5696
    %v5944 = vunpack.c.l.b16 %v5697
    %v5945 = vunpack.c.h.b16 %v5697
    %v5946 = vunpack.c.l.b16 %v5698
    %v5947 = vunpack.c.h.b16 %v5698
    %v5948 = vunpack.c.l.b16 %v5699
    %v5949 = vunpack.c.h.b16 %v5699
    %v5950 = vunpack.c.l.b16 %v5700
    %v5951 = vunpack.c.h.b16 %v5700
    %v5952 = vunpack.c.l.b16 %v5701
    %v5953 = vunpack.c.h.b16 %v5701
    %v5954 = vunpack.c.l.b16 %v5702
    %v5955 = vunpack.c.h.b16 %v5702
    %v5956 = vunpack.c.l.b16 %v5703
    %v5957 = vunpack.c.h.b16 %v5703
    %v5958 = vunpack.c.l.b16 %v5704
    %v5959 = vunpack.c.h.b16 %v5704
    %v5960 = vunpack.c.l.b16 %v5705
    %v5961 = vunpack.c.h.b16 %v5705
    %v5962 = vunpack.c.l.b16 %v5706
    %v5963 = vunpack.c.h.b16 %v5706
    %v5964 = vunpack.c.l.b16 %v5707
    %v5965 = vunpack.c.h.b16 %v5707
    %v5966 = vunpack.c.l.b16 %v5708
    %v5967 = vunpack.c.h.b16 %v5708
    %v5968 = vunpack.c.l.b16 %v5709
    %v5969 = vunpack.c.h.b16 %v5709
    %v5970 = vunpack.c.l.b16 %v5710
    %v5971 = vunpack.c.h.b16 %v5710
    %v5972 = vunpack.c.l.b16 %v5711
    %v5973 = vunpack.c.h.b16 %v5711
    %v5974 = vunpack.c.l.b16 %v5712
    %v5975 = vunpack.c.h.b16 %v5712
    %v5976 = vunpack.c.l.b16 %v5713
    %v5977 = vunpack.c.h.b16 %v5713
    %v5978 = vunpack.c.l.b16 %v5714
    %v5979 = vunpack.c.h.b16 %v5714
    %v5980 = vunpack.c.l.b16 %v5715
    %v5981 = vunpack.c.h.b16 %v5715
    %v5982 = vunpack.c.l.b16 %v5716
    %v5983 = vunpack.c.h.b16 %v5716
    %v5984 = vunpack.c.l.b16 %v5717
    %v5985 = vunpack.c.h.b16 %v5717
    %v5986 = vunpack.c.l.b16 %v5718
    %v5987 = vunpack.c.h.b16 %v5718
    %v5988 = vunpack.c.l.b16 %v5719
    %v5989 = vunpack.c.h.b16 %v5719
    %v5990 = vunpack.c.l.b16 %v5720
    %v5991 = vunpack.c.h.b16 %v5720
    %v5992 = vunpack.c.l.b16 %v5721
    %v5993 = vunpack.c.h.b16 %v5721
    %v5994 = vunpack.c.l.b16 %v5722
    %v5995 = vunpack.c.h.b16 %v5722
    %v5996 = vunpack.c.l.b16 %v5723
    %v5997 = vunpack.c.h.b16 %v5723
    %v5998 = vunpack.c.l.b16 %v5724
    %v5999 = vunpack.c.h.b16 %v5724
    %v6000 = vunpack.c.l.b16 %v5725
    %v6001 = vunpack.c.h.b16 %v5725
    %v6002 = vunpack.c.l.b16 %v5726
    %v6003 = vunpack.c.h.b16 %v5726
    %v6004 = vunpack.c.l.b16 %v5727
    %v6005 = vunpack.c.h.b16 %v5727
    %v6006 = vunpack.c.l.b16 %v5728
    %v6007 = vunpack.c.h.b16 %v5728
    %v6008 = vunpack.c.l.b16 %v5729
    %v6009 = vunpack.c.h.b16 %v5729
    %v6010 = vunpack.c.l.b16 %v5730
    %v6011 = vunpack.c.h.b16 %v5730
    %v6012 = vunpack.c.l.b16 %v5731
    %v6013 = vunpack.c.h.b16 %v5731
    %v6014 = vunpack.c.l.b16 %v5732
    %v6015 = vunpack.c.h.b16 %v5732
    %v6016 = vunpack.c.l.b16 %v5733
    %v6017 = vunpack.c.h.b16 %v5733
    %v6018 = vunpack.c.l.b16 %v5734
    %v6019 = vunpack.c.h.b16 %v5734
    %v6020 = vunpack.c.l.b16 %v5735
    %v6021 = vunpack.c.h.b16 %v5735
    %v6022 = vunpack.c.l.b16 %v5736
    %v6023 = vunpack.c.h.b16 %v5736
    %v6024 = vunpack.c.l.b16 %v5737
    %v6025 = vunpack.c.h.b16 %v5737
    %v6026 = vpack.c.b16 %v5840, %v5834
    %v6027 = vpack.c.b16 %v5841, %v5835
    %v6028 = vpack.c.b16 %v5842, %v5836
    %v6029 = vpack.c.b16 %v5843, %v5837
    %v6030 = vpack.c.b16 %v5844, %v5838
    %v6031 = vpack.c.b16 %v5845, %v5839
    %v6032 = vpack.c.b16 %v5852, %v5846
    %v6033 = vpack.c.b16 %v5853, %v5847
    %v6034 = vpack.c.b16 %v5854, %v5848
    %v6035 = vpack.c.b16 %v5855, %v5849
    %v6036 = vpack.c.b16 %v5856, %v5850
    %v6037 = vpack.c.b16 %v5857, %v5851
    %v6038 = vpack.c.b16 %v5864, %v5858
    %v6039 = vpack.c.b16 %v5865, %v5859
    %v6040 = vpack.c.b16 %v5866, %v5860
    %v6041 = vpack.c.b16 %v5867, %v5861
    %v6042 = vpack.c.b16 %v5868, %v5862
    %v6043 = vpack.c.b16 %v5869, %v5863
    %v6044 = vpack.c.b16 %v5876, %v5870
    %v6045 = vpack.c.b16 %v5877, %v5871
    %v6046 = vpack.c.b16 %v5878, %v5872
    %v6047 = vpack.c.b16 %v5879, %v5873
    %v6048 = vpack.c.b16 %v5880, %v5874
    %v6049 = vpack.c.b16 %v5881, %v5875
    %v6050 = vpack.c.b16 %v5888, %v5882
    %v6051 = vpack.c.b16 %v5889, %v5883
    %v6052 = vpack.c.b16 %v5890, %v5884
    %v6053 = vpack.c.b16 %v5891, %v5885
    %v6054 = vpack.c.b16 %v5892, %v5886
    %v6055 = vpack.c.b16 %v5893, %v5887
    %v6056 = vpack.c.b16 %v5900, %v5894
    %v6057 = vpack.c.b16 %v5901, %v5895
    %v6058 = vpack.c.b16 %v5902, %v5896
    %v6059 = vpack.c.b16 %v5903, %v5897
    %v6060 = vpack.c.b16 %v5904, %v5898
    %v6061 = vpack.c.b16 %v5905, %v5899
    %v6062 = vpack.c.b16 %v5912, %v5906
    %v6063 = vpack.c.b16 %v5913, %v5907
    %v6064 = vpack.c.b16 %v5914, %v5908
    %v6065 = vpack.c.b16 %v5915, %v5909
    %v6066 = vpack.c.b16 %v5916, %v5910
    %v6067 = vpack.c.b16 %v5917, %v5911
    %v6068 = vpack.c.b16 %v5924, %v5918
    %v6069 = vpack.c.b16 %v5925, %v5919
    %v6070 = vpack.c.b16 %v5926, %v5920
    %v6071 = vpack.c.b16 %v5927, %v5921
    %v6072 = vpack.c.b16 %v5928, %v5922
    %v6073 = vpack.c.b16 %v5929, %v5923
    %v6074 = vpack.c.b16 %v5936, %v5930
    %v6075 = vpack.c.b16 %v5937, %v5931
    %v6076 = vpack.c.b16 %v5938, %v5932
    %v6077 = vpack.c.b16 %v5939, %v5933
    %v6078 = vpack.c.b16 %v5940, %v5934
    %v6079 = vpack.c.b16 %v5941, %v5935
    %v6080 = vpack.c.b16 %v5948, %v5942
    %v6081 = vpack.c.b16 %v5949, %v5943
    %v6082 = vpack.c.b16 %v5950, %v5944
    %v6083 = vpack.c.b16 %v5951, %v5945
    %v6084 = vpack.c.b16 %v5952, %v5946
    %v6085 = vpack.c.b16 %v5953, %v5947
    %v6086 = vpack.c.b16 %v5960, %v5954
    %v6087 = vpack.c.b16 %v5961, %v5955
    %v6088 = vpack.c.b16 %v5962, %v5956
    %v6089 = vpack.c.b16 %v5963, %v5957
    %v6090 = vpack.c.b16 %v5964, %v5958
    %v6091 = vpack.c.b16 %v5965, %v5959
    %v6092 = vpack.c.b16 %v5972, %v5966
    %v6093 = vpack.c.b16 %v5973, %v5967
    %v6094 = vpack.c.b16 %v5974, %v5968
    %v6095 = vpack.c.b16 %v5975, %v5969
    %v6096 = vpack.c.b16 %v5976, %v5970
    %v6097 = vpack.c.b16 %v5977, %v5971
    %v6098 = vpack.c.b16 %v5984, %v5978
    %v6099 = vpack.c.b16 %v5985, %v5979
    %v6100 = vpack.c.b16 %v5986, %v5980
    %v6101 = vpack.c.b16 %v5987, %v5981
    %v6102 = vpack.c.b16 %v5988, %v5982
    %v6103 = vpack.c.b16 %v5989, %v5983
    %v6104 = vpack.c.b16 %v5996, %v5990
    %v6105 = vpack.c.b16 %v5997, %v5991
    %v6106 = vpack.c.b16 %v5998, %v5992
    %v6107 = vpack.c.b16 %v5999, %v5993
    %v6108 = vpack.c.b16 %v6000, %v5994
    %v6109 = vpack.c.b16 %v6001, %v5995
    %v6110 = vpack.c.b16 %v6008, %v6002
    %v6111 = vpack.c.b16 %v6009, %v6003
    %v6112 = vpack.c.b16 %v6010, %v6004
    %v6113 = vpack.c.b16 %v6011, %v6005
    %v6114 = vpack.c.b16 %v6012, %v6006
    %v6115 = vpack.c.b16 %v6013, %v6007
    %v6116 = vpack.c.b16 %v6020, %v6014
    %v6117 = vpack.c.b16 %v6021, %v6015
    %v6118 = vpack.c.b16 %v6022, %v6016
    %v6119 = vpack.c.b16 %v6023, %v6017
    %v6120 = vpack.c.b16 %v6024, %v6018
    %v6121 = vpack.c.b16 %v6025, %v6019
    %6218 = vmatprep.subr.bf16.mxu0 %v6069
    %6219 = vmatpush1.bf16.msra.mxu0 %v6068
    %6220 = vmatprep.subr.bf16.mxu0 %v6063
    %6221 = vmatpush1.bf16.msra.mxu0 %v6062
    %6222 = vmatprep.subr.bf16.mxu0 %v6057
    %6223 = vmatpush1.bf16.msra.mxu0 %v6056
    %6224 = vmatprep.subr.bf16.mxu0 %v6051
    %6225 = vmatpush1.bf16.msra.mxu0 %v6050
    %6226 = vmatprep.subr.bf16.mxu0 %v6045
    %6227 = vmatpush1.bf16.msra.mxu0 %v6044
    %6228 = vmatprep.subr.bf16.mxu0 %v6039
    %6229 = vmatpush1.bf16.msra.mxu0 %v6038
    %6230 = vmatprep.subr.bf16.mxu0 %v6033
    %6231 = vmatpush1.bf16.msra.mxu0 %v6032
    %6232 = vmatprep.subr.bf16.mxu0 %v6027
    %6233 = vmatpush1.bf16.msra.mxu0 %v6026
    %6234 = vmatprep.subr.bf16.mxu0 %v6117
    %6235 = vmatpush2.bf16.msra.mxu0 %v6116
    %6236 = vmatprep.subr.bf16.mxu0 %v6111
    %6237 = vmatpush2.bf16.msra.mxu0 %v6110
    %6238 = vmatprep.subr.bf16.mxu0 %v6105
    %6239 = vmatpush2.bf16.msra.mxu0 %v6104
    %6240 = vmatprep.subr.bf16.mxu0 %v6099
    %6241 = vmatpush2.bf16.msra.mxu0 %v6098
    %6242 = vmatprep.subr.bf16.mxu0 %v6093
    %6243 = vmatpush2.bf16.msra.mxu0 %v6092
    %6244 = vmatprep.subr.bf16.mxu0 %v6087
    %6245 = vmatpush2.bf16.msra.mxu0 %v6086
    %6246 = vmatprep.subr.bf16.mxu0 %v6081
    %6247 = vmatpush2.bf16.msra.mxu0 %v6080
    %6248 = vmatprep.subr.bf16.mxu0 %v6075
    %6249 = vmatpush2.bf16.msra.mxu0 %v6074
    %6250 = vmatprep.mubr.bf16.mxu0 %v5641
    %6251 = vmatmul.mubr.bf16.gmra.mxu0 %v5640
    %v6252 = vpop.f32.mrf.mxu0
    %v6253 = vadd.f32 0.0, %v6252
    %v6254 = vpop.f32.mrf.mxu0
    %v6255 = vadd.f32 0.0, %v6254
    %v6256 = vpop.f32.mrf.mxu0
    %v6257 = vpop.f32.mrf.mxu0
    %6258 = vdwg.mxu0
    %6259 = vmatprep.subr.bf16.mxu0 %v6071
    %6260 = vmatpush1.bf16.msra.mxu0 %v6070
    %6261 = vmatprep.subr.bf16.mxu0 %v6065
    %6262 = vmatpush1.bf16.msra.mxu0 %v6064
    %6263 = vmatprep.subr.bf16.mxu0 %v6059
    %6264 = vmatpush1.bf16.msra.mxu0 %v6058
    %6265 = vmatprep.subr.bf16.mxu0 %v6053
    %6266 = vmatpush1.bf16.msra.mxu0 %v6052
    %6267 = vmatprep.subr.bf16.mxu0 %v6047
    %6268 = vmatpush1.bf16.msra.mxu0 %v6046
    %6269 = vmatprep.subr.bf16.mxu0 %v6041
    %6270 = vmatpush1.bf16.msra.mxu0 %v6040
    %6271 = vmatprep.subr.bf16.mxu0 %v6035
    %6272 = vmatpush1.bf16.msra.mxu0 %v6034
    %6273 = vmatprep.subr.bf16.mxu0 %v6029
    %6274 = vmatpush1.bf16.msra.mxu0 %v6028
    %6275 = vmatprep.subr.bf16.mxu0 %v6119
    %6276 = vmatpush2.bf16.msra.mxu0 %v6118
    %6277 = vmatprep.subr.bf16.mxu0 %v6113
    %6278 = vmatpush2.bf16.msra.mxu0 %v6112
    %6279 = vmatprep.subr.bf16.mxu0 %v6107
    %6280 = vmatpush2.bf16.msra.mxu0 %v6106
    %6281 = vmatprep.subr.bf16.mxu0 %v6101
    %6282 = vmatpush2.bf16.msra.mxu0 %v6100
    %6283 = vmatprep.subr.bf16.mxu0 %v6095
    %6284 = vmatpush2.bf16.msra.mxu0 %v6094
    %6285 = vmatprep.subr.bf16.mxu0 %v6089
    %6286 = vmatpush2.bf16.msra.mxu0 %v6088
    %6287 = vmatprep.subr.bf16.mxu0 %v6083
    %6288 = vmatpush2.bf16.msra.mxu0 %v6082
    %6289 = vmatprep.subr.bf16.mxu0 %v6077
    %6290 = vmatpush2.bf16.msra.mxu0 %v6076
    %6291 = vmatprep.mubr.bf16.mxu0 %v5641
    %6292 = vmatmul.mubr.bf16.gmra.mxu0 %v5640
    %v6293 = vpop.f32.mrf.mxu0
    %v6294 = vadd.f32 0.0, %v6293
    %v6295 = vpop.f32.mrf.mxu0
    %v6296 = vadd.f32 0.0, %v6295
    %v6297 = vpop.f32.mrf.mxu0
    %v6298 = vpop.f32.mrf.mxu0
    %6299 = vdwg.mxu0
    %6300 = vmatprep.subr.bf16.mxu0 %v6073
    %6301 = vmatpush1.bf16.msra.mxu0 %v6072
    %6302 = vmatprep.subr.bf16.mxu0 %v6067
    %6303 = vmatpush1.bf16.msra.mxu0 %v6066
    %6304 = vmatprep.subr.bf16.mxu0 %v6061
    %6305 = vmatpush1.bf16.msra.mxu0 %v6060
    %6306 = vmatprep.subr.bf16.mxu0 %v6055
    %6307 = vmatpush1.bf16.msra.mxu0 %v6054
    %6308 = vmatprep.subr.bf16.mxu0 %v6049
    %6309 = vmatpush1.bf16.msra.mxu0 %v6048
    %6310 = vmatprep.subr.bf16.mxu0 %v6043
    %6311 = vmatpush1.bf16.msra.mxu0 %v6042
    %6312 = vmatprep.subr.bf16.mxu0 %v6037
    %6313 = vmatpush1.bf16.msra.mxu0 %v6036
    %6314 = vmatprep.subr.bf16.mxu0 %v6031
    %6315 = vmatpush1.bf16.msra.mxu0 %v6030
    %6316 = vmatprep.subr.bf16.mxu0 %v6121
    %6317 = vmatpush2.bf16.msra.mxu0 %v6120
    %6318 = vmatprep.subr.bf16.mxu0 %v6115
    %6319 = vmatpush2.bf16.msra.mxu0 %v6114
    %6320 = vmatprep.subr.bf16.mxu0 %v6109
    %6321 = vmatpush2.bf16.msra.mxu0 %v6108
    %6322 = vmatprep.subr.bf16.mxu0 %v6103
    %6323 = vmatpush2.bf16.msra.mxu0 %v6102
    %6324 = vmatprep.subr.bf16.mxu0 %v6097
    %6325 = vmatpush2.bf16.msra.mxu0 %v6096
    %6326 = vmatprep.subr.bf16.mxu0 %v6091
    %6327 = vmatpush2.bf16.msra.mxu0 %v6090
    %6328 = vmatprep.subr.bf16.mxu0 %v6085
    %6329 = vmatpush2.bf16.msra.mxu0 %v6084
    %6330 = vmatprep.subr.bf16.mxu0 %v6079
    %6331 = vmatpush2.bf16.msra.mxu0 %v6078
    %6332 = vmatprep.mubr.bf16.mxu0 %v5641
    %6333 = vmatmul.mubr.bf16.gmra.mxu0 %v5640
    %v6334 = vpop.f32.mrf.mxu0
    %v6335 = vadd.f32 0.0, %v6334
    %v6336 = vpop.f32.mrf.mxu0
    %v6337 = vadd.f32 0.0, %v6336
    %v6338 = vpop.f32.mrf.mxu0
    %v6339 = vpop.f32.mrf.mxu0
    %6340 = vdwg.mxu0
    %v6341 = vadd.f32 %v5632, %v6253
    %v6342 = vadd.f32 %v5633, %v6255
    %v6343 = vadd.f32 %v5634, %v6294
    %v6344 = vadd.f32 %v5635, %v6296
    %v6345 = vadd.f32 %v5636, %v6335
    %v6346 = vadd.f32 %v5637, %v6337
    %v6347 = vld [vmem:[#allocation7] sm:$0x3f]
    %v6349 = vlaneseq
    %v6350 = vshrl.u32 %v6349, 7
    %v6351 = vsub.s32 0, %v6350
    %v6352 = vrot.slane %v6347, %v6351
    %v6353 = vlaneseq
    %v6354 = vshrl.u32 %v6353, 7
    %v6355 = vsub.s32 1, %v6354
    %v6356 = vrot.slane %v6347, %v6355
    %v6357 = vlaneseq
    %v6358 = vshrl.u32 %v6357, 7
    %v6359 = vsub.s32 2, %v6358
    %v6360 = vrot.slane %v6347, %v6359
    %v6361 = vlaneseq
    %v6362 = vshrl.u32 %v6361, 7
    %v6363 = vsub.s32 3, %v6362
    %v6364 = vrot.slane %v6347, %v6363
    %v6365 = vlaneseq
    %v6366 = vshrl.u32 %v6365, 7
    %v6367 = vsub.s32 4, %v6366
    %v6368 = vrot.slane %v6347, %v6367
    %v6369 = vlaneseq
    %v6370 = vshrl.u32 %v6369, 7
    %v6371 = vsub.s32 5, %v6370
    %v6372 = vrot.slane %v6347, %v6371
    %v6379 = vadd.f32 %v6341, %v6352
    %v6380 = vadd.f32 %v6342, %v6356
    %v6381 = vadd.f32 %v6343, %v6360
    %v6382 = vadd.f32 %v6344, %v6364
    %v6383 = vadd.f32 %v6345, %v6368
    %v6384 = vadd.f32 %v6346, %v6372
    %v6385 = vmax.f32 %v6379, 0.0
    %v6386 = vmax.f32 %v6380, 0.0
    %v6387 = vmax.f32 %v6381, 0.0
    %v6388 = vmax.f32 %v6382, 0.0
    %v6389 = vmax.f32 %v6383, 0.0
    %v6390 = vmax.f32 %v6384, 0.0
    %6391 = vst [vmem:[%s7] sm:$0xff] %v6385
    %6392 = vst [vmem:[%s7 + $0x8] sm:$0xff] %v6386
    %6393 = vst [vmem:[%s7 + $0x10] sm:$0xff] %v6387
    %6394 = vst [vmem:[%s7 + $0x18] sm:$0xff] %v6388
    %6395 = vst [vmem:[%s7 + $0x20] sm:$0xff] %v6389
    %6396 = vst [vmem:[%s7 + $0x28] sm:$0xff] %v6390
    %v6397 = vpack.c.bf16 %v6385, %v6385
    %v6398 = vpack.c.bf16 %v6386, %v6386
    %v6399 = vpack.c.bf16 %v6387, %v6387
    %v6400 = vpack.c.bf16 %v6388, %v6388
    %v6401 = vpack.c.bf16 %v6389, %v6389
    %v6402 = vpack.c.bf16 %v6390, %v6390
    %v6403 = vld [vmem:[#allocation8] sm:$0xf]
    %v6404 = vld [vmem:[#allocation8 + $0x4] sm:$0xf]
    %v6405 = vld [vmem:[#allocation8 + $0x8] sm:$0xf]
    %v6406 = vld [vmem:[#allocation8 + $0xc] sm:$0xf]
    %v6407 = vld [vmem:[#allocation8 + $0x10] sm:$0xf]
    %v6408 = vld [vmem:[#allocation8 + $0x14] sm:$0xf]
    %v6409 = vld [vmem:[#allocation8 + $0x18] sm:$0xf]
    %v6410 = vld [vmem:[#allocation8 + $0x1c] sm:$0xf]
    %v6411 = vld [vmem:[#allocation8 + $0x20] sm:$0xf]
    %v6412 = vld [vmem:[#allocation8 + $0x24] sm:$0xf]
    %v6413 = vld [vmem:[#allocation8 + $0x28] sm:$0xf]
    %v6414 = vld [vmem:[#allocation8 + $0x2c] sm:$0xf]
    %v6415 = vld [vmem:[#allocation8 + $0x30] sm:$0xf]
    %v6416 = vld [vmem:[#allocation8 + $0x34] sm:$0xf]
    %v6417 = vld [vmem:[#allocation8 + $0x38] sm:$0xf]
    %v6418 = vld [vmem:[#allocation8 + $0x3c] sm:$0xf]
    %v6419 = vld [vmem:[#allocation8 + $0x40] sm:$0xf]
    %v6420 = vld [vmem:[#allocation8 + $0x44] sm:$0xf]
    %v6421 = vld [vmem:[#allocation8 + $0x48] sm:$0xf]
    %v6422 = vld [vmem:[#allocation8 + $0x4c] sm:$0xf]
    %v6423 = vld [vmem:[#allocation8 + $0x50] sm:$0xf]
    %v6424 = vld [vmem:[#allocation8 + $0x54] sm:$0xf]
    %v6425 = vld [vmem:[#allocation8 + $0x58] sm:$0xf]
    %v6426 = vld [vmem:[#allocation8 + $0x5c] sm:$0xf]
    %v6427 = vld [vmem:[#allocation8 + $0x60] sm:$0xf]
    %v6428 = vld [vmem:[#allocation8 + $0x64] sm:$0xf]
    %v6429 = vld [vmem:[#allocation8 + $0x68] sm:$0xf]
    %v6430 = vld [vmem:[#allocation8 + $0x6c] sm:$0xf]
    %v6431 = vld [vmem:[#allocation8 + $0x70] sm:$0xf]
    %v6432 = vld [vmem:[#allocation8 + $0x74] sm:$0xf]
    %v6433 = vld [vmem:[#allocation8 + $0x78] sm:$0xf]
    %v6434 = vld [vmem:[#allocation8 + $0x7c] sm:$0xf]
    %v6435 = vld [vmem:[#allocation8 + $0x80] sm:$0xf]
    %v6436 = vld [vmem:[#allocation8 + $0x84] sm:$0xf]
    %v6437 = vld [vmem:[#allocation8 + $0x88] sm:$0xf]
    %v6438 = vld [vmem:[#allocation8 + $0x8c] sm:$0xf]
    %v6439 = vld [vmem:[#allocation8 + $0x90] sm:$0xf]
    %v6440 = vld [vmem:[#allocation8 + $0x94] sm:$0xf]
    %v6441 = vld [vmem:[#allocation8 + $0x98] sm:$0xf]
    %v6442 = vld [vmem:[#allocation8 + $0x9c] sm:$0xf]
    %v6443 = vld [vmem:[#allocation8 + $0xa0] sm:$0xf]
    %v6444 = vld [vmem:[#allocation8 + $0xa4] sm:$0xf]
    %v6445 = vld [vmem:[#allocation8 + $0xa8] sm:$0xf]
    %v6446 = vld [vmem:[#allocation8 + $0xac] sm:$0xf]
    %v6447 = vld [vmem:[#allocation8 + $0xb0] sm:$0xf]
    %v6448 = vld [vmem:[#allocation8 + $0xb4] sm:$0xf]
    %v6449 = vld [vmem:[#allocation8 + $0xb8] sm:$0xf]
    %v6450 = vld [vmem:[#allocation8 + $0xbc] sm:$0xf]
    %v6451 = vld [vmem:[#allocation8 + $0xc0] sm:$0xf]
    %v6452 = vld [vmem:[#allocation8 + $0xc4] sm:$0xf]
    %v6453 = vld [vmem:[#allocation8 + $0xc8] sm:$0xf]
    %v6454 = vld [vmem:[#allocation8 + $0xcc] sm:$0xf]
    %v6455 = vld [vmem:[#allocation8 + $0xd0] sm:$0xf]
    %v6456 = vld [vmem:[#allocation8 + $0xd4] sm:$0xf]
    %v6457 = vld [vmem:[#allocation8 + $0xd8] sm:$0xf]
    %v6458 = vld [vmem:[#allocation8 + $0xdc] sm:$0xf]
    %v6459 = vld [vmem:[#allocation8 + $0xe0] sm:$0xf]
    %v6460 = vld [vmem:[#allocation8 + $0xe4] sm:$0xf]
    %v6461 = vld [vmem:[#allocation8 + $0xe8] sm:$0xf]
    %v6462 = vld [vmem:[#allocation8 + $0xec] sm:$0xf]
    %v6463 = vld [vmem:[#allocation8 + $0xf0] sm:$0xf]
    %v6464 = vld [vmem:[#allocation8 + $0xf4] sm:$0xf]
    %v6465 = vld [vmem:[#allocation8 + $0xf8] sm:$0xf]
    %v6466 = vld [vmem:[#allocation8 + $0xfc] sm:$0xf]
    %v6467 = vld [vmem:[#allocation8 + $0x100] sm:$0xf]
    %v6468 = vld [vmem:[#allocation8 + $0x104] sm:$0xf]
    %v6469 = vld [vmem:[#allocation8 + $0x108] sm:$0xf]
    %v6470 = vld [vmem:[#allocation8 + $0x10c] sm:$0xf]
    %v6471 = vld [vmem:[#allocation8 + $0x110] sm:$0xf]
    %v6472 = vld [vmem:[#allocation8 + $0x114] sm:$0xf]
    %v6473 = vld [vmem:[#allocation8 + $0x118] sm:$0xf]
    %v6474 = vld [vmem:[#allocation8 + $0x11c] sm:$0xf]
    %v6475 = vld [vmem:[#allocation8 + $0x120] sm:$0xf]
    %v6476 = vld [vmem:[#allocation8 + $0x124] sm:$0xf]
    %v6477 = vld [vmem:[#allocation8 + $0x128] sm:$0xf]
    %v6478 = vld [vmem:[#allocation8 + $0x12c] sm:$0xf]
    %v6479 = vld [vmem:[#allocation8 + $0x130] sm:$0xf]
    %v6480 = vld [vmem:[#allocation8 + $0x134] sm:$0xf]
    %v6481 = vld [vmem:[#allocation8 + $0x138] sm:$0xf]
    %v6482 = vld [vmem:[#allocation8 + $0x13c] sm:$0xf]
    %v6483 = vld [vmem:[#allocation8 + $0x140] sm:$0xf]
    %v6484 = vld [vmem:[#allocation8 + $0x144] sm:$0xf]
    %v6485 = vld [vmem:[#allocation8 + $0x148] sm:$0xf]
    %v6486 = vld [vmem:[#allocation8 + $0x14c] sm:$0xf]
    %v6487 = vld [vmem:[#allocation8 + $0x150] sm:$0xf]
    %v6488 = vld [vmem:[#allocation8 + $0x154] sm:$0xf]
    %v6489 = vld [vmem:[#allocation8 + $0x158] sm:$0xf]
    %v6490 = vld [vmem:[#allocation8 + $0x15c] sm:$0xf]
    %v6491 = vld [vmem:[#allocation8 + $0x160] sm:$0xf]
    %v6492 = vld [vmem:[#allocation8 + $0x164] sm:$0xf]
    %v6493 = vld [vmem:[#allocation8 + $0x168] sm:$0xf]
    %v6494 = vld [vmem:[#allocation8 + $0x16c] sm:$0xf]
    %v6495 = vld [vmem:[#allocation8 + $0x170] sm:$0xf]
    %v6496 = vld [vmem:[#allocation8 + $0x174] sm:$0xf]
    %v6497 = vld [vmem:[#allocation8 + $0x178] sm:$0xf]
    %v6498 = vld [vmem:[#allocation8 + $0x17c] sm:$0xf]
    %v6499 = vld [vmem:[#allocation10] sm:$0x1]
    %v6501 = vlaneseq
    %v6502 = vshrl.u32 %v6501, 7
    %v6503 = vsub.s32 0, %v6502
    %v6504 = vrot.slane %v6499, %v6503
    %v6602 = vunpack.c.l.b16 %v6403
    %v6603 = vunpack.c.l.b16 %v6404
    %v6604 = vunpack.c.l.b16 %v6405
    %v6605 = vunpack.c.l.b16 %v6406
    %v6606 = vunpack.c.l.b16 %v6407
    %v6607 = vunpack.c.l.b16 %v6408
    %v6608 = vunpack.c.l.b16 %v6409
    %v6609 = vunpack.c.l.b16 %v6410
    %v6610 = vunpack.c.l.b16 %v6411
    %v6611 = vunpack.c.l.b16 %v6412
    %v6612 = vunpack.c.l.b16 %v6413
    %v6613 = vunpack.c.l.b16 %v6414
    %v6614 = vunpack.c.l.b16 %v6415
    %v6615 = vunpack.c.l.b16 %v6416
    %v6616 = vunpack.c.l.b16 %v6417
    %v6617 = vunpack.c.l.b16 %v6418
    %v6618 = vunpack.c.l.b16 %v6419
    %v6619 = vunpack.c.l.b16 %v6420
    %v6620 = vunpack.c.l.b16 %v6421
    %v6621 = vunpack.c.l.b16 %v6422
    %v6622 = vunpack.c.l.b16 %v6423
    %v6623 = vunpack.c.l.b16 %v6424
    %v6624 = vunpack.c.l.b16 %v6425
    %v6625 = vunpack.c.l.b16 %v6426
    %v6626 = vunpack.c.l.b16 %v6427
    %v6627 = vunpack.c.l.b16 %v6428
    %v6628 = vunpack.c.l.b16 %v6429
    %v6629 = vunpack.c.l.b16 %v6430
    %v6630 = vunpack.c.l.b16 %v6431
    %v6631 = vunpack.c.l.b16 %v6432
    %v6632 = vunpack.c.l.b16 %v6433
    %v6633 = vunpack.c.l.b16 %v6434
    %v6634 = vunpack.c.l.b16 %v6435
    %v6635 = vunpack.c.l.b16 %v6436
    %v6636 = vunpack.c.l.b16 %v6437
    %v6637 = vunpack.c.l.b16 %v6438
    %v6638 = vunpack.c.l.b16 %v6439
    %v6639 = vunpack.c.l.b16 %v6440
    %v6640 = vunpack.c.l.b16 %v6441
    %v6641 = vunpack.c.l.b16 %v6442
    %v6642 = vunpack.c.l.b16 %v6443
    %v6643 = vunpack.c.l.b16 %v6444
    %v6644 = vunpack.c.l.b16 %v6445
    %v6645 = vunpack.c.l.b16 %v6446
    %v6646 = vunpack.c.l.b16 %v6447
    %v6647 = vunpack.c.l.b16 %v6448
    %v6648 = vunpack.c.l.b16 %v6449
    %v6649 = vunpack.c.l.b16 %v6450
    %v6650 = vunpack.c.l.b16 %v6451
    %v6651 = vunpack.c.l.b16 %v6452
    %v6652 = vunpack.c.l.b16 %v6453
    %v6653 = vunpack.c.l.b16 %v6454
    %v6654 = vunpack.c.l.b16 %v6455
    %v6655 = vunpack.c.l.b16 %v6456
    %v6656 = vunpack.c.l.b16 %v6457
    %v6657 = vunpack.c.l.b16 %v6458
    %v6658 = vunpack.c.l.b16 %v6459
    %v6659 = vunpack.c.l.b16 %v6460
    %v6660 = vunpack.c.l.b16 %v6461
    %v6661 = vunpack.c.l.b16 %v6462
    %v6662 = vunpack.c.l.b16 %v6463
    %v6663 = vunpack.c.l.b16 %v6464
    %v6664 = vunpack.c.l.b16 %v6465
    %v6665 = vunpack.c.l.b16 %v6466
    %v6666 = vunpack.c.l.b16 %v6467
    %v6667 = vunpack.c.l.b16 %v6468
    %v6668 = vunpack.c.l.b16 %v6469
    %v6669 = vunpack.c.l.b16 %v6470
    %v6670 = vunpack.c.l.b16 %v6471
    %v6671 = vunpack.c.l.b16 %v6472
    %v6672 = vunpack.c.l.b16 %v6473
    %v6673 = vunpack.c.l.b16 %v6474
    %v6674 = vunpack.c.l.b16 %v6475
    %v6675 = vunpack.c.l.b16 %v6476
    %v6676 = vunpack.c.l.b16 %v6477
    %v6677 = vunpack.c.l.b16 %v6478
    %v6678 = vunpack.c.l.b16 %v6479
    %v6679 = vunpack.c.l.b16 %v6480
    %v6680 = vunpack.c.l.b16 %v6481
    %v6681 = vunpack.c.l.b16 %v6482
    %v6682 = vunpack.c.l.b16 %v6483
    %v6683 = vunpack.c.l.b16 %v6484
    %v6684 = vunpack.c.l.b16 %v6485
    %v6685 = vunpack.c.l.b16 %v6486
    %v6686 = vunpack.c.l.b16 %v6487
    %v6687 = vunpack.c.l.b16 %v6488
    %v6688 = vunpack.c.l.b16 %v6489
    %v6689 = vunpack.c.l.b16 %v6490
    %v6690 = vunpack.c.l.b16 %v6491
    %v6691 = vunpack.c.l.b16 %v6492
    %v6692 = vunpack.c.l.b16 %v6493
    %v6693 = vunpack.c.l.b16 %v6494
    %v6694 = vunpack.c.l.b16 %v6495
    %v6695 = vunpack.c.l.b16 %v6496
    %v6696 = vunpack.c.l.b16 %v6497
    %v6697 = vunpack.c.l.b16 %v6498
    %v6698 = vpack.c.b16 %v6603, %v6602
    %v6699 = vpack.c.b16 %v6605, %v6604
    %v6700 = vpack.c.b16 %v6607, %v6606
    %v6701 = vpack.c.b16 %v6609, %v6608
    %v6702 = vpack.c.b16 %v6611, %v6610
    %v6703 = vpack.c.b16 %v6613, %v6612
    %v6704 = vpack.c.b16 %v6615, %v6614
    %v6705 = vpack.c.b16 %v6617, %v6616
    %v6706 = vpack.c.b16 %v6619, %v6618
    %v6707 = vpack.c.b16 %v6621, %v6620
    %v6708 = vpack.c.b16 %v6623, %v6622
    %v6709 = vpack.c.b16 %v6625, %v6624
    %v6710 = vpack.c.b16 %v6627, %v6626
    %v6711 = vpack.c.b16 %v6629, %v6628
    %v6712 = vpack.c.b16 %v6631, %v6630
    %v6713 = vpack.c.b16 %v6633, %v6632
    %v6714 = vpack.c.b16 %v6635, %v6634
    %v6715 = vpack.c.b16 %v6637, %v6636
    %v6716 = vpack.c.b16 %v6639, %v6638
    %v6717 = vpack.c.b16 %v6641, %v6640
    %v6718 = vpack.c.b16 %v6643, %v6642
    %v6719 = vpack.c.b16 %v6645, %v6644
    %v6720 = vpack.c.b16 %v6647, %v6646
    %v6721 = vpack.c.b16 %v6649, %v6648
    %v6722 = vpack.c.b16 %v6651, %v6650
    %v6723 = vpack.c.b16 %v6653, %v6652
    %v6724 = vpack.c.b16 %v6655, %v6654
    %v6725 = vpack.c.b16 %v6657, %v6656
    %v6726 = vpack.c.b16 %v6659, %v6658
    %v6727 = vpack.c.b16 %v6661, %v6660
    %v6728 = vpack.c.b16 %v6663, %v6662
    %v6729 = vpack.c.b16 %v6665, %v6664
    %v6730 = vpack.c.b16 %v6667, %v6666
    %v6731 = vpack.c.b16 %v6669, %v6668
    %v6732 = vpack.c.b16 %v6671, %v6670
    %v6733 = vpack.c.b16 %v6673, %v6672
    %v6734 = vpack.c.b16 %v6675, %v6674
    %v6735 = vpack.c.b16 %v6677, %v6676
    %v6736 = vpack.c.b16 %v6679, %v6678
    %v6737 = vpack.c.b16 %v6681, %v6680
    %v6738 = vpack.c.b16 %v6683, %v6682
    %v6739 = vpack.c.b16 %v6685, %v6684
    %v6740 = vpack.c.b16 %v6687, %v6686
    %v6741 = vpack.c.b16 %v6689, %v6688
    %v6742 = vpack.c.b16 %v6691, %v6690
    %v6743 = vpack.c.b16 %v6693, %v6692
    %v6744 = vpack.c.b16 %v6695, %v6694
    %v6745 = vpack.c.b16 %v6697, %v6696
    %6794 = vmatprep.subr.bf16.mxu0 0
    %6795 = vmatpush1.bf16.msra.mxu0 %v6705
    %6796 = vmatprep.subr.bf16.mxu0 0
    %6797 = vmatpush1.bf16.msra.mxu0 %v6704
    %6798 = vmatprep.subr.bf16.mxu0 0
    %6799 = vmatpush1.bf16.msra.mxu0 %v6703
    %6800 = vmatprep.subr.bf16.mxu0 0
    %6801 = vmatpush1.bf16.msra.mxu0 %v6702
    %6802 = vmatprep.subr.bf16.mxu0 0
    %6803 = vmatpush1.bf16.msra.mxu0 %v6701
    %6804 = vmatprep.subr.bf16.mxu0 0
    %6805 = vmatpush1.bf16.msra.mxu0 %v6700
    %6806 = vmatprep.subr.bf16.mxu0 0
    %6807 = vmatpush1.bf16.msra.mxu0 %v6699
    %6808 = vmatprep.subr.bf16.mxu0 0
    %6809 = vmatpush1.bf16.msra.mxu0 %v6698
    %6810 = vmatprep.subr.bf16.mxu0 0
    %6811 = vmatpush2.bf16.msra.mxu0 %v6713
    %6812 = vmatprep.subr.bf16.mxu0 0
    %6813 = vmatpush2.bf16.msra.mxu0 %v6712
    %6814 = vmatprep.subr.bf16.mxu0 0
    %6815 = vmatpush2.bf16.msra.mxu0 %v6711
    %6816 = vmatprep.subr.bf16.mxu0 0
    %6817 = vmatpush2.bf16.msra.mxu0 %v6710
    %6818 = vmatprep.subr.bf16.mxu0 0
    %6819 = vmatpush2.bf16.msra.mxu0 %v6709
    %6820 = vmatprep.subr.bf16.mxu0 0
    %6821 = vmatpush2.bf16.msra.mxu0 %v6708
    %6822 = vmatprep.subr.bf16.mxu0 0
    %6823 = vmatpush2.bf16.msra.mxu0 %v6707
    %6824 = vmatprep.subr.bf16.mxu0 0
    %6825 = vmatpush2.bf16.msra.mxu0 %v6706
    %6826 = vmatprep.mubr.bf16.mxu0 %v6398
    %6827 = vmatmul.mubr.bf16.gmra.mxu0 %v6397
    %v6828 = vpop.f32.mrf.mxu0
    %v6829 = vadd.f32 %v6504, %v6828
    %v6830 = vpop.f32.mrf.mxu0
    %v6831 = vpop.f32.mrf.mxu0
    %v6832 = vpop.f32.mrf.mxu0
    %6833 = vdwg.mxu0
    %6834 = vmatprep.subr.bf16.mxu0 0
    %6835 = vmatpush1.bf16.msra.mxu0 %v6721
    %6836 = vmatprep.subr.bf16.mxu0 0
    %6837 = vmatpush1.bf16.msra.mxu0 %v6720
    %6838 = vmatprep.subr.bf16.mxu0 0
    %6839 = vmatpush1.bf16.msra.mxu0 %v6719
    %6840 = vmatprep.subr.bf16.mxu0 0
    %6841 = vmatpush1.bf16.msra.mxu0 %v6718
    %6842 = vmatprep.subr.bf16.mxu0 0
    %6843 = vmatpush1.bf16.msra.mxu0 %v6717
    %6844 = vmatprep.subr.bf16.mxu0 0
    %6845 = vmatpush1.bf16.msra.mxu0 %v6716
    %6846 = vmatprep.subr.bf16.mxu0 0
    %6847 = vmatpush1.bf16.msra.mxu0 %v6715
    %6848 = vmatprep.subr.bf16.mxu0 0
    %6849 = vmatpush1.bf16.msra.mxu0 %v6714
    %6850 = vmatprep.subr.bf16.mxu0 0
    %6851 = vmatpush2.bf16.msra.mxu0 %v6729
    %6852 = vmatprep.subr.bf16.mxu0 0
    %6853 = vmatpush2.bf16.msra.mxu0 %v6728
    %6854 = vmatprep.subr.bf16.mxu0 0
    %6855 = vmatpush2.bf16.msra.mxu0 %v6727
    %6856 = vmatprep.subr.bf16.mxu0 0
    %6857 = vmatpush2.bf16.msra.mxu0 %v6726
    %6858 = vmatprep.subr.bf16.mxu0 0
    %6859 = vmatpush2.bf16.msra.mxu0 %v6725
    %6860 = vmatprep.subr.bf16.mxu0 0
    %6861 = vmatpush2.bf16.msra.mxu0 %v6724
    %6862 = vmatprep.subr.bf16.mxu0 0
    %6863 = vmatpush2.bf16.msra.mxu0 %v6723
    %6864 = vmatprep.subr.bf16.mxu0 0
    %6865 = vmatpush2.bf16.msra.mxu0 %v6722
    %6866 = vmatprep.mubr.bf16.mxu0 %v6400
    %6867 = vmatmul.mubr.bf16.gmra.mxu0 %v6399
    %v6868 = vpop.f32.mrf.mxu0
    %v6869 = vadd.f32 %v6829, %v6868
    %v6870 = vpop.f32.mrf.mxu0
    %v6871 = vpop.f32.mrf.mxu0
    %v6872 = vpop.f32.mrf.mxu0
    %6873 = vdwg.mxu0
    %6874 = vmatprep.subr.bf16.mxu0 0
    %6875 = vmatpush1.bf16.msra.mxu0 %v6737
    %6876 = vmatprep.subr.bf16.mxu0 0
    %6877 = vmatpush1.bf16.msra.mxu0 %v6736
    %6878 = vmatprep.subr.bf16.mxu0 0
    %6879 = vmatpush1.bf16.msra.mxu0 %v6735
    %6880 = vmatprep.subr.bf16.mxu0 0
    %6881 = vmatpush1.bf16.msra.mxu0 %v6734
    %6882 = vmatprep.subr.bf16.mxu0 0
    %6883 = vmatpush1.bf16.msra.mxu0 %v6733
    %6884 = vmatprep.subr.bf16.mxu0 0
    %6885 = vmatpush1.bf16.msra.mxu0 %v6732
    %6886 = vmatprep.subr.bf16.mxu0 0
    %6887 = vmatpush1.bf16.msra.mxu0 %v6731
    %6888 = vmatprep.subr.bf16.mxu0 0
    %6889 = vmatpush1.bf16.msra.mxu0 %v6730
    %6890 = vmatprep.subr.bf16.mxu0 0
    %6891 = vmatpush2.bf16.msra.mxu0 %v6745
    %6892 = vmatprep.subr.bf16.mxu0 0
    %6893 = vmatpush2.bf16.msra.mxu0 %v6744
    %6894 = vmatprep.subr.bf16.mxu0 0
    %6895 = vmatpush2.bf16.msra.mxu0 %v6743
    %6896 = vmatprep.subr.bf16.mxu0 0
    %6897 = vmatpush2.bf16.msra.mxu0 %v6742
    %6898 = vmatprep.subr.bf16.mxu0 0
    %6899 = vmatpush2.bf16.msra.mxu0 %v6741
    %6900 = vmatprep.subr.bf16.mxu0 0
    %6901 = vmatpush2.bf16.msra.mxu0 %v6740
    %6902 = vmatprep.subr.bf16.mxu0 0
    %6903 = vmatpush2.bf16.msra.mxu0 %v6739
    %6904 = vmatprep.subr.bf16.mxu0 0
    %6905 = vmatpush2.bf16.msra.mxu0 %v6738
    %6906 = vmatprep.mubr.bf16.mxu0 %v6402
    %6907 = vmatmul.mubr.bf16.gmra.mxu0 %v6401
    %v6908 = vpop.f32.mrf.mxu0
    %v6909 = vadd.f32 %v6869, %v6908
    %v6910 = vpop.f32.mrf.mxu0
    %v6911 = vpop.f32.mrf.mxu0
    %v6912 = vpop.f32.mrf.mxu0
    %6913 = vdwg.mxu0
    %6914 = vmax.xlane.f32.xlu0 %v6909
    %v6915 = vpop.xlane.xlu0 %6914
    %v6916 = vsub.f32 %v6909, %v6915
    %v6917 = vmul.f32 %v6916, 1.442695
    %v6918 = vpow.pop %v6917
    %6919 = vadd.xlane.f32.xlu0 %v6918
    %v6920 = vpop.xlane.xlu0 %6919
    %v6921 = vrcp.pop %v6920
    %v6922 = vmul.f32 %v6918, %v6921
    %6923 = vst [vmem:[%s8] sm:$0xff] %v6922
    // Predicated region
    $region50: #{_forward_both.1} parent=1 // pred_check
      _
    $region51: #{_forward_both.1} parent=1 // pred_check_branch
      %6925 = sbr.rel (0) target = $region53
    $region52: #{_forward_both.1} parent=1 // pred_region
      _
    $region53: #{_forward_both.1} parent=1 // pred_fallthru
      _
    // Predicated region
    $region54: #{_forward_both.1} parent=1 // pred_check
      _
    $region55: #{_forward_both.1} parent=1 // pred_check_branch
      %6927 = sbr.rel (0) target = $region57
    $region56: #{_forward_both.1} parent=1 // pred_region
      _
    $region57: #{_forward_both.1} parent=1 // pred_fallthru
      _
    // Predicated region
    $region58: #{_forward_both.1} parent=1 // pred_check
      _
    $region59: #{_forward_both.1} parent=1 // pred_check_branch
      %6929 = sbr.rel (0) target = $region61
    $region60: #{_forward_both.1} parent=1 // pred_region
      _
    $region61: #{_forward_both.1} parent=1 // pred_fallthru
      _
    // Predicated region
    $region62: #{_forward_both.1} parent=1 // pred_check
      _
    $region63: #{_forward_both.1} parent=1 // pred_check_branch
      %6931 = sbr.rel (0) target = $region65
    $region64: #{_forward_both.1} parent=1 // pred_region
      _
    $region65: #{_forward_both.1} parent=1 // pred_fallthru
      _
    %6932 = vsyncpa [#allocation4], 1
    %6933 = vsyncpa [#allocation6], 1
    %6934 = vsyncpa [#allocation9], 1

</llo_original>
